<compile_context>
chip_gen: v7x
topology: tpu7x:2x2x1
jax: 0.10.0
libtpu: 0.0.40
codegen_flags: <defaults>
</compile_context>

<pallas_src>
import math

import jax
import jax.numpy as jnp
from jax.experimental import pallas as pl
from jax.experimental.pallas import tpu as pltpu


_VMEM_SPEC = pl.BlockSpec(memory_space=pltpu.MemorySpace.VMEM)


def _round_up(x, m):
    return -(-x // m) * m


# ----------------------------------------------------------------------------
# Fused Pallas kernel (factory closes over static shapes)
# ----------------------------------------------------------------------------
def _make_fused_kernel(Bp, HJ, rnn_layer, seq_max, seq_c, seq_p):
    GW = 4 * HJ  # joint gate width: each gate owns its own HJ(=128)-lane group

    def _cell(g, c):
        # g: (Bp, 4*HJ) f32, layout [i | f | g | o], each a whole 128-lane group.
        i = jax.nn.sigmoid(g[:, 0 * HJ:1 * HJ])
        f = jax.nn.sigmoid(g[:, 1 * HJ:2 * HJ])
        u = jnp.tanh(g[:, 2 * HJ:3 * HJ])
        o = jax.nn.sigmoid(g[:, 3 * HJ:4 * HJ])
        c = f * c + i * u
        h = o * jnp.tanh(c)
        return h, c

    def kernel(*refs):
        # refs = [x_joint,
        #         per layer: wih_joint, whh_joint, bias_joint  (3 * rnn_layer),
        #         w1a, w1b, b1, w2, b2,
        #         out_ref]
        x_ref = refs[0]
        layer_refs = refs[1:1 + 3 * rnn_layer]
        w1a_ref, w1b_ref, b1_ref, w2_ref, b2_ref = refs[1 + 3 * rnn_layer:6 + 3 * rnn_layer]
        out_ref = refs[6 + 3 * rnn_layer]

        # ---------------- layer 0 (joint cdr3+pep) ----------------
        wih = layer_refs[0][...]   # (2F, GW) bf16
        whh = layer_refs[1][...]   # (HJ, GW) bf16 (block-diagonal across the two stacks)
        # One big hoisted input projection for the whole padded sequence (off the chain);
        # bias folded in once so the per-step add is a plain VPU add.
        gx_all = (jnp.dot(x_ref[...], wih, preferred_element_type=jnp.float32)
                  + layer_refs[2][...])                      # (seq_max*Bp, GW) f32

        h = jnp.zeros((Bp, HJ), jnp.float32)
        c = jnp.zeros((Bp, HJ), jnp.float32)
        hs = []
        for t in range(seq_max):
            # Bp is a multiple of 8 -> sublane-aligned slice.
            g = gx_all[t * Bp:(t + 1) * Bp, :] + jnp.dot(
                h.astype(jnp.bfloat16), whh, preferred_element_type=jnp.float32)
            h, c = _cell(g, c)
            hs.append(h.astype(jnp.bfloat16))

        # ---------------- layers 1 .. L-1 (joint) ----------------
        for l in range(1, rnn_layer):
            wih = layer_refs[3 * l][...]      # (HJ, GW) bf16
            whh = layer_refs[3 * l + 1][...]  # (HJ, GW) bf16
            bias_b = jnp.broadcast_to(layer_refs[3 * l + 2][...], (Bp, GW))  # hoisted
            h = jnp.zeros((Bp, HJ), jnp.float32)
            c = jnp.zeros((Bp, HJ), jnp.float32)
            new_hs = []
            for t in range(seq_max):
                # Input projection is off the h->h chain; per-timestep to bound live vregs.
                gx = jnp.dot(hs[t], wih, preferred_element_type=jnp.float32) + bias_b
                g = gx + jnp.dot(h.astype(jnp.bfloat16), whh,
                                 preferred_element_type=jnp.float32)
                h, c = _cell(g, c)
                new_hs.append(h.astype(jnp.bfloat16))
            hs = new_hs
            # TODO(synk): inter-layer LSTM dropout is identity in eval mode.

        # Block-diagonal merge => cdr3/pep sub-states never mix; just snapshot each at
        # its own last timestep (no masking/freezing needed).
        h_cdr3 = hs[seq_c - 1]   # cdr3 hidden lives in lanes [0, H)
        h_pep = hs[seq_p - 1]    # pep hidden lives in lanes [H, 2H)

        # hidden_layer(cat([cdr3_last, pep_last])) as a split matmul (zero rows in
        # w1a/w1b drop the other stack's lanes), output padded to a full 128-lane vreg.
        h1 = (jnp.dot(h_cdr3, w1a_ref[...], preferred_element_type=jnp.float32)
              + jnp.dot(h_pep, w1b_ref[...], preferred_element_type=jnp.float32)
              + b1_ref[...])
        h1 = jnp.where(h1 > 0, h1, 0.01 * h1)   # LeakyReLU (PyTorch default slope 0.01)
        # TODO(synk): nn.Dropout is identity at inference; training-mode dropout not implemented.

        # output_layer: N=1 MXU pass replaced by VPU multiply + lane reduction.
        logit = jnp.sum(h1 * w2_ref[...], axis=-1, keepdims=True) + b2_ref[...]
        out_ref[...] = jax.nn.sigmoid(logit)

    return kernel


# ----------------------------------------------------------------------------
# Wrapper: host-side padding / block-diagonal weight packing + pallas_call
# ----------------------------------------------------------------------------
def lstm_double_aa_forward(cdr3_input, pep_input, params):
    batch, seq_c, F = cdr3_input.shape
    _, seq_p, _ = pep_input.shape
    rnn_layer = len(params["lstm_cdr3"])
    H = params["lstm_cdr3"][0][1].shape[1]          # W_hh is (4H, H)

    Bp = _round_up(max(batch, 1), 8)                # sublane-aligned batch
    seq_max = max(seq_c, seq_p)
    HJ = max(128, _round_up(2 * H, 128))            # joint hidden width (lane-padded)
    GW = 4 * HJ                                     # joint gate width (one vreg per gate)
    HOUT = max(128, _round_up(H, 128))              # padded MLP hidden width

    # ---- activations: pad batch/time with zeros, time-major flatten, feature-concat,
    #      ship as bf16 (halves DMA, removes in-kernel casts) ----
    def prep_x(x, seq):
        x = jnp.asarray(x, jnp.float32)
        x = jnp.pad(x, ((0, Bp - batch), (0, seq_max - seq), (0, 0)))
        return jnp.transpose(x, (1, 0, 2)).reshape(seq_max * Bp, x.shape[-1])

    x_joint = jnp.concatenate([prep_x(cdr3_input, seq_c), prep_x(pep_input, seq_p)],
                              axis=1).astype(jnp.bfloat16)      # (seq_max*Bp, 2F)

    # ---- weights: block-diagonal merge of the two stacks; gate k of stack s lands in
    #      columns [k*HJ + s*H, k*HJ + s*H + H) so each gate owns a whole 128-lane group ----
    def scatter_cols(dst, w, row_off, col_off):
        w_t = jnp.asarray(w, jnp.float32).T           # (in_dim, 4H)
        in_dim = w_t.shape[0]
        for k in range(4):
            dst = dst.at[row_off:row_off + in_dim,
                         k * HJ + col_off:k * HJ + col_off + H].set(w_t[:, k * H:(k + 1) * H])
        return dst

    def scatter_bias(dst, b, col_off):
        b = jnp.asarray(b, jnp.float32).reshape(-1)
        for k in range(4):
            dst = dst.at[0, k * HJ + col_off:k * HJ + col_off + H].set(b[k * H:(k + 1) * H])
        return dst

    layer_flat = []
    for l in range(rnn_layer):
        w_ih_c, w_hh_c, b_c = params["lstm_cdr3"][l]
        w_ih_p, w_hh_p, b_p = params["lstm_pep"][l]
        if l == 0:
            wih = jnp.zeros((2 * F, GW), jnp.float32)
            wih = scatter_cols(wih, w_ih_c, 0, 0)
            wih = scatter_cols(wih, w_ih_p, F, H)
        else:
            wih = jnp.zeros((HJ, GW), jnp.float32)
            wih = scatter_cols(wih, w_ih_c, 0, 0)
            wih = scatter_cols(wih, w_ih_p, H, H)
        whh = jnp.zeros((HJ, GW), jnp.float32)
        whh = scatter_cols(whh, w_hh_c, 0, 0)
        whh = scatter_cols(whh, w_hh_p, H, H)
        bias = jnp.zeros((1, GW), jnp.float32)
        bias = scatter_bias(bias, b_c, 0)
        bias = scatter_bias(bias, b_p, H)
        layer_flat += [wih.astype(jnp.bfloat16), whh.astype(jnp.bfloat16), bias]

    # ---- MLP head (split + lane-padded) ----
    w1, b1 = params["hidden_layer"]   # w1: (H, 2H), b1: (1, H)
    w2, b2 = params["output_layer"]   # w2: (1, H),  b2: (1, 1)
    w1 = jnp.asarray(w1, jnp.float32)
    w1a = jnp.zeros((HJ, HOUT), jnp.float32).at[0:H, 0:H].set(w1[:, :H].T).astype(jnp.bfloat16)
    w1b = jnp.zeros((HJ, HOUT), jnp.float32).at[H:2 * H, 0:H].set(w1[:, H:].T).astype(jnp.bfloat16)
    b1p = jnp.zeros((1, HOUT), jnp.float32).at[0, 0:H].set(jnp.asarray(b1, jnp.float32).reshape(-1))
    w2p = jnp.zeros((1, HOUT), jnp.float32).at[0, 0:H].set(jnp.asarray(w2, jnp.float32).reshape(-1))
    b2p = jnp.asarray(b2, jnp.float32).reshape(1, 1)

    kernel = _make_fused_kernel(Bp, HJ, rnn_layer, seq_max, seq_c, seq_p)
    n_in = 1 + 3 * rnn_layer + 5
    out = pl.pallas_call(
        kernel,
        out_shape=jax.ShapeDtypeStruct((Bp, 1), jnp.float32),
        in_specs=[_VMEM_SPEC] * n_in,
        out_specs=_VMEM_SPEC,
    )(x_joint, *layer_flat, w1a, w1b, b1p, w2p, b2p)
    return out[:batch]


# ----------------------------------------------------------------------------
# Parameter construction (deterministic, mirrors nn.Module __init__ shapes)
# ----------------------------------------------------------------------------
def init_lstm_params(key, feature_num, hidden_num, rnn_layer):
    """Per-layer (W_ih, W_hh, combined bias) with PyTorch-style uniform init."""
    bound = 1.0 / math.sqrt(hidden_num)
    params = []
    for layer in range(rnn_layer):
        in_dim = feature_num if layer == 0 else hidden_num
        key, k1, k2, k3, k4 = jax.random.split(key, 5)
        w_ih = jax.random.uniform(k1, (4 * hidden_num, in_dim), jnp.float32, -bound, bound)
        w_hh = jax.random.uniform(k2, (4 * hidden_num, hidden_num), jnp.float32, -bound, bound)
        b_ih = jax.random.uniform(k3, (4 * hidden_num,), jnp.float32, -bound, bound)
        b_hh = jax.random.uniform(k4, (4 * hidden_num,), jnp.float32, -bound, bound)
        params.append((w_ih, w_hh, (b_ih + b_hh).reshape(1, 4 * hidden_num)))
    return params, key


def init_linear(key, out_dim, in_dim):
    bound = 1.0 / math.sqrt(in_dim)
    key, k1, k2 = jax.random.split(key, 3)
    w = jax.random.uniform(k1, (out_dim, in_dim), jnp.float32, -bound, bound)
    b = jax.random.uniform(k2, (1, out_dim), jnp.float32, -bound, bound)
    return (w, b), key


# ----------------------------------------------------------------------------
if __name__ == "__main__":
    feature_num = 16
    hidden_num = 32
    rnn_layer = 2
    batch = 2
    seq_cdr3 = 8
    seq_pep = 6

    key = jax.random.PRNGKey(0)
    key, k_cdr3, k_pep = jax.random.split(key, 3)
    cdr3_input = jax.random.normal(k_cdr3, (batch, seq_cdr3, feature_num), jnp.float32)
    pep_input = jax.random.normal(k_pep, (batch, seq_pep, feature_num), jnp.float32)

    lstm_cdr3_params, key = init_lstm_params(key, feature_num, hidden_num, rnn_layer)
    lstm_pep_params, key = init_lstm_params(key, feature_num, hidden_num, rnn_layer)
    hidden_layer, key = init_linear(key, hidden_num, hidden_num * 2)
    output_layer, key = init_linear(key, 1, hidden_num)

    params = {
        "lstm_cdr3": lstm_cdr3_params,
        "lstm_pep": lstm_pep_params,
        "hidden_layer": hidden_layer,
        "output_layer": output_layer,
    }

    forward = jax.jit(lstm_double_aa_forward)
    out = forward(cdr3_input, pep_input, params)
    out = jax.block_until_ready(out)
    assert out.shape == (batch, 1)
    assert bool(jnp.all(jnp.isfinite(out)))
    assert bool(jnp.all((out >= 0.0) & (out <= 1.0)))
    print("KERNEL_OK")
</pallas_src>

<mosaic_0001>
module attributes {stable_mosaic.version = 11 : i64} {
  func.func @kernel(%arg0: memref<64x32xbf16, #tpu.memory_space<vmem>>, %arg1: memref<32x512xbf16, #tpu.memory_space<vmem>>, %arg2: memref<128x512xbf16, #tpu.memory_space<vmem>>, %arg3: memref<1x512xf32, #tpu.memory_space<vmem>>, %arg4: memref<128x512xbf16, #tpu.memory_space<vmem>>, %arg5: memref<128x512xbf16, #tpu.memory_space<vmem>>, %arg6: memref<1x512xf32, #tpu.memory_space<vmem>>, %arg7: memref<128x128xbf16, #tpu.memory_space<vmem>>, %arg8: memref<128x128xbf16, #tpu.memory_space<vmem>>, %arg9: memref<1x128xf32, #tpu.memory_space<vmem>>, %arg10: memref<1x128xf32, #tpu.memory_space<vmem>>, %arg11: memref<1x1xf32, #tpu.memory_space<vmem>>, %arg12: memref<8x1xf32, #tpu.memory_space<vmem>>) attributes {dimension_semantics = [], scalar_prefetch = 0 : i64, scratch_operands = 0 : i64, tpu.core_type = #tpu.core_type<tc>} {
    %c0 = arith.constant 0 : index
    %c0_0 = arith.constant 0 : index
    %0 = vector.load %arg1[%c0, %c0_0] : memref<32x512xbf16, #tpu.memory_space<vmem>>, vector<32x512xbf16>
    %c0_1 = arith.constant 0 : index
    %c0_2 = arith.constant 0 : index
    %1 = vector.load %arg2[%c0_1, %c0_2] : memref<128x512xbf16, #tpu.memory_space<vmem>>, vector<128x512xbf16>
    %c0_3 = arith.constant 0 : index
    %c0_4 = arith.constant 0 : index
    %2 = vector.load %arg0[%c0_3, %c0_4] : memref<64x32xbf16, #tpu.memory_space<vmem>>, vector<64x32xbf16>
    %cst = arith.constant dense<0.000000e+00> : vector<64x512xf32>
    %3 = tpu.matmul %2, %0, %cst {dimension_numbers = #tpu.dot_dimension_numbers<[1], [0], [0], [1], [0, 0, 1, 1], [], []>} : vector<64x32xbf16>, vector<32x512xbf16>, vector<64x512xf32> -> vector<64x512xf32>
    %c0_5 = arith.constant 0 : index
    %c0_6 = arith.constant 0 : index
    %4 = vector.load %arg3[%c0_5, %c0_6] : memref<1x512xf32, #tpu.memory_space<vmem>>, vector<1x512xf32>
    %5 = vector.broadcast %4 : vector<1x512xf32> to vector<64x512xf32>
    %6 = arith.addf %3, %5 : vector<64x512xf32>
    %cst_7 = arith.constant 0.000000e+00 : f32
    %7 = vector.broadcast %cst_7 : f32 to vector<8x128xf32>
    %cst_8 = arith.constant 0.000000e+00 : f32
    %8 = vector.broadcast %cst_8 : f32 to vector<8x128xf32>
    %9 = vector.extract_strided_slice %6 {offsets = [0, 0], sizes = [8, 512], strides = [1, 1]} : vector<64x512xf32> to vector<8x512xf32>
    %10 = arith.truncf %7 : vector<8x128xf32> to vector<8x128xbf16>
    %cst_9 = arith.constant dense<0.000000e+00> : vector<8x512xf32>
    %11 = tpu.matmul %10, %1, %cst_9 {dimension_numbers = #tpu.dot_dimension_numbers<[1], [0], [0], [1], [0, 0, 1, 1], [], []>} : vector<8x128xbf16>, vector<128x512xbf16>, vector<8x512xf32> -> vector<8x512xf32>
    %12 = arith.addf %9, %11 : vector<8x512xf32>
    %13 = vector.extract_strided_slice %12 {offsets = [0, 0], sizes = [8, 128], strides = [1, 1]} : vector<8x512xf32> to vector<8x128xf32>
    %14 = arith.negf %13 : vector<8x128xf32>
    %15 = math.exp %14 : vector<8x128xf32>
    %cst_10 = arith.constant 1.000000e+00 : f32
    %16 = vector.broadcast %cst_10 : f32 to vector<8x128xf32>
    %17 = arith.addf %16, %15 : vector<8x128xf32>
    %18 = arith.divf %16, %17 : vector<8x128xf32>
    %19 = vector.extract_strided_slice %12 {offsets = [0, 128], sizes = [8, 128], strides = [1, 1]} : vector<8x512xf32> to vector<8x128xf32>
    %20 = arith.negf %19 : vector<8x128xf32>
    %21 = math.exp %20 : vector<8x128xf32>
    %cst_11 = arith.constant 1.000000e+00 : f32
    %22 = vector.broadcast %cst_11 : f32 to vector<8x128xf32>
    %23 = arith.addf %22, %21 : vector<8x128xf32>
    %24 = arith.divf %22, %23 : vector<8x128xf32>
    %25 = vector.extract_strided_slice %12 {offsets = [0, 256], sizes = [8, 128], strides = [1, 1]} : vector<8x512xf32> to vector<8x128xf32>
    %26 = math.tanh %25 : vector<8x128xf32>
    %27 = vector.extract_strided_slice %12 {offsets = [0, 384], sizes = [8, 128], strides = [1, 1]} : vector<8x512xf32> to vector<8x128xf32>
    %28 = arith.negf %27 : vector<8x128xf32>
    %29 = math.exp %28 : vector<8x128xf32>
    %cst_12 = arith.constant 1.000000e+00 : f32
    %30 = vector.broadcast %cst_12 : f32 to vector<8x128xf32>
    %31 = arith.addf %30, %29 : vector<8x128xf32>
    %32 = arith.divf %30, %31 : vector<8x128xf32>
    %33 = arith.mulf %24, %8 : vector<8x128xf32>
    %34 = arith.mulf %18, %26 : vector<8x128xf32>
    %35 = arith.addf %33, %34 : vector<8x128xf32>
    %36 = math.tanh %35 : vector<8x128xf32>
    %37 = arith.mulf %32, %36 : vector<8x128xf32>
    %38 = arith.truncf %37 : vector<8x128xf32> to vector<8x128xbf16>
    %39 = vector.extract_strided_slice %6 {offsets = [8, 0], sizes = [8, 512], strides = [1, 1]} : vector<64x512xf32> to vector<8x512xf32>
    %40 = arith.truncf %37 : vector<8x128xf32> to vector<8x128xbf16>
    %cst_13 = arith.constant dense<0.000000e+00> : vector<8x512xf32>
    %41 = tpu.matmul %40, %1, %cst_13 {dimension_numbers = #tpu.dot_dimension_numbers<[1], [0], [0], [1], [0, 0, 1, 1], [], []>} : vector<8x128xbf16>, vector<128x512xbf16>, vector<8x512xf32> -> vector<8x512xf32>
    %42 = arith.addf %39, %41 : vector<8x512xf32>
    %43 = vector.extract_strided_slice %42 {offsets = [0, 0], sizes = [8, 128], strides = [1, 1]} : vector<8x512xf32> to vector<8x128xf32>
    %44 = arith.negf %43 : vector<8x128xf32>
    %45 = math.exp %44 : vector<8x128xf32>
    %cst_14 = arith.constant 1.000000e+00 : f32
    %46 = vector.broadcast %cst_14 : f32 to vector<8x128xf32>
    %47 = arith.addf %46, %45 : vector<8x128xf32>
    %48 = arith.divf %46, %47 : vector<8x128xf32>
    %49 = vector.extract_strided_slice %42 {offsets = [0, 128], sizes = [8, 128], strides = [1, 1]} : vector<8x512xf32> to vector<8x128xf32>
    %50 = arith.negf %49 : vector<8x128xf32>
    %51 = math.exp %50 : vector<8x128xf32>
    %cst_15 = arith.constant 1.000000e+00 : f32
    %52 = vector.broadcast %cst_15 : f32 to vector<8x128xf32>
    %53 = arith.addf %52, %51 : vector<8x128xf32>
    %54 = arith.divf %52, %53 : vector<8x128xf32>
    %55 = vector.extract_strided_slice %42 {offsets = [0, 256], sizes = [8, 128], strides = [1, 1]} : vector<8x512xf32> to vector<8x128xf32>
    %56 = math.tanh %55 : vector<8x128xf32>
    %57 = vector.extract_strided_slice %42 {offsets = [0, 384], sizes = [8, 128], strides = [1, 1]} : vector<8x512xf32> to vector<8x128xf32>
    %58 = arith.negf %57 : vector<8x128xf32>
    %59 = math.exp %58 : vector<8x128xf32>
    %cst_16 = arith.constant 1.000000e+00 : f32
    %60 = vector.broadcast %cst_16 : f32 to vector<8x128xf32>
    %61 = arith.addf %60, %59 : vector<8x128xf32>
    %62 = arith.divf %60, %61 : vector<8x128xf32>
    %63 = arith.mulf %54, %35 : vector<8x128xf32>
    %64 = arith.mulf %48, %56 : vector<8x128xf32>
    %65 = arith.addf %63, %64 : vector<8x128xf32>
    %66 = math.tanh %65 : vector<8x128xf32>
    %67 = arith.mulf %62, %66 : vector<8x128xf32>
    %68 = arith.truncf %67 : vector<8x128xf32> to vector<8x128xbf16>
    %69 = vector.extract_strided_slice %6 {offsets = [16, 0], sizes = [8, 512], strides = [1, 1]} : vector<64x512xf32> to vector<8x512xf32>
    %70 = arith.truncf %67 : vector<8x128xf32> to vector<8x128xbf16>
    %cst_17 = arith.constant dense<0.000000e+00> : vector<8x512xf32>
    %71 = tpu.matmul %70, %1, %cst_17 {dimension_numbers = #tpu.dot_dimension_numbers<[1], [0], [0], [1], [0, 0, 1, 1], [], []>} : vector<8x128xbf16>, vector<128x512xbf16>, vector<8x512xf32> -> vector<8x512xf32>
    %72 = arith.addf %69, %71 : vector<8x512xf32>
    %73 = vector.extract_strided_slice %72 {offsets = [0, 0], sizes = [8, 128], strides = [1, 1]} : vector<8x512xf32> to vector<8x128xf32>
    %74 = arith.negf %73 : vector<8x128xf32>
    %75 = math.exp %74 : vector<8x128xf32>
    %cst_18 = arith.constant 1.000000e+00 : f32
    %76 = vector.broadcast %cst_18 : f32 to vector<8x128xf32>
    %77 = arith.addf %76, %75 : vector<8x128xf32>
    %78 = arith.divf %76, %77 : vector<8x128xf32>
    %79 = vector.extract_strided_slice %72 {offsets = [0, 128], sizes = [8, 128], strides = [1, 1]} : vector<8x512xf32> to vector<8x128xf32>
    %80 = arith.negf %79 : vector<8x128xf32>
    %81 = math.exp %80 : vector<8x128xf32>
    %cst_19 = arith.constant 1.000000e+00 : f32
    %82 = vector.broadcast %cst_19 : f32 to vector<8x128xf32>
    %83 = arith.addf %82, %81 : vector<8x128xf32>
    %84 = arith.divf %82, %83 : vector<8x128xf32>
    %85 = vector.extract_strided_slice %72 {offsets = [0, 256], sizes = [8, 128], strides = [1, 1]} : vector<8x512xf32> to vector<8x128xf32>
    %86 = math.tanh %85 : vector<8x128xf32>
    %87 = vector.extract_strided_slice %72 {offsets = [0, 384], sizes = [8, 128], strides = [1, 1]} : vector<8x512xf32> to vector<8x128xf32>
    %88 = arith.negf %87 : vector<8x128xf32>
    %89 = math.exp %88 : vector<8x128xf32>
    %cst_20 = arith.constant 1.000000e+00 : f32
    %90 = vector.broadcast %cst_20 : f32 to vector<8x128xf32>
    %91 = arith.addf %90, %89 : vector<8x128xf32>
    %92 = arith.divf %90, %91 : vector<8x128xf32>
    %93 = arith.mulf %84, %65 : vector<8x128xf32>
    %94 = arith.mulf %78, %86 : vector<8x128xf32>
    %95 = arith.addf %93, %94 : vector<8x128xf32>
    %96 = math.tanh %95 : vector<8x128xf32>
    %97 = arith.mulf %92, %96 : vector<8x128xf32>
    %98 = arith.truncf %97 : vector<8x128xf32> to vector<8x128xbf16>
    %99 = vector.extract_strided_slice %6 {offsets = [24, 0], sizes = [8, 512], strides = [1, 1]} : vector<64x512xf32> to vector<8x512xf32>
    %100 = arith.truncf %97 : vector<8x128xf32> to vector<8x128xbf16>
    %cst_21 = arith.constant dense<0.000000e+00> : vector<8x512xf32>
    %101 = tpu.matmul %100, %1, %cst_21 {dimension_numbers = #tpu.dot_dimension_numbers<[1], [0], [0], [1], [0, 0, 1, 1], [], []>} : vector<8x128xbf16>, vector<128x512xbf16>, vector<8x512xf32> -> vector<8x512xf32>
    %102 = arith.addf %99, %101 : vector<8x512xf32>
    %103 = vector.extract_strided_slice %102 {offsets = [0, 0], sizes = [8, 128], strides = [1, 1]} : vector<8x512xf32> to vector<8x128xf32>
    %104 = arith.negf %103 : vector<8x128xf32>
    %105 = math.exp %104 : vector<8x128xf32>
    %cst_22 = arith.constant 1.000000e+00 : f32
    %106 = vector.broadcast %cst_22 : f32 to vector<8x128xf32>
    %107 = arith.addf %106, %105 : vector<8x128xf32>
    %108 = arith.divf %106, %107 : vector<8x128xf32>
    %109 = vector.extract_strided_slice %102 {offsets = [0, 128], sizes = [8, 128], strides = [1, 1]} : vector<8x512xf32> to vector<8x128xf32>
    %110 = arith.negf %109 : vector<8x128xf32>
    %111 = math.exp %110 : vector<8x128xf32>
    %cst_23 = arith.constant 1.000000e+00 : f32
    %112 = vector.broadcast %cst_23 : f32 to vector<8x128xf32>
    %113 = arith.addf %112, %111 : vector<8x128xf32>
    %114 = arith.divf %112, %113 : vector<8x128xf32>
    %115 = vector.extract_strided_slice %102 {offsets = [0, 256], sizes = [8, 128], strides = [1, 1]} : vector<8x512xf32> to vector<8x128xf32>
    %116 = math.tanh %115 : vector<8x128xf32>
    %117 = vector.extract_strided_slice %102 {offsets = [0, 384], sizes = [8, 128], strides = [1, 1]} : vector<8x512xf32> to vector<8x128xf32>
    %118 = arith.negf %117 : vector<8x128xf32>
    %119 = math.exp %118 : vector<8x128xf32>
    %cst_24 = arith.constant 1.000000e+00 : f32
    %120 = vector.broadcast %cst_24 : f32 to vector<8x128xf32>
    %121 = arith.addf %120, %119 : vector<8x128xf32>
    %122 = arith.divf %120, %121 : vector<8x128xf32>
    %123 = arith.mulf %114, %95 : vector<8x128xf32>
    %124 = arith.mulf %108, %116 : vector<8x128xf32>
    %125 = arith.addf %123, %124 : vector<8x128xf32>
    %126 = math.tanh %125 : vector<8x128xf32>
    %127 = arith.mulf %122, %126 : vector<8x128xf32>
    %128 = arith.truncf %127 : vector<8x128xf32> to vector<8x128xbf16>
    %129 = vector.extract_strided_slice %6 {offsets = [32, 0], sizes = [8, 512], strides = [1, 1]} : vector<64x512xf32> to vector<8x512xf32>
    %130 = arith.truncf %127 : vector<8x128xf32> to vector<8x128xbf16>
    %cst_25 = arith.constant dense<0.000000e+00> : vector<8x512xf32>
    %131 = tpu.matmul %130, %1, %cst_25 {dimension_numbers = #tpu.dot_dimension_numbers<[1], [0], [0], [1], [0, 0, 1, 1], [], []>} : vector<8x128xbf16>, vector<128x512xbf16>, vector<8x512xf32> -> vector<8x512xf32>
    %132 = arith.addf %129, %131 : vector<8x512xf32>
    %133 = vector.extract_strided_slice %132 {offsets = [0, 0], sizes = [8, 128], strides = [1, 1]} : vector<8x512xf32> to vector<8x128xf32>
    %134 = arith.negf %133 : vector<8x128xf32>
    %135 = math.exp %134 : vector<8x128xf32>
    %cst_26 = arith.constant 1.000000e+00 : f32
    %136 = vector.broadcast %cst_26 : f32 to vector<8x128xf32>
    %137 = arith.addf %136, %135 : vector<8x128xf32>
    %138 = arith.divf %136, %137 : vector<8x128xf32>
    %139 = vector.extract_strided_slice %132 {offsets = [0, 128], sizes = [8, 128], strides = [1, 1]} : vector<8x512xf32> to vector<8x128xf32>
    %140 = arith.negf %139 : vector<8x128xf32>
    %141 = math.exp %140 : vector<8x128xf32>
    %cst_27 = arith.constant 1.000000e+00 : f32
    %142 = vector.broadcast %cst_27 : f32 to vector<8x128xf32>
    %143 = arith.addf %142, %141 : vector<8x128xf32>
    %144 = arith.divf %142, %143 : vector<8x128xf32>
    %145 = vector.extract_strided_slice %132 {offsets = [0, 256], sizes = [8, 128], strides = [1, 1]} : vector<8x512xf32> to vector<8x128xf32>
    %146 = math.tanh %145 : vector<8x128xf32>
    %147 = vector.extract_strided_slice %132 {offsets = [0, 384], sizes = [8, 128], strides = [1, 1]} : vector<8x512xf32> to vector<8x128xf32>
    %148 = arith.negf %147 : vector<8x128xf32>
    %149 = math.exp %148 : vector<8x128xf32>
    %cst_28 = arith.constant 1.000000e+00 : f32
    %150 = vector.broadcast %cst_28 : f32 to vector<8x128xf32>
    %151 = arith.addf %150, %149 : vector<8x128xf32>
    %152 = arith.divf %150, %151 : vector<8x128xf32>
    %153 = arith.mulf %144, %125 : vector<8x128xf32>
    %154 = arith.mulf %138, %146 : vector<8x128xf32>
    %155 = arith.addf %153, %154 : vector<8x128xf32>
    %156 = math.tanh %155 : vector<8x128xf32>
    %157 = arith.mulf %152, %156 : vector<8x128xf32>
    %158 = arith.truncf %157 : vector<8x128xf32> to vector<8x128xbf16>
    %159 = vector.extract_strided_slice %6 {offsets = [40, 0], sizes = [8, 512], strides = [1, 1]} : vector<64x512xf32> to vector<8x512xf32>
    %160 = arith.truncf %157 : vector<8x128xf32> to vector<8x128xbf16>
    %cst_29 = arith.constant dense<0.000000e+00> : vector<8x512xf32>
    %161 = tpu.matmul %160, %1, %cst_29 {dimension_numbers = #tpu.dot_dimension_numbers<[1], [0], [0], [1], [0, 0, 1, 1], [], []>} : vector<8x128xbf16>, vector<128x512xbf16>, vector<8x512xf32> -> vector<8x512xf32>
    %162 = arith.addf %159, %161 : vector<8x512xf32>
    %163 = vector.extract_strided_slice %162 {offsets = [0, 0], sizes = [8, 128], strides = [1, 1]} : vector<8x512xf32> to vector<8x128xf32>
    %164 = arith.negf %163 : vector<8x128xf32>
    %165 = math.exp %164 : vector<8x128xf32>
    %cst_30 = arith.constant 1.000000e+00 : f32
    %166 = vector.broadcast %cst_30 : f32 to vector<8x128xf32>
    %167 = arith.addf %166, %165 : vector<8x128xf32>
    %168 = arith.divf %166, %167 : vector<8x128xf32>
    %169 = vector.extract_strided_slice %162 {offsets = [0, 128], sizes = [8, 128], strides = [1, 1]} : vector<8x512xf32> to vector<8x128xf32>
    %170 = arith.negf %169 : vector<8x128xf32>
    %171 = math.exp %170 : vector<8x128xf32>
    %cst_31 = arith.constant 1.000000e+00 : f32
    %172 = vector.broadcast %cst_31 : f32 to vector<8x128xf32>
    %173 = arith.addf %172, %171 : vector<8x128xf32>
    %174 = arith.divf %172, %173 : vector<8x128xf32>
    %175 = vector.extract_strided_slice %162 {offsets = [0, 256], sizes = [8, 128], strides = [1, 1]} : vector<8x512xf32> to vector<8x128xf32>
    %176 = math.tanh %175 : vector<8x128xf32>
    %177 = vector.extract_strided_slice %162 {offsets = [0, 384], sizes = [8, 128], strides = [1, 1]} : vector<8x512xf32> to vector<8x128xf32>
    %178 = arith.negf %177 : vector<8x128xf32>
    %179 = math.exp %178 : vector<8x128xf32>
    %cst_32 = arith.constant 1.000000e+00 : f32
    %180 = vector.broadcast %cst_32 : f32 to vector<8x128xf32>
    %181 = arith.addf %180, %179 : vector<8x128xf32>
    %182 = arith.divf %180, %181 : vector<8x128xf32>
    %183 = arith.mulf %174, %155 : vector<8x128xf32>
    %184 = arith.mulf %168, %176 : vector<8x128xf32>
    %185 = arith.addf %183, %184 : vector<8x128xf32>
    %186 = math.tanh %185 : vector<8x128xf32>
    %187 = arith.mulf %182, %186 : vector<8x128xf32>
    %188 = arith.truncf %187 : vector<8x128xf32> to vector<8x128xbf16>
    %189 = vector.extract_strided_slice %6 {offsets = [48, 0], sizes = [8, 512], strides = [1, 1]} : vector<64x512xf32> to vector<8x512xf32>
    %190 = arith.truncf %187 : vector<8x128xf32> to vector<8x128xbf16>
    %cst_33 = arith.constant dense<0.000000e+00> : vector<8x512xf32>
    %191 = tpu.matmul %190, %1, %cst_33 {dimension_numbers = #tpu.dot_dimension_numbers<[1], [0], [0], [1], [0, 0, 1, 1], [], []>} : vector<8x128xbf16>, vector<128x512xbf16>, vector<8x512xf32> -> vector<8x512xf32>
    %192 = arith.addf %189, %191 : vector<8x512xf32>
    %193 = vector.extract_strided_slice %192 {offsets = [0, 0], sizes = [8, 128], strides = [1, 1]} : vector<8x512xf32> to vector<8x128xf32>
    %194 = arith.negf %193 : vector<8x128xf32>
    %195 = math.exp %194 : vector<8x128xf32>
    %cst_34 = arith.constant 1.000000e+00 : f32
    %196 = vector.broadcast %cst_34 : f32 to vector<8x128xf32>
    %197 = arith.addf %196, %195 : vector<8x128xf32>
    %198 = arith.divf %196, %197 : vector<8x128xf32>
    %199 = vector.extract_strided_slice %192 {offsets = [0, 128], sizes = [8, 128], strides = [1, 1]} : vector<8x512xf32> to vector<8x128xf32>
    %200 = arith.negf %199 : vector<8x128xf32>
    %201 = math.exp %200 : vector<8x128xf32>
    %cst_35 = arith.constant 1.000000e+00 : f32
    %202 = vector.broadcast %cst_35 : f32 to vector<8x128xf32>
    %203 = arith.addf %202, %201 : vector<8x128xf32>
    %204 = arith.divf %202, %203 : vector<8x128xf32>
    %205 = vector.extract_strided_slice %192 {offsets = [0, 256], sizes = [8, 128], strides = [1, 1]} : vector<8x512xf32> to vector<8x128xf32>
    %206 = math.tanh %205 : vector<8x128xf32>
    %207 = vector.extract_strided_slice %192 {offsets = [0, 384], sizes = [8, 128], strides = [1, 1]} : vector<8x512xf32> to vector<8x128xf32>
    %208 = arith.negf %207 : vector<8x128xf32>
    %209 = math.exp %208 : vector<8x128xf32>
    %cst_36 = arith.constant 1.000000e+00 : f32
    %210 = vector.broadcast %cst_36 : f32 to vector<8x128xf32>
    %211 = arith.addf %210, %209 : vector<8x128xf32>
    %212 = arith.divf %210, %211 : vector<8x128xf32>
    %213 = arith.mulf %204, %185 : vector<8x128xf32>
    %214 = arith.mulf %198, %206 : vector<8x128xf32>
    %215 = arith.addf %213, %214 : vector<8x128xf32>
    %216 = math.tanh %215 : vector<8x128xf32>
    %217 = arith.mulf %212, %216 : vector<8x128xf32>
    %218 = arith.truncf %217 : vector<8x128xf32> to vector<8x128xbf16>
    %219 = vector.extract_strided_slice %6 {offsets = [56, 0], sizes = [8, 512], strides = [1, 1]} : vector<64x512xf32> to vector<8x512xf32>
    %220 = arith.truncf %217 : vector<8x128xf32> to vector<8x128xbf16>
    %cst_37 = arith.constant dense<0.000000e+00> : vector<8x512xf32>
    %221 = tpu.matmul %220, %1, %cst_37 {dimension_numbers = #tpu.dot_dimension_numbers<[1], [0], [0], [1], [0, 0, 1, 1], [], []>} : vector<8x128xbf16>, vector<128x512xbf16>, vector<8x512xf32> -> vector<8x512xf32>
    %222 = arith.addf %219, %221 : vector<8x512xf32>
    %223 = vector.extract_strided_slice %222 {offsets = [0, 0], sizes = [8, 128], strides = [1, 1]} : vector<8x512xf32> to vector<8x128xf32>
    %224 = arith.negf %223 : vector<8x128xf32>
    %225 = math.exp %224 : vector<8x128xf32>
    %cst_38 = arith.constant 1.000000e+00 : f32
    %226 = vector.broadcast %cst_38 : f32 to vector<8x128xf32>
    %227 = arith.addf %226, %225 : vector<8x128xf32>
    %228 = arith.divf %226, %227 : vector<8x128xf32>
    %229 = vector.extract_strided_slice %222 {offsets = [0, 128], sizes = [8, 128], strides = [1, 1]} : vector<8x512xf32> to vector<8x128xf32>
    %230 = arith.negf %229 : vector<8x128xf32>
    %231 = math.exp %230 : vector<8x128xf32>
    %cst_39 = arith.constant 1.000000e+00 : f32
    %232 = vector.broadcast %cst_39 : f32 to vector<8x128xf32>
    %233 = arith.addf %232, %231 : vector<8x128xf32>
    %234 = arith.divf %232, %233 : vector<8x128xf32>
    %235 = vector.extract_strided_slice %222 {offsets = [0, 256], sizes = [8, 128], strides = [1, 1]} : vector<8x512xf32> to vector<8x128xf32>
    %236 = math.tanh %235 : vector<8x128xf32>
    %237 = vector.extract_strided_slice %222 {offsets = [0, 384], sizes = [8, 128], strides = [1, 1]} : vector<8x512xf32> to vector<8x128xf32>
    %238 = arith.negf %237 : vector<8x128xf32>
    %239 = math.exp %238 : vector<8x128xf32>
    %cst_40 = arith.constant 1.000000e+00 : f32
    %240 = vector.broadcast %cst_40 : f32 to vector<8x128xf32>
    %241 = arith.addf %240, %239 : vector<8x128xf32>
    %242 = arith.divf %240, %241 : vector<8x128xf32>
    %243 = arith.mulf %234, %215 : vector<8x128xf32>
    %244 = arith.mulf %228, %236 : vector<8x128xf32>
    %245 = arith.addf %243, %244 : vector<8x128xf32>
    %246 = math.tanh %245 : vector<8x128xf32>
    %247 = arith.mulf %242, %246 : vector<8x128xf32>
    %248 = arith.truncf %247 : vector<8x128xf32> to vector<8x128xbf16>
    %c0_41 = arith.constant 0 : index
    %c0_42 = arith.constant 0 : index
    %249 = vector.load %arg4[%c0_41, %c0_42] : memref<128x512xbf16, #tpu.memory_space<vmem>>, vector<128x512xbf16>
    %c0_43 = arith.constant 0 : index
    %c0_44 = arith.constant 0 : index
    %250 = vector.load %arg5[%c0_43, %c0_44] : memref<128x512xbf16, #tpu.memory_space<vmem>>, vector<128x512xbf16>
    %c0_45 = arith.constant 0 : index
    %c0_46 = arith.constant 0 : index
    %251 = vector.load %arg6[%c0_45, %c0_46] : memref<1x512xf32, #tpu.memory_space<vmem>>, vector<1x512xf32>
    %252 = vector.shape_cast %251 : vector<1x512xf32> to vector<1x512xf32>
    %253 = vector.broadcast %252 : vector<1x512xf32> to vector<8x512xf32>
    %cst_47 = arith.constant 0.000000e+00 : f32
    %254 = vector.broadcast %cst_47 : f32 to vector<8x128xf32>
    %cst_48 = arith.constant 0.000000e+00 : f32
    %255 = vector.broadcast %cst_48 : f32 to vector<8x128xf32>
    %cst_49 = arith.constant dense<0.000000e+00> : vector<8x512xf32>
    %256 = tpu.matmul %38, %249, %cst_49 {dimension_numbers = #tpu.dot_dimension_numbers<[1], [0], [0], [1], [0, 0, 1, 1], [], []>} : vector<8x128xbf16>, vector<128x512xbf16>, vector<8x512xf32> -> vector<8x512xf32>
    %257 = arith.addf %256, %253 : vector<8x512xf32>
    %258 = arith.truncf %254 : vector<8x128xf32> to vector<8x128xbf16>
    %cst_50 = arith.constant dense<0.000000e+00> : vector<8x512xf32>
    %259 = tpu.matmul %258, %250, %cst_50 {dimension_numbers = #tpu.dot_dimension_numbers<[1], [0], [0], [1], [0, 0, 1, 1], [], []>} : vector<8x128xbf16>, vector<128x512xbf16>, vector<8x512xf32> -> vector<8x512xf32>
    %260 = arith.addf %257, %259 : vector<8x512xf32>
    %261 = vector.extract_strided_slice %260 {offsets = [0, 0], sizes = [8, 128], strides = [1, 1]} : vector<8x512xf32> to vector<8x128xf32>
    %262 = arith.negf %261 : vector<8x128xf32>
    %263 = math.exp %262 : vector<8x128xf32>
    %cst_51 = arith.constant 1.000000e+00 : f32
    %264 = vector.broadcast %cst_51 : f32 to vector<8x128xf32>
    %265 = arith.addf %264, %263 : vector<8x128xf32>
    %266 = arith.divf %264, %265 : vector<8x128xf32>
    %267 = vector.extract_strided_slice %260 {offsets = [0, 128], sizes = [8, 128], strides = [1, 1]} : vector<8x512xf32> to vector<8x128xf32>
    %268 = arith.negf %267 : vector<8x128xf32>
    %269 = math.exp %268 : vector<8x128xf32>
    %cst_52 = arith.constant 1.000000e+00 : f32
    %270 = vector.broadcast %cst_52 : f32 to vector<8x128xf32>
    %271 = arith.addf %270, %269 : vector<8x128xf32>
    %272 = arith.divf %270, %271 : vector<8x128xf32>
    %273 = vector.extract_strided_slice %260 {offsets = [0, 256], sizes = [8, 128], strides = [1, 1]} : vector<8x512xf32> to vector<8x128xf32>
    %274 = math.tanh %273 : vector<8x128xf32>
    %275 = vector.extract_strided_slice %260 {offsets = [0, 384], sizes = [8, 128], strides = [1, 1]} : vector<8x512xf32> to vector<8x128xf32>
    %276 = arith.negf %275 : vector<8x128xf32>
    %277 = math.exp %276 : vector<8x128xf32>
    %cst_53 = arith.constant 1.000000e+00 : f32
    %278 = vector.broadcast %cst_53 : f32 to vector<8x128xf32>
    %279 = arith.addf %278, %277 : vector<8x128xf32>
    %280 = arith.divf %278, %279 : vector<8x128xf32>
    %281 = arith.mulf %272, %255 : vector<8x128xf32>
    %282 = arith.mulf %266, %274 : vector<8x128xf32>
    %283 = arith.addf %281, %282 : vector<8x128xf32>
    %284 = math.tanh %283 : vector<8x128xf32>
    %285 = arith.mulf %280, %284 : vector<8x128xf32>
    %cst_54 = arith.constant dense<0.000000e+00> : vector<8x512xf32>
    %286 = tpu.matmul %68, %249, %cst_54 {dimension_numbers = #tpu.dot_dimension_numbers<[1], [0], [0], [1], [0, 0, 1, 1], [], []>} : vector<8x128xbf16>, vector<128x512xbf16>, vector<8x512xf32> -> vector<8x512xf32>
    %287 = arith.addf %286, %253 : vector<8x512xf32>
    %288 = arith.truncf %285 : vector<8x128xf32> to vector<8x128xbf16>
    %cst_55 = arith.constant dense<0.000000e+00> : vector<8x512xf32>
    %289 = tpu.matmul %288, %250, %cst_55 {dimension_numbers = #tpu.dot_dimension_numbers<[1], [0], [0], [1], [0, 0, 1, 1], [], []>} : vector<8x128xbf16>, vector<128x512xbf16>, vector<8x512xf32> -> vector<8x512xf32>
    %290 = arith.addf %287, %289 : vector<8x512xf32>
    %291 = vector.extract_strided_slice %290 {offsets = [0, 0], sizes = [8, 128], strides = [1, 1]} : vector<8x512xf32> to vector<8x128xf32>
    %292 = arith.negf %291 : vector<8x128xf32>
    %293 = math.exp %292 : vector<8x128xf32>
    %cst_56 = arith.constant 1.000000e+00 : f32
    %294 = vector.broadcast %cst_56 : f32 to vector<8x128xf32>
    %295 = arith.addf %294, %293 : vector<8x128xf32>
    %296 = arith.divf %294, %295 : vector<8x128xf32>
    %297 = vector.extract_strided_slice %290 {offsets = [0, 128], sizes = [8, 128], strides = [1, 1]} : vector<8x512xf32> to vector<8x128xf32>
    %298 = arith.negf %297 : vector<8x128xf32>
    %299 = math.exp %298 : vector<8x128xf32>
    %cst_57 = arith.constant 1.000000e+00 : f32
    %300 = vector.broadcast %cst_57 : f32 to vector<8x128xf32>
    %301 = arith.addf %300, %299 : vector<8x128xf32>
    %302 = arith.divf %300, %301 : vector<8x128xf32>
    %303 = vector.extract_strided_slice %290 {offsets = [0, 256], sizes = [8, 128], strides = [1, 1]} : vector<8x512xf32> to vector<8x128xf32>
    %304 = math.tanh %303 : vector<8x128xf32>
    %305 = vector.extract_strided_slice %290 {offsets = [0, 384], sizes = [8, 128], strides = [1, 1]} : vector<8x512xf32> to vector<8x128xf32>
    %306 = arith.negf %305 : vector<8x128xf32>
    %307 = math.exp %306 : vector<8x128xf32>
    %cst_58 = arith.constant 1.000000e+00 : f32
    %308 = vector.broadcast %cst_58 : f32 to vector<8x128xf32>
    %309 = arith.addf %308, %307 : vector<8x128xf32>
    %310 = arith.divf %308, %309 : vector<8x128xf32>
    %311 = arith.mulf %302, %283 : vector<8x128xf32>
    %312 = arith.mulf %296, %304 : vector<8x128xf32>
    %313 = arith.addf %311, %312 : vector<8x128xf32>
    %314 = math.tanh %313 : vector<8x128xf32>
    %315 = arith.mulf %310, %314 : vector<8x128xf32>
    %cst_59 = arith.constant dense<0.000000e+00> : vector<8x512xf32>
    %316 = tpu.matmul %98, %249, %cst_59 {dimension_numbers = #tpu.dot_dimension_numbers<[1], [0], [0], [1], [0, 0, 1, 1], [], []>} : vector<8x128xbf16>, vector<128x512xbf16>, vector<8x512xf32> -> vector<8x512xf32>
    %317 = arith.addf %316, %253 : vector<8x512xf32>
    %318 = arith.truncf %315 : vector<8x128xf32> to vector<8x128xbf16>
    %cst_60 = arith.constant dense<0.000000e+00> : vector<8x512xf32>
    %319 = tpu.matmul %318, %250, %cst_60 {dimension_numbers = #tpu.dot_dimension_numbers<[1], [0], [0], [1], [0, 0, 1, 1], [], []>} : vector<8x128xbf16>, vector<128x512xbf16>, vector<8x512xf32> -> vector<8x512xf32>
    %320 = arith.addf %317, %319 : vector<8x512xf32>
    %321 = vector.extract_strided_slice %320 {offsets = [0, 0], sizes = [8, 128], strides = [1, 1]} : vector<8x512xf32> to vector<8x128xf32>
    %322 = arith.negf %321 : vector<8x128xf32>
    %323 = math.exp %322 : vector<8x128xf32>
    %cst_61 = arith.constant 1.000000e+00 : f32
    %324 = vector.broadcast %cst_61 : f32 to vector<8x128xf32>
    %325 = arith.addf %324, %323 : vector<8x128xf32>
    %326 = arith.divf %324, %325 : vector<8x128xf32>
    %327 = vector.extract_strided_slice %320 {offsets = [0, 128], sizes = [8, 128], strides = [1, 1]} : vector<8x512xf32> to vector<8x128xf32>
    %328 = arith.negf %327 : vector<8x128xf32>
    %329 = math.exp %328 : vector<8x128xf32>
    %cst_62 = arith.constant 1.000000e+00 : f32
    %330 = vector.broadcast %cst_62 : f32 to vector<8x128xf32>
    %331 = arith.addf %330, %329 : vector<8x128xf32>
    %332 = arith.divf %330, %331 : vector<8x128xf32>
    %333 = vector.extract_strided_slice %320 {offsets = [0, 256], sizes = [8, 128], strides = [1, 1]} : vector<8x512xf32> to vector<8x128xf32>
    %334 = math.tanh %333 : vector<8x128xf32>
    %335 = vector.extract_strided_slice %320 {offsets = [0, 384], sizes = [8, 128], strides = [1, 1]} : vector<8x512xf32> to vector<8x128xf32>
    %336 = arith.negf %335 : vector<8x128xf32>
    %337 = math.exp %336 : vector<8x128xf32>
    %cst_63 = arith.constant 1.000000e+00 : f32
    %338 = vector.broadcast %cst_63 : f32 to vector<8x128xf32>
    %339 = arith.addf %338, %337 : vector<8x128xf32>
    %340 = arith.divf %338, %339 : vector<8x128xf32>
    %341 = arith.mulf %332, %313 : vector<8x128xf32>
    %342 = arith.mulf %326, %334 : vector<8x128xf32>
    %343 = arith.addf %341, %342 : vector<8x128xf32>
    %344 = math.tanh %343 : vector<8x128xf32>
    %345 = arith.mulf %340, %344 : vector<8x128xf32>
    %cst_64 = arith.constant dense<0.000000e+00> : vector<8x512xf32>
    %346 = tpu.matmul %128, %249, %cst_64 {dimension_numbers = #tpu.dot_dimension_numbers<[1], [0], [0], [1], [0, 0, 1, 1], [], []>} : vector<8x128xbf16>, vector<128x512xbf16>, vector<8x512xf32> -> vector<8x512xf32>
    %347 = arith.addf %346, %253 : vector<8x512xf32>
    %348 = arith.truncf %345 : vector<8x128xf32> to vector<8x128xbf16>
    %cst_65 = arith.constant dense<0.000000e+00> : vector<8x512xf32>
    %349 = tpu.matmul %348, %250, %cst_65 {dimension_numbers = #tpu.dot_dimension_numbers<[1], [0], [0], [1], [0, 0, 1, 1], [], []>} : vector<8x128xbf16>, vector<128x512xbf16>, vector<8x512xf32> -> vector<8x512xf32>
    %350 = arith.addf %347, %349 : vector<8x512xf32>
    %351 = vector.extract_strided_slice %350 {offsets = [0, 0], sizes = [8, 128], strides = [1, 1]} : vector<8x512xf32> to vector<8x128xf32>
    %352 = arith.negf %351 : vector<8x128xf32>
    %353 = math.exp %352 : vector<8x128xf32>
    %cst_66 = arith.constant 1.000000e+00 : f32
    %354 = vector.broadcast %cst_66 : f32 to vector<8x128xf32>
    %355 = arith.addf %354, %353 : vector<8x128xf32>
    %356 = arith.divf %354, %355 : vector<8x128xf32>
    %357 = vector.extract_strided_slice %350 {offsets = [0, 128], sizes = [8, 128], strides = [1, 1]} : vector<8x512xf32> to vector<8x128xf32>
    %358 = arith.negf %357 : vector<8x128xf32>
    %359 = math.exp %358 : vector<8x128xf32>
    %cst_67 = arith.constant 1.000000e+00 : f32
    %360 = vector.broadcast %cst_67 : f32 to vector<8x128xf32>
    %361 = arith.addf %360, %359 : vector<8x128xf32>
    %362 = arith.divf %360, %361 : vector<8x128xf32>
    %363 = vector.extract_strided_slice %350 {offsets = [0, 256], sizes = [8, 128], strides = [1, 1]} : vector<8x512xf32> to vector<8x128xf32>
    %364 = math.tanh %363 : vector<8x128xf32>
    %365 = vector.extract_strided_slice %350 {offsets = [0, 384], sizes = [8, 128], strides = [1, 1]} : vector<8x512xf32> to vector<8x128xf32>
    %366 = arith.negf %365 : vector<8x128xf32>
    %367 = math.exp %366 : vector<8x128xf32>
    %cst_68 = arith.constant 1.000000e+00 : f32
    %368 = vector.broadcast %cst_68 : f32 to vector<8x128xf32>
    %369 = arith.addf %368, %367 : vector<8x128xf32>
    %370 = arith.divf %368, %369 : vector<8x128xf32>
    %371 = arith.mulf %362, %343 : vector<8x128xf32>
    %372 = arith.mulf %356, %364 : vector<8x128xf32>
    %373 = arith.addf %371, %372 : vector<8x128xf32>
    %374 = math.tanh %373 : vector<8x128xf32>
    %375 = arith.mulf %370, %374 : vector<8x128xf32>
    %cst_69 = arith.constant dense<0.000000e+00> : vector<8x512xf32>
    %376 = tpu.matmul %158, %249, %cst_69 {dimension_numbers = #tpu.dot_dimension_numbers<[1], [0], [0], [1], [0, 0, 1, 1], [], []>} : vector<8x128xbf16>, vector<128x512xbf16>, vector<8x512xf32> -> vector<8x512xf32>
    %377 = arith.addf %376, %253 : vector<8x512xf32>
    %378 = arith.truncf %375 : vector<8x128xf32> to vector<8x128xbf16>
    %cst_70 = arith.constant dense<0.000000e+00> : vector<8x512xf32>
    %379 = tpu.matmul %378, %250, %cst_70 {dimension_numbers = #tpu.dot_dimension_numbers<[1], [0], [0], [1], [0, 0, 1, 1], [], []>} : vector<8x128xbf16>, vector<128x512xbf16>, vector<8x512xf32> -> vector<8x512xf32>
    %380 = arith.addf %377, %379 : vector<8x512xf32>
    %381 = vector.extract_strided_slice %380 {offsets = [0, 0], sizes = [8, 128], strides = [1, 1]} : vector<8x512xf32> to vector<8x128xf32>
    %382 = arith.negf %381 : vector<8x128xf32>
    %383 = math.exp %382 : vector<8x128xf32>
    %cst_71 = arith.constant 1.000000e+00 : f32
    %384 = vector.broadcast %cst_71 : f32 to vector<8x128xf32>
    %385 = arith.addf %384, %383 : vector<8x128xf32>
    %386 = arith.divf %384, %385 : vector<8x128xf32>
    %387 = vector.extract_strided_slice %380 {offsets = [0, 128], sizes = [8, 128], strides = [1, 1]} : vector<8x512xf32> to vector<8x128xf32>
    %388 = arith.negf %387 : vector<8x128xf32>
    %389 = math.exp %388 : vector<8x128xf32>
    %cst_72 = arith.constant 1.000000e+00 : f32
    %390 = vector.broadcast %cst_72 : f32 to vector<8x128xf32>
    %391 = arith.addf %390, %389 : vector<8x128xf32>
    %392 = arith.divf %390, %391 : vector<8x128xf32>
    %393 = vector.extract_strided_slice %380 {offsets = [0, 256], sizes = [8, 128], strides = [1, 1]} : vector<8x512xf32> to vector<8x128xf32>
    %394 = math.tanh %393 : vector<8x128xf32>
    %395 = vector.extract_strided_slice %380 {offsets = [0, 384], sizes = [8, 128], strides = [1, 1]} : vector<8x512xf32> to vector<8x128xf32>
    %396 = arith.negf %395 : vector<8x128xf32>
    %397 = math.exp %396 : vector<8x128xf32>
    %cst_73 = arith.constant 1.000000e+00 : f32
    %398 = vector.broadcast %cst_73 : f32 to vector<8x128xf32>
    %399 = arith.addf %398, %397 : vector<8x128xf32>
    %400 = arith.divf %398, %399 : vector<8x128xf32>
    %401 = arith.mulf %392, %373 : vector<8x128xf32>
    %402 = arith.mulf %386, %394 : vector<8x128xf32>
    %403 = arith.addf %401, %402 : vector<8x128xf32>
    %404 = math.tanh %403 : vector<8x128xf32>
    %405 = arith.mulf %400, %404 : vector<8x128xf32>
    %cst_74 = arith.constant dense<0.000000e+00> : vector<8x512xf32>
    %406 = tpu.matmul %188, %249, %cst_74 {dimension_numbers = #tpu.dot_dimension_numbers<[1], [0], [0], [1], [0, 0, 1, 1], [], []>} : vector<8x128xbf16>, vector<128x512xbf16>, vector<8x512xf32> -> vector<8x512xf32>
    %407 = arith.addf %406, %253 : vector<8x512xf32>
    %408 = arith.truncf %405 : vector<8x128xf32> to vector<8x128xbf16>
    %cst_75 = arith.constant dense<0.000000e+00> : vector<8x512xf32>
    %409 = tpu.matmul %408, %250, %cst_75 {dimension_numbers = #tpu.dot_dimension_numbers<[1], [0], [0], [1], [0, 0, 1, 1], [], []>} : vector<8x128xbf16>, vector<128x512xbf16>, vector<8x512xf32> -> vector<8x512xf32>
    %410 = arith.addf %407, %409 : vector<8x512xf32>
    %411 = vector.extract_strided_slice %410 {offsets = [0, 0], sizes = [8, 128], strides = [1, 1]} : vector<8x512xf32> to vector<8x128xf32>
    %412 = arith.negf %411 : vector<8x128xf32>
    %413 = math.exp %412 : vector<8x128xf32>
    %cst_76 = arith.constant 1.000000e+00 : f32
    %414 = vector.broadcast %cst_76 : f32 to vector<8x128xf32>
    %415 = arith.addf %414, %413 : vector<8x128xf32>
    %416 = arith.divf %414, %415 : vector<8x128xf32>
    %417 = vector.extract_strided_slice %410 {offsets = [0, 128], sizes = [8, 128], strides = [1, 1]} : vector<8x512xf32> to vector<8x128xf32>
    %418 = arith.negf %417 : vector<8x128xf32>
    %419 = math.exp %418 : vector<8x128xf32>
    %cst_77 = arith.constant 1.000000e+00 : f32
    %420 = vector.broadcast %cst_77 : f32 to vector<8x128xf32>
    %421 = arith.addf %420, %419 : vector<8x128xf32>
    %422 = arith.divf %420, %421 : vector<8x128xf32>
    %423 = vector.extract_strided_slice %410 {offsets = [0, 256], sizes = [8, 128], strides = [1, 1]} : vector<8x512xf32> to vector<8x128xf32>
    %424 = math.tanh %423 : vector<8x128xf32>
    %425 = vector.extract_strided_slice %410 {offsets = [0, 384], sizes = [8, 128], strides = [1, 1]} : vector<8x512xf32> to vector<8x128xf32>
    %426 = arith.negf %425 : vector<8x128xf32>
    %427 = math.exp %426 : vector<8x128xf32>
    %cst_78 = arith.constant 1.000000e+00 : f32
    %428 = vector.broadcast %cst_78 : f32 to vector<8x128xf32>
    %429 = arith.addf %428, %427 : vector<8x128xf32>
    %430 = arith.divf %428, %429 : vector<8x128xf32>
    %431 = arith.mulf %422, %403 : vector<8x128xf32>
    %432 = arith.mulf %416, %424 : vector<8x128xf32>
    %433 = arith.addf %431, %432 : vector<8x128xf32>
    %434 = math.tanh %433 : vector<8x128xf32>
    %435 = arith.mulf %430, %434 : vector<8x128xf32>
    %436 = arith.truncf %435 : vector<8x128xf32> to vector<8x128xbf16>
    %cst_79 = arith.constant dense<0.000000e+00> : vector<8x512xf32>
    %437 = tpu.matmul %218, %249, %cst_79 {dimension_numbers = #tpu.dot_dimension_numbers<[1], [0], [0], [1], [0, 0, 1, 1], [], []>} : vector<8x128xbf16>, vector<128x512xbf16>, vector<8x512xf32> -> vector<8x512xf32>
    %438 = arith.addf %437, %253 : vector<8x512xf32>
    %439 = arith.truncf %435 : vector<8x128xf32> to vector<8x128xbf16>
    %cst_80 = arith.constant dense<0.000000e+00> : vector<8x512xf32>
    %440 = tpu.matmul %439, %250, %cst_80 {dimension_numbers = #tpu.dot_dimension_numbers<[1], [0], [0], [1], [0, 0, 1, 1], [], []>} : vector<8x128xbf16>, vector<128x512xbf16>, vector<8x512xf32> -> vector<8x512xf32>
    %441 = arith.addf %438, %440 : vector<8x512xf32>
    %442 = vector.extract_strided_slice %441 {offsets = [0, 0], sizes = [8, 128], strides = [1, 1]} : vector<8x512xf32> to vector<8x128xf32>
    %443 = arith.negf %442 : vector<8x128xf32>
    %444 = math.exp %443 : vector<8x128xf32>
    %cst_81 = arith.constant 1.000000e+00 : f32
    %445 = vector.broadcast %cst_81 : f32 to vector<8x128xf32>
    %446 = arith.addf %445, %444 : vector<8x128xf32>
    %447 = arith.divf %445, %446 : vector<8x128xf32>
    %448 = vector.extract_strided_slice %441 {offsets = [0, 128], sizes = [8, 128], strides = [1, 1]} : vector<8x512xf32> to vector<8x128xf32>
    %449 = arith.negf %448 : vector<8x128xf32>
    %450 = math.exp %449 : vector<8x128xf32>
    %cst_82 = arith.constant 1.000000e+00 : f32
    %451 = vector.broadcast %cst_82 : f32 to vector<8x128xf32>
    %452 = arith.addf %451, %450 : vector<8x128xf32>
    %453 = arith.divf %451, %452 : vector<8x128xf32>
    %454 = vector.extract_strided_slice %441 {offsets = [0, 256], sizes = [8, 128], strides = [1, 1]} : vector<8x512xf32> to vector<8x128xf32>
    %455 = math.tanh %454 : vector<8x128xf32>
    %456 = vector.extract_strided_slice %441 {offsets = [0, 384], sizes = [8, 128], strides = [1, 1]} : vector<8x512xf32> to vector<8x128xf32>
    %457 = arith.negf %456 : vector<8x128xf32>
    %458 = math.exp %457 : vector<8x128xf32>
    %cst_83 = arith.constant 1.000000e+00 : f32
    %459 = vector.broadcast %cst_83 : f32 to vector<8x128xf32>
    %460 = arith.addf %459, %458 : vector<8x128xf32>
    %461 = arith.divf %459, %460 : vector<8x128xf32>
    %462 = arith.mulf %453, %433 : vector<8x128xf32>
    %463 = arith.mulf %447, %455 : vector<8x128xf32>
    %464 = arith.addf %462, %463 : vector<8x128xf32>
    %465 = math.tanh %464 : vector<8x128xf32>
    %466 = arith.mulf %461, %465 : vector<8x128xf32>
    %cst_84 = arith.constant dense<0.000000e+00> : vector<8x512xf32>
    %467 = tpu.matmul %248, %249, %cst_84 {dimension_numbers = #tpu.dot_dimension_numbers<[1], [0], [0], [1], [0, 0, 1, 1], [], []>} : vector<8x128xbf16>, vector<128x512xbf16>, vector<8x512xf32> -> vector<8x512xf32>
    %468 = arith.addf %467, %253 : vector<8x512xf32>
    %469 = arith.truncf %466 : vector<8x128xf32> to vector<8x128xbf16>
    %cst_85 = arith.constant dense<0.000000e+00> : vector<8x512xf32>
    %470 = tpu.matmul %469, %250, %cst_85 {dimension_numbers = #tpu.dot_dimension_numbers<[1], [0], [0], [1], [0, 0, 1, 1], [], []>} : vector<8x128xbf16>, vector<128x512xbf16>, vector<8x512xf32> -> vector<8x512xf32>
    %471 = arith.addf %468, %470 : vector<8x512xf32>
    %472 = vector.extract_strided_slice %471 {offsets = [0, 0], sizes = [8, 128], strides = [1, 1]} : vector<8x512xf32> to vector<8x128xf32>
    %473 = arith.negf %472 : vector<8x128xf32>
    %474 = math.exp %473 : vector<8x128xf32>
    %cst_86 = arith.constant 1.000000e+00 : f32
    %475 = vector.broadcast %cst_86 : f32 to vector<8x128xf32>
    %476 = arith.addf %475, %474 : vector<8x128xf32>
    %477 = arith.divf %475, %476 : vector<8x128xf32>
    %478 = vector.extract_strided_slice %471 {offsets = [0, 128], sizes = [8, 128], strides = [1, 1]} : vector<8x512xf32> to vector<8x128xf32>
    %479 = arith.negf %478 : vector<8x128xf32>
    %480 = math.exp %479 : vector<8x128xf32>
    %cst_87 = arith.constant 1.000000e+00 : f32
    %481 = vector.broadcast %cst_87 : f32 to vector<8x128xf32>
    %482 = arith.addf %481, %480 : vector<8x128xf32>
    %483 = arith.divf %481, %482 : vector<8x128xf32>
    %484 = vector.extract_strided_slice %471 {offsets = [0, 256], sizes = [8, 128], strides = [1, 1]} : vector<8x512xf32> to vector<8x128xf32>
    %485 = math.tanh %484 : vector<8x128xf32>
    %486 = vector.extract_strided_slice %471 {offsets = [0, 384], sizes = [8, 128], strides = [1, 1]} : vector<8x512xf32> to vector<8x128xf32>
    %487 = arith.negf %486 : vector<8x128xf32>
    %488 = math.exp %487 : vector<8x128xf32>
    %cst_88 = arith.constant 1.000000e+00 : f32
    %489 = vector.broadcast %cst_88 : f32 to vector<8x128xf32>
    %490 = arith.addf %489, %488 : vector<8x128xf32>
    %491 = arith.divf %489, %490 : vector<8x128xf32>
    %492 = arith.mulf %483, %464 : vector<8x128xf32>
    %493 = arith.mulf %477, %485 : vector<8x128xf32>
    %494 = arith.addf %492, %493 : vector<8x128xf32>
    %495 = math.tanh %494 : vector<8x128xf32>
    %496 = arith.mulf %491, %495 : vector<8x128xf32>
    %497 = arith.truncf %496 : vector<8x128xf32> to vector<8x128xbf16>
    %c0_89 = arith.constant 0 : index
    %c0_90 = arith.constant 0 : index
    %498 = vector.load %arg7[%c0_89, %c0_90] : memref<128x128xbf16, #tpu.memory_space<vmem>>, vector<128x128xbf16>
    %cst_91 = arith.constant dense<0.000000e+00> : vector<8x128xf32>
    %499 = tpu.matmul %497, %498, %cst_91 {dimension_numbers = #tpu.dot_dimension_numbers<[1], [0], [0], [1], [0, 0, 1, 1], [], []>} : vector<8x128xbf16>, vector<128x128xbf16>, vector<8x128xf32> -> vector<8x128xf32>
    %c0_92 = arith.constant 0 : index
    %c0_93 = arith.constant 0 : index
    %500 = vector.load %arg8[%c0_92, %c0_93] : memref<128x128xbf16, #tpu.memory_space<vmem>>, vector<128x128xbf16>
    %cst_94 = arith.constant dense<0.000000e+00> : vector<8x128xf32>
    %501 = tpu.matmul %436, %500, %cst_94 {dimension_numbers = #tpu.dot_dimension_numbers<[1], [0], [0], [1], [0, 0, 1, 1], [], []>} : vector<8x128xbf16>, vector<128x128xbf16>, vector<8x128xf32> -> vector<8x128xf32>
    %502 = arith.addf %499, %501 : vector<8x128xf32>
    %c0_95 = arith.constant 0 : index
    %c0_96 = arith.constant 0 : index
    %503 = vector.load %arg9[%c0_95, %c0_96] : memref<1x128xf32, #tpu.memory_space<vmem>>, vector<1x128xf32>
    %504 = vector.broadcast %503 : vector<1x128xf32> to vector<8x128xf32>
    %505 = arith.addf %502, %504 : vector<8x128xf32>
    %cst_97 = arith.constant 0.000000e+00 : f32
    %506 = vector.broadcast %cst_97 : f32 to vector<8x128xf32>
    %507 = arith.cmpf ogt, %505, %506 : vector<8x128xf32>
    %cst_98 = arith.constant 0.00999999977 : f32
    %508 = vector.broadcast %cst_98 : f32 to vector<8x128xf32>
    %509 = arith.mulf %508, %505 : vector<8x128xf32>
    %510 = arith.select %507, %505, %509 : vector<8x128xi1>, vector<8x128xf32>
    %c0_99 = arith.constant 0 : index
    %c0_100 = arith.constant 0 : index
    %511 = vector.load %arg10[%c0_99, %c0_100] : memref<1x128xf32, #tpu.memory_space<vmem>>, vector<1x128xf32>
    %512 = vector.broadcast %511 : vector<1x128xf32> to vector<8x128xf32>
    %513 = arith.mulf %510, %512 : vector<8x128xf32>
    %cst_101 = arith.constant dense<0.000000e+00> : vector<8xf32>
    %514 = vector.multi_reduction <add>, %513, %cst_101 [1] : vector<8x128xf32> to vector<8xf32>
    %515 = vector.shape_cast %514 : vector<8xf32> to vector<8x1xf32>
    %c0_102 = arith.constant 0 : index
    %c0_103 = arith.constant 0 : index
    %516 = vector.load %arg11[%c0_102, %c0_103] : memref<1x1xf32, #tpu.memory_space<vmem>>, vector<1x1xf32>
    %517 = vector.broadcast %516 : vector<1x1xf32> to vector<8x1xf32>
    %518 = arith.addf %515, %517 : vector<8x1xf32>
    %519 = arith.negf %518 : vector<8x1xf32>
    %520 = math.exp %519 : vector<8x1xf32>
    %cst_104 = arith.constant 1.000000e+00 : f32
    %521 = vector.broadcast %cst_104 : f32 to vector<8x1xf32>
    %522 = arith.addf %521, %520 : vector<8x1xf32>
    %523 = arith.divf %521, %522 : vector<8x1xf32>
    %c0_105 = arith.constant 0 : index
    %c0_106 = arith.constant 0 : index
    %524 = vector.load %arg12[%c0_105, %c0_106] : memref<8x1xf32, #tpu.memory_space<vmem>>, vector<8x1xf32>
    tpu.vector_store %arg12[%c0_105, %c0_106], %523 {strides = array<i32>} : memref<8x1xf32, #tpu.memory_space<vmem>>, vector<8x1xf32>,
    return
  }
}

</mosaic_0001>

<llo_original>
// kernel: lstm_double_aa_forward.1
$region0: #{lstm_double_aa_forward.1}
  #allocation0 [shape = 'u32[]', space=smem, size = 0x4, offset = 0x4, fixed_abs, tag = 'smem constant byte address 0x4 - core index']
  #allocation1 [shape = 'u32[144,128]{1,0:T(1,128)}', space=vmem, size = 0x12000, scoped, tag = 'internal scratch']
  #allocation2 [shape = 'f32[1,1]{1,0:T(1,128)S(1)}', space=vmem, size = 0x200, scoped, tag = 'scoped memory for lstm_double_aa_forward.1']
  %s0 = inlined_call_operand.vmem [shape: bf16[64,32], index: 0, kind: input, shape index: {}]
  %s1 = inlined_call_operand.vmem [shape: bf16[32,512], index: 1, kind: input, shape index: {}]
  %s2 = inlined_call_operand.vmem [shape: bf16[128,512], index: 2, kind: input, shape index: {}]
  %s3 = inlined_call_operand.vmem [shape: f32[1,512], index: 3, kind: input, shape index: {}]
  %s4 = inlined_call_operand.vmem [shape: bf16[128,512], index: 4, kind: input, shape index: {}]
  %s5 = inlined_call_operand.vmem [shape: bf16[128,512], index: 5, kind: input, shape index: {}]
  %s6 = inlined_call_operand.vmem [shape: f32[1,512], index: 6, kind: input, shape index: {}]
  %s7 = inlined_call_operand.vmem [shape: bf16[128,128], index: 7, kind: input, shape index: {}]
  %s8 = inlined_call_operand.vmem [shape: bf16[128,128], index: 8, kind: input, shape index: {}]
  %s9 = inlined_call_operand.vmem [shape: f32[1,128], index: 9, kind: input, shape index: {}]
  %s10 = inlined_call_operand.vmem [shape: f32[1,128], index: 10, kind: input, shape index: {}]
  %s11 = inlined_call_operand.<no memory space> [shape: f32[1,1], index: 11, kind: input, shape index: {}]
  %s12 = inlined_call_operand.vmem [shape: f32[8,1], index: 12, kind: output, shape index: {}]
  %s13 = sld [smem:[#allocation0]]
  $region58: #{lstm_double_aa_forward.1} parent=0
    _
  %s15 = ssub.s32 1, %s13
  %s16 = scalar_select 0, %s15, %s13
  %v17 = vstv %s11
  %18 = vst [vmem:[#allocation2] sm:$0x1] %v17
  // Predicated region
  $region2: #{lstm_double_aa_forward.1} parent=0 // pred_check
    _
  $region3: #{lstm_double_aa_forward.1} parent=0 // pred_check_branch
    %20 = sbr.rel (0) target = $region5
  $region4: #{lstm_double_aa_forward.1} parent=0 // pred_region
    _
  $region5: #{lstm_double_aa_forward.1} parent=0 // pred_fallthru
    _
  // Predicated region
  $region6: #{lstm_double_aa_forward.1} parent=0 // pred_check
    _
  $region7: #{lstm_double_aa_forward.1} parent=0 // pred_check_branch
    %22 = sbr.rel (0) target = $region9
  $region8: #{lstm_double_aa_forward.1} parent=0 // pred_region
    _
  $region9: #{lstm_double_aa_forward.1} parent=0 // pred_fallthru
    _
  // Predicated region
  $region10: #{lstm_double_aa_forward.1} parent=0 // pred_check
    _
  $region11: #{lstm_double_aa_forward.1} parent=0 // pred_check_branch
    %24 = sbr.rel (0) target = $region13
  $region12: #{lstm_double_aa_forward.1} parent=0 // pred_region
    _
  $region13: #{lstm_double_aa_forward.1} parent=0 // pred_fallthru
    _
  // Predicated region
  $region14: #{lstm_double_aa_forward.1} parent=0 // pred_check
    _
  $region15: #{lstm_double_aa_forward.1} parent=0 // pred_check_branch
    %26 = sbr.rel (0) target = $region17
  $region16: #{lstm_double_aa_forward.1} parent=0 // pred_region
    _
  $region17: #{lstm_double_aa_forward.1} parent=0 // pred_fallthru
    _
  // Predicated region
  $region18: #{lstm_double_aa_forward.1} parent=0 // pred_check
    _
  $region19: #{lstm_double_aa_forward.1} parent=0 // pred_check_branch
    %28 = sbr.rel (0) target = $region21
  $region20: #{lstm_double_aa_forward.1} parent=0 // pred_region
    _
  $region21: #{lstm_double_aa_forward.1} parent=0 // pred_fallthru
    _
  // Predicated region
  $region22: #{lstm_double_aa_forward.1} parent=0 // pred_check
    _
  $region23: #{lstm_double_aa_forward.1} parent=0 // pred_check_branch
    %30 = sbr.rel (0) target = $region25
  $region24: #{lstm_double_aa_forward.1} parent=0 // pred_region
    _
  $region25: #{lstm_double_aa_forward.1} parent=0 // pred_fallthru
    _
  // Predicated region
  $region26: #{lstm_double_aa_forward.1} parent=0 // pred_check
    _
  $region27: #{lstm_double_aa_forward.1} parent=0 // pred_check_branch
    %32 = sbr.rel (0) target = $region29
  $region28: #{lstm_double_aa_forward.1} parent=0 // pred_region
    _
  $region29: #{lstm_double_aa_forward.1} parent=0 // pred_fallthru
    _
  // Predicated region
  $region30: #{lstm_double_aa_forward.1} parent=0 // pred_check
    _
  $region31: #{lstm_double_aa_forward.1} parent=0 // pred_check_branch
    %34 = sbr.rel (0) target = $region33
  $region32: #{lstm_double_aa_forward.1} parent=0 // pred_region
    _
  $region33: #{lstm_double_aa_forward.1} parent=0 // pred_fallthru
    _
  // Predicated region
  $region34: #{lstm_double_aa_forward.1} parent=0 // pred_check
    _
  $region35: #{lstm_double_aa_forward.1} parent=0 // pred_check_branch
    %36 = sbr.rel (0) target = $region37
  $region36: #{lstm_double_aa_forward.1} parent=0 // pred_region
    _
  $region37: #{lstm_double_aa_forward.1} parent=0 // pred_fallthru
    _
  // Predicated region
  $region38: #{lstm_double_aa_forward.1} parent=0 // pred_check
    _
  $region39: #{lstm_double_aa_forward.1} parent=0 // pred_check_branch
    %38 = sbr.rel (0) target = $region41
  $region40: #{lstm_double_aa_forward.1} parent=0 // pred_region
    _
  $region41: #{lstm_double_aa_forward.1} parent=0 // pred_fallthru
    _
  // Predicated region
  $region42: #{lstm_double_aa_forward.1} parent=0 // pred_check
    _
  $region43: #{lstm_double_aa_forward.1} parent=0 // pred_check_branch
    %40 = sbr.rel (0) target = $region45
  $region44: #{lstm_double_aa_forward.1} parent=0 // pred_region
    _
  $region45: #{lstm_double_aa_forward.1} parent=0 // pred_fallthru
    _
  // Predicated region
  $region46: #{lstm_double_aa_forward.1} parent=0 // pred_check
    _
  $region47: #{lstm_double_aa_forward.1} parent=0 // pred_check_branch
    %42 = sbr.rel (0) target = $region49
  $region48: #{lstm_double_aa_forward.1} parent=0 // pred_region
    _
  $region49: #{lstm_double_aa_forward.1} parent=0 // pred_fallthru
    _
  %v44 = vld [vmem:[%s1] sm:$0xff]
  %v45 = vld [vmem:[%s1 + $0x8] sm:$0xff]
  %v46 = vld [vmem:[%s1 + $0x10] sm:$0xff]
  %v47 = vld [vmem:[%s1 + $0x18] sm:$0xff]
  %v48 = vld [vmem:[%s1 + $0x20] sm:$0xff]
  %v49 = vld [vmem:[%s1 + $0x28] sm:$0xff]
  %v50 = vld [vmem:[%s1 + $0x30] sm:$0xff]
  %v51 = vld [vmem:[%s1 + $0x38] sm:$0xff]
  %v52 = vld [vmem:[%s2] sm:$0xff]
  %v53 = vld [vmem:[%s2 + $0x8] sm:$0xff]
  %v54 = vld [vmem:[%s2 + $0x10] sm:$0xff]
  %v55 = vld [vmem:[%s2 + $0x18] sm:$0xff]
  %v56 = vld [vmem:[%s2 + $0x20] sm:$0xff]
  %v57 = vld [vmem:[%s2 + $0x28] sm:$0xff]
  %v58 = vld [vmem:[%s2 + $0x30] sm:$0xff]
  %v59 = vld [vmem:[%s2 + $0x38] sm:$0xff]
  %v60 = vld [vmem:[%s2 + $0x40] sm:$0xff]
  %v61 = vld [vmem:[%s2 + $0x48] sm:$0xff]
  %v62 = vld [vmem:[%s2 + $0x50] sm:$0xff]
  %v63 = vld [vmem:[%s2 + $0x58] sm:$0xff]
  %v64 = vld [vmem:[%s2 + $0x60] sm:$0xff]
  %v65 = vld [vmem:[%s2 + $0x68] sm:$0xff]
  %v66 = vld [vmem:[%s2 + $0x70] sm:$0xff]
  %v67 = vld [vmem:[%s2 + $0x78] sm:$0xff]
  %v68 = vld [vmem:[%s2 + $0x80] sm:$0xff]
  %v69 = vld [vmem:[%s2 + $0x88] sm:$0xff]
  %v70 = vld [vmem:[%s2 + $0x90] sm:$0xff]
  %v71 = vld [vmem:[%s2 + $0x98] sm:$0xff]
  %v72 = vld [vmem:[%s2 + $0xa0] sm:$0xff]
  %v73 = vld [vmem:[%s2 + $0xa8] sm:$0xff]
  %v74 = vld [vmem:[%s2 + $0xb0] sm:$0xff]
  %v75 = vld [vmem:[%s2 + $0xb8] sm:$0xff]
  %v76 = vld [vmem:[%s2 + $0xc0] sm:$0xff]
  %v77 = vld [vmem:[%s2 + $0xc8] sm:$0xff]
  %v78 = vld [vmem:[%s2 + $0xd0] sm:$0xff]
  %v79 = vld [vmem:[%s2 + $0xd8] sm:$0xff]
  %v80 = vld [vmem:[%s2 + $0xe0] sm:$0xff]
  %v81 = vld [vmem:[%s2 + $0xe8] sm:$0xff]
  %v82 = vld [vmem:[%s2 + $0xf0] sm:$0xff]
  %v83 = vld [vmem:[%s2 + $0xf8] sm:$0xff]
  %v84 = vld [vmem:[%s0] sm:$0xf]
  %v85 = vld [vmem:[%s0 + $0x4] sm:$0xf]
  %v86 = vld [vmem:[%s0 + $0x8] sm:$0xf]
  %v87 = vld [vmem:[%s0 + $0xc] sm:$0xf]
  %v88 = vld [vmem:[%s0 + $0x10] sm:$0xf]
  %v89 = vld [vmem:[%s0 + $0x14] sm:$0xf]
  %v90 = vld [vmem:[%s0 + $0x18] sm:$0xf]
  %v91 = vld [vmem:[%s0 + $0x1c] sm:$0xf]
  %v92 = vld [vmem:[%s3] sm:$0xf]
  %v94 = vlaneseq
  %v95 = vshrl.u32 %v94, 7
  %v96 = vsub.s32 0, %v95
  %v97 = vrot.slane %v92, %v96
  %v98 = vlaneseq
  %v99 = vshrl.u32 %v98, 7
  %v100 = vsub.s32 1, %v99
  %v101 = vrot.slane %v92, %v100
  %v102 = vlaneseq
  %v103 = vshrl.u32 %v102, 7
  %v104 = vsub.s32 2, %v103
  %v105 = vrot.slane %v92, %v104
  %v106 = vlaneseq
  %v107 = vshrl.u32 %v106, 7
  %v108 = vsub.s32 3, %v107
  %v109 = vrot.slane %v92, %v108
  %v122 = vunpack.c.l.b16 %v84
  %v123 = vunpack.c.l.b16 %v85
  %v124 = vunpack.c.l.b16 %v86
  %v125 = vunpack.c.l.b16 %v87
  %v126 = vunpack.c.l.b16 %v88
  %v127 = vunpack.c.l.b16 %v89
  %v128 = vunpack.c.l.b16 %v90
  %v129 = vunpack.c.l.b16 %v91
  %v130 = vpack.c.b16 %v123, %v122
  %v131 = vpack.c.b16 %v125, %v124
  %v132 = vpack.c.b16 %v127, %v126
  %v133 = vpack.c.b16 %v129, %v128
  %v142 = vunpack.c.l.b16 %v44
  %v143 = vunpack.c.h.b16 %v44
  %v144 = vunpack.c.l.b16 %v45
  %v145 = vunpack.c.h.b16 %v45
  %v146 = vunpack.c.l.b16 %v46
  %v147 = vunpack.c.h.b16 %v46
  %v148 = vunpack.c.l.b16 %v47
  %v149 = vunpack.c.h.b16 %v47
  %v150 = vunpack.c.l.b16 %v48
  %v151 = vunpack.c.h.b16 %v48
  %v152 = vunpack.c.l.b16 %v49
  %v153 = vunpack.c.h.b16 %v49
  %v154 = vunpack.c.l.b16 %v50
  %v155 = vunpack.c.h.b16 %v50
  %v156 = vunpack.c.l.b16 %v51
  %v157 = vunpack.c.h.b16 %v51
  %v158 = vpack.c.b16 %v146, %v142
  %v159 = vpack.c.b16 %v147, %v143
  %v160 = vpack.c.b16 %v148, %v144
  %v161 = vpack.c.b16 %v149, %v145
  %v162 = vpack.c.b16 %v154, %v150
  %v163 = vpack.c.b16 %v155, %v151
  %v164 = vpack.c.b16 %v156, %v152
  %v165 = vpack.c.b16 %v157, %v153
  %vm174 = vcmask 261120
  %v176 = vsel %vm174, %v130, 0
  %v179 = vsel %vm174, %v131, 0
  %v182 = vsel %vm174, %v132, 0
  %v185 = vsel %vm174, %v133, 0
  %187 = vmatprep.subr.bf16.mxu0 %v159
  %188 = vmatpush1.bf16.msra.mxu0 %v158
  %189 = vmatprep.subr.bf16.mxu0 %v163
  %190 = vmatpush1.bf16.msra.mxu0 %v162
  %191 = vmatprep.subr.bf16.mxu0 0
  %192 = vmatpush1.bf16.msra.mxu0 0
  %193 = vmatprep.subr.bf16.mxu0 0
  %194 = vmatpush1.bf16.msra.mxu0 0
  %195 = vmatprep.subr.bf16.mxu0 0
  %196 = vmatpush1.bf16.msra.mxu0 0
  %197 = vmatprep.subr.bf16.mxu0 0
  %198 = vmatpush1.bf16.msra.mxu0 0
  %199 = vmatprep.subr.bf16.mxu0 0
  %200 = vmatpush1.bf16.msra.mxu0 0
  %201 = vmatprep.subr.bf16.mxu0 0
  %202 = vmatpush1.bf16.msra.mxu0 0
  %203 = vmatprep.subr.bf16.mxu0 0
  %204 = vmatpush1.bf16.msra.mxu0 0
  %205 = vmatprep.subr.bf16.mxu0 0
  %206 = vmatpush1.bf16.msra.mxu0 0
  %207 = vmatprep.subr.bf16.mxu0 0
  %208 = vmatpush1.bf16.msra.mxu0 0
  %209 = vmatprep.subr.bf16.mxu0 0
  %210 = vmatpush1.bf16.msra.mxu0 0
  %211 = vmatprep.subr.bf16.mxu0 0
  %212 = vmatpush1.bf16.msra.mxu0 0
  %213 = vmatprep.subr.bf16.mxu0 0
  %214 = vmatpush1.bf16.msra.mxu0 0
  %215 = vmatprep.subr.bf16.mxu0 0
  %216 = vmatpush1.bf16.msra.mxu0 0
  %217 = vmatprep.subr.bf16.mxu0 0
  %218 = vmatpush1.bf16.msra.mxu0 0
  %219 = vmatprep.mubr.bf16.mxu0 0
  %220 = vmatmul.mubr.bf16.gmra.mrb[0].mxu0 %v176
  %v221 = vpop.f32.mrb[0].mxu0
  %v222 = vadd.f32 %v97, %v221
  %v223 = vpop.f32.mrb[0].mxu0
  %v224 = vadd.f32 %v101, %v223
  %v225 = vpop.f32.mrb[0].mxu0
  %v226 = vadd.f32 %v97, %v225
  %v227 = vpop.f32.mrb[0].mxu0
  %v228 = vadd.f32 %v101, %v227
  %229 = vmatprep.mubr.bf16.mxu0 0
  %230 = vmatmul.mubr.bf16.gmra.mrb[0].mxu0 %v179
  %v231 = vpop.f32.mrb[0].mxu0
  %v232 = vadd.f32 %v97, %v231
  %v233 = vpop.f32.mrb[0].mxu0
  %v234 = vadd.f32 %v101, %v233
  %v235 = vpop.f32.mrb[0].mxu0
  %v236 = vadd.f32 %v97, %v235
  %v237 = vpop.f32.mrb[0].mxu0
  %v238 = vadd.f32 %v101, %v237
  %239 = vmatprep.mubr.bf16.mxu0 0
  %240 = vmatmul.mubr.bf16.gmra.mrb[0].mxu0 %v182
  %v241 = vpop.f32.mrb[0].mxu0
  %v242 = vadd.f32 %v97, %v241
  %v243 = vpop.f32.mrb[0].mxu0
  %v244 = vadd.f32 %v101, %v243
  %v245 = vpop.f32.mrb[0].mxu0
  %v246 = vadd.f32 %v97, %v245
  %v247 = vpop.f32.mrb[0].mxu0
  %v248 = vadd.f32 %v101, %v247
  %249 = vmatprep.mubr.bf16.mxu0 0
  %250 = vmatmul.mubr.bf16.gmra.mrb[0].mxu0 %v185
  %v251 = vpop.f32.mrb[0].mxu0
  %v252 = vadd.f32 %v97, %v251
  %v253 = vpop.f32.mrb[0].mxu0
  %v254 = vadd.f32 %v101, %v253
  %v255 = vpop.f32.mrb[0].mxu0
  %v256 = vadd.f32 %v97, %v255
  %v257 = vpop.f32.mrb[0].mxu0
  %v258 = vadd.f32 %v101, %v257
  %259 = vdwg.mxu0
  %260 = vmatprep.subr.bf16.mxu0 %v161
  %261 = vmatpush1.bf16.msra.mxu0 %v160
  %262 = vmatprep.subr.bf16.mxu0 %v165
  %263 = vmatpush1.bf16.msra.mxu0 %v164
  %264 = vmatprep.subr.bf16.mxu0 0
  %265 = vmatpush1.bf16.msra.mxu0 0
  %266 = vmatprep.subr.bf16.mxu0 0
  %267 = vmatpush1.bf16.msra.mxu0 0
  %268 = vmatprep.subr.bf16.mxu0 0
  %269 = vmatpush1.bf16.msra.mxu0 0
  %270 = vmatprep.subr.bf16.mxu0 0
  %271 = vmatpush1.bf16.msra.mxu0 0
  %272 = vmatprep.subr.bf16.mxu0 0
  %273 = vmatpush1.bf16.msra.mxu0 0
  %274 = vmatprep.subr.bf16.mxu0 0
  %275 = vmatpush1.bf16.msra.mxu0 0
  %276 = vmatprep.subr.bf16.mxu0 0
  %277 = vmatpush1.bf16.msra.mxu0 0
  %278 = vmatprep.subr.bf16.mxu0 0
  %279 = vmatpush1.bf16.msra.mxu0 0
  %280 = vmatprep.subr.bf16.mxu0 0
  %281 = vmatpush1.bf16.msra.mxu0 0
  %282 = vmatprep.subr.bf16.mxu0 0
  %283 = vmatpush1.bf16.msra.mxu0 0
  %284 = vmatprep.subr.bf16.mxu0 0
  %285 = vmatpush1.bf16.msra.mxu0 0
  %286 = vmatprep.subr.bf16.mxu0 0
  %287 = vmatpush1.bf16.msra.mxu0 0
  %288 = vmatprep.subr.bf16.mxu0 0
  %289 = vmatpush1.bf16.msra.mxu0 0
  %290 = vmatprep.subr.bf16.mxu0 0
  %291 = vmatpush1.bf16.msra.mxu0 0
  %292 = vmatprep.mubr.bf16.mxu0 0
  %293 = vmatmul.mubr.bf16.gmra.mrb[0].mxu0 %v176
  %v294 = vpop.f32.mrb[0].mxu0
  %v295 = vadd.f32 %v105, %v294
  %v296 = vpop.f32.mrb[0].mxu0
  %v297 = vadd.f32 %v109, %v296
  %v298 = vpop.f32.mrb[0].mxu0
  %v299 = vadd.f32 %v105, %v298
  %v300 = vpop.f32.mrb[0].mxu0
  %v301 = vadd.f32 %v109, %v300
  %302 = vmatprep.mubr.bf16.mxu0 0
  %303 = vmatmul.mubr.bf16.gmra.mrb[0].mxu0 %v179
  %v304 = vpop.f32.mrb[0].mxu0
  %v305 = vadd.f32 %v105, %v304
  %v306 = vpop.f32.mrb[0].mxu0
  %v307 = vadd.f32 %v109, %v306
  %v308 = vpop.f32.mrb[0].mxu0
  %v309 = vadd.f32 %v105, %v308
  %v310 = vpop.f32.mrb[0].mxu0
  %v311 = vadd.f32 %v109, %v310
  %312 = vmatprep.mubr.bf16.mxu0 0
  %313 = vmatmul.mubr.bf16.gmra.mrb[0].mxu0 %v182
  %v314 = vpop.f32.mrb[0].mxu0
  %v315 = vadd.f32 %v105, %v314
  %v316 = vpop.f32.mrb[0].mxu0
  %v317 = vadd.f32 %v109, %v316
  %v318 = vpop.f32.mrb[0].mxu0
  %v319 = vadd.f32 %v105, %v318
  %v320 = vpop.f32.mrb[0].mxu0
  %v321 = vadd.f32 %v109, %v320
  %322 = vmatprep.mubr.bf16.mxu0 0
  %323 = vmatmul.mubr.bf16.gmra.mrb[0].mxu0 %v185
  %v324 = vpop.f32.mrb[0].mxu0
  %v325 = vadd.f32 %v105, %v324
  %v326 = vpop.f32.mrb[0].mxu0
  %v327 = vadd.f32 %v109, %v326
  %v328 = vpop.f32.mrb[0].mxu0
  %v329 = vadd.f32 %v105, %v328
  %v330 = vpop.f32.mrb[0].mxu0
  %v331 = vadd.f32 %v109, %v330
  %332 = vdwg.mxu0
  %v365 = vunpack.c.l.b16 %v52
  %v366 = vunpack.c.h.b16 %v52
  %v367 = vunpack.c.l.b16 %v53
  %v368 = vunpack.c.h.b16 %v53
  %v369 = vunpack.c.l.b16 %v54
  %v370 = vunpack.c.h.b16 %v54
  %v371 = vunpack.c.l.b16 %v55
  %v372 = vunpack.c.h.b16 %v55
  %v373 = vunpack.c.l.b16 %v56
  %v374 = vunpack.c.h.b16 %v56
  %v375 = vunpack.c.l.b16 %v57
  %v376 = vunpack.c.h.b16 %v57
  %v377 = vunpack.c.l.b16 %v58
  %v378 = vunpack.c.h.b16 %v58
  %v379 = vunpack.c.l.b16 %v59
  %v380 = vunpack.c.h.b16 %v59
  %v381 = vunpack.c.l.b16 %v60
  %v382 = vunpack.c.h.b16 %v60
  %v383 = vunpack.c.l.b16 %v61
  %v384 = vunpack.c.h.b16 %v61
  %v385 = vunpack.c.l.b16 %v62
  %v386 = vunpack.c.h.b16 %v62
  %v387 = vunpack.c.l.b16 %v63
  %v388 = vunpack.c.h.b16 %v63
  %v389 = vunpack.c.l.b16 %v64
  %v390 = vunpack.c.h.b16 %v64
  %v391 = vunpack.c.l.b16 %v65
  %v392 = vunpack.c.h.b16 %v65
  %v393 = vunpack.c.l.b16 %v66
  %v394 = vunpack.c.h.b16 %v66
  %v395 = vunpack.c.l.b16 %v67
  %v396 = vunpack.c.h.b16 %v67
  %v397 = vunpack.c.l.b16 %v68
  %v398 = vunpack.c.h.b16 %v68
  %v399 = vunpack.c.l.b16 %v69
  %v400 = vunpack.c.h.b16 %v69
  %v401 = vunpack.c.l.b16 %v70
  %v402 = vunpack.c.h.b16 %v70
  %v403 = vunpack.c.l.b16 %v71
  %v404 = vunpack.c.h.b16 %v71
  %v405 = vunpack.c.l.b16 %v72
  %v406 = vunpack.c.h.b16 %v72
  %v407 = vunpack.c.l.b16 %v73
  %v408 = vunpack.c.h.b16 %v73
  %v409 = vunpack.c.l.b16 %v74
  %v410 = vunpack.c.h.b16 %v74
  %v411 = vunpack.c.l.b16 %v75
  %v412 = vunpack.c.h.b16 %v75
  %v413 = vunpack.c.l.b16 %v76
  %v414 = vunpack.c.h.b16 %v76
  %v415 = vunpack.c.l.b16 %v77
  %v416 = vunpack.c.h.b16 %v77
  %v417 = vunpack.c.l.b16 %v78
  %v418 = vunpack.c.h.b16 %v78
  %v419 = vunpack.c.l.b16 %v79
  %v420 = vunpack.c.h.b16 %v79
  %v421 = vunpack.c.l.b16 %v80
  %v422 = vunpack.c.h.b16 %v80
  %v423 = vunpack.c.l.b16 %v81
  %v424 = vunpack.c.h.b16 %v81
  %v425 = vunpack.c.l.b16 %v82
  %v426 = vunpack.c.h.b16 %v82
  %v427 = vunpack.c.l.b16 %v83
  %v428 = vunpack.c.h.b16 %v83
  %v429 = vpack.c.b16 %v369, %v365
  %v430 = vpack.c.b16 %v370, %v366
  %v431 = vpack.c.b16 %v371, %v367
  %v432 = vpack.c.b16 %v372, %v368
  %v433 = vpack.c.b16 %v377, %v373
  %v434 = vpack.c.b16 %v378, %v374
  %v435 = vpack.c.b16 %v379, %v375
  %v436 = vpack.c.b16 %v380, %v376
  %v437 = vpack.c.b16 %v385, %v381
  %v438 = vpack.c.b16 %v386, %v382
  %v439 = vpack.c.b16 %v387, %v383
  %v440 = vpack.c.b16 %v388, %v384
  %v441 = vpack.c.b16 %v393, %v389
  %v442 = vpack.c.b16 %v394, %v390
  %v443 = vpack.c.b16 %v395, %v391
  %v444 = vpack.c.b16 %v396, %v392
  %v445 = vpack.c.b16 %v401, %v397
  %v446 = vpack.c.b16 %v402, %v398
  %v447 = vpack.c.b16 %v403, %v399
  %v448 = vpack.c.b16 %v404, %v400
  %v449 = vpack.c.b16 %v409, %v405
  %v450 = vpack.c.b16 %v410, %v406
  %v451 = vpack.c.b16 %v411, %v407
  %v452 = vpack.c.b16 %v412, %v408
  %v453 = vpack.c.b16 %v417, %v413
  %v454 = vpack.c.b16 %v418, %v414
  %v455 = vpack.c.b16 %v419, %v415
  %v456 = vpack.c.b16 %v420, %v416
  %v457 = vpack.c.b16 %v425, %v421
  %v458 = vpack.c.b16 %v426, %v422
  %v459 = vpack.c.b16 %v427, %v423
  %v460 = vpack.c.b16 %v428, %v424
  %493 = vmatprep.subr.bf16.mxu0 %v430
  %494 = vmatpush1.bf16.msra.mxu0 %v429
  %495 = vmatprep.subr.bf16.mxu0 %v434
  %496 = vmatpush1.bf16.msra.mxu0 %v433
  %497 = vmatprep.subr.bf16.mxu0 %v438
  %498 = vmatpush1.bf16.msra.mxu0 %v437
  %499 = vmatprep.subr.bf16.mxu0 %v442
  %500 = vmatpush1.bf16.msra.mxu0 %v441
  %501 = vmatprep.subr.bf16.mxu0 %v446
  %502 = vmatpush1.bf16.msra.mxu0 %v445
  %503 = vmatprep.subr.bf16.mxu0 %v450
  %504 = vmatpush1.bf16.msra.mxu0 %v449
  %505 = vmatprep.subr.bf16.mxu0 %v454
  %506 = vmatpush1.bf16.msra.mxu0 %v453
  %507 = vmatprep.subr.bf16.mxu0 %v458
  %508 = vmatpush1.bf16.msra.mxu0 %v457
  %509 = vmatprep.subr.bf16.mxu0 0
  %510 = vmatpush1.bf16.msra.mxu0 0
  %511 = vmatprep.subr.bf16.mxu0 0
  %512 = vmatpush1.bf16.msra.mxu0 0
  %513 = vmatprep.subr.bf16.mxu0 0
  %514 = vmatpush1.bf16.msra.mxu0 0
  %515 = vmatprep.subr.bf16.mxu0 0
  %516 = vmatpush1.bf16.msra.mxu0 0
  %517 = vmatprep.subr.bf16.mxu0 0
  %518 = vmatpush1.bf16.msra.mxu0 0
  %519 = vmatprep.subr.bf16.mxu0 0
  %520 = vmatpush1.bf16.msra.mxu0 0
  %521 = vmatprep.subr.bf16.mxu0 0
  %522 = vmatpush1.bf16.msra.mxu0 0
  %523 = vmatprep.subr.bf16.mxu0 0
  %524 = vmatpush1.bf16.msra.mxu0 0
  %525 = vmatprep.mubr.bf16.mxu0 0
  %526 = vmatmul.mubr.bf16.gmra.mrb[0].mxu0 0
  %v527 = vpop.f32.mrb[0].mxu0
  %v528 = vadd.f32 0.0, %v527
  %v529 = vpop.f32.mrb[0].mxu0
  %v530 = vadd.f32 0.0, %v529
  %v531 = vpop.f32.mrb[0].mxu0
  %v532 = vpop.f32.mrb[0].mxu0
  %533 = vdwg.mxu0
  %534 = vmatprep.subr.bf16.mxu0 %v432
  %535 = vmatpush1.bf16.msra.mxu0 %v431
  %536 = vmatprep.subr.bf16.mxu0 %v436
  %537 = vmatpush1.bf16.msra.mxu0 %v435
  %538 = vmatprep.subr.bf16.mxu0 %v440
  %539 = vmatpush1.bf16.msra.mxu0 %v439
  %540 = vmatprep.subr.bf16.mxu0 %v444
  %541 = vmatpush1.bf16.msra.mxu0 %v443
  %542 = vmatprep.subr.bf16.mxu0 %v448
  %543 = vmatpush1.bf16.msra.mxu0 %v447
  %544 = vmatprep.subr.bf16.mxu0 %v452
  %545 = vmatpush1.bf16.msra.mxu0 %v451
  %546 = vmatprep.subr.bf16.mxu0 %v456
  %547 = vmatpush1.bf16.msra.mxu0 %v455
  %548 = vmatprep.subr.bf16.mxu0 %v460
  %549 = vmatpush1.bf16.msra.mxu0 %v459
  %550 = vmatprep.subr.bf16.mxu0 0
  %551 = vmatpush1.bf16.msra.mxu0 0
  %552 = vmatprep.subr.bf16.mxu0 0
  %553 = vmatpush1.bf16.msra.mxu0 0
  %554 = vmatprep.subr.bf16.mxu0 0
  %555 = vmatpush1.bf16.msra.mxu0 0
  %556 = vmatprep.subr.bf16.mxu0 0
  %557 = vmatpush1.bf16.msra.mxu0 0
  %558 = vmatprep.subr.bf16.mxu0 0
  %559 = vmatpush1.bf16.msra.mxu0 0
  %560 = vmatprep.subr.bf16.mxu0 0
  %561 = vmatpush1.bf16.msra.mxu0 0
  %562 = vmatprep.subr.bf16.mxu0 0
  %563 = vmatpush1.bf16.msra.mxu0 0
  %564 = vmatprep.subr.bf16.mxu0 0
  %565 = vmatpush1.bf16.msra.mxu0 0
  %566 = vmatprep.mubr.bf16.mxu0 0
  %567 = vmatmul.mubr.bf16.gmra.mrb[0].mxu0 0
  %v568 = vpop.f32.mrb[0].mxu0
  %v569 = vadd.f32 0.0, %v568
  %v570 = vpop.f32.mrb[0].mxu0
  %v571 = vadd.f32 0.0, %v570
  %v572 = vpop.f32.mrb[0].mxu0
  %v573 = vpop.f32.mrb[0].mxu0
  %574 = vdwg.mxu0
  %v575 = vadd.f32 %v222, %v528
  %v576 = vadd.f32 %v224, %v530
  %v577 = vadd.f32 %v295, %v569
  %v578 = vadd.f32 %v297, %v571
  %v579 = vxor.u32 %v575, 2147483648
  %v580 = vmul.f32 %v579, 1.442695
  %v581 = vpow.pop %v580
  %v582 = vadd.f32 %v581, 1.0
  %v583 = vrcp.pop %v582
  %v584 = vmul.f32 1.0, %v583
  %v585 = vxor.u32 %v576, 2147483648
  %v586 = vmul.f32 %v585, 1.442695
  %v587 = vpow.pop %v586
  %v588 = vadd.f32 %v587, 1.0
  %v589 = vrcp.pop %v588
  %v590 = vmul.f32 1.0, %v589
  %v591 = vtanh.pop %v577
  %v592 = vxor.u32 %v578, 2147483648
  %v593 = vmul.f32 %v592, 1.442695
  %v594 = vpow.pop %v593
  %v595 = vadd.f32 %v594, 1.0
  %v596 = vrcp.pop %v595
  %v597 = vmul.f32 1.0, %v596
  %v598 = vmul.f32 %v590, 0.0
  %v599 = vmul.f32 %v584, %v591
  %v600 = vadd.f32 %v598, %v599
  %v601 = vtanh.pop %v600
  %v602 = vmul.f32 %v597, %v601
  %v603 = vpack.c.bf16 %v602, %v602
  %604 = vmatprep.subr.bf16.mxu0 %v430
  %605 = vmatpush1.bf16.msra.mxu0 %v429
  %606 = vmatprep.subr.bf16.mxu0 %v434
  %607 = vmatpush1.bf16.msra.mxu0 %v433
  %608 = vmatprep.subr.bf16.mxu0 %v438
  %609 = vmatpush1.bf16.msra.mxu0 %v437
  %610 = vmatprep.subr.bf16.mxu0 %v442
  %611 = vmatpush1.bf16.msra.mxu0 %v441
  %612 = vmatprep.subr.bf16.mxu0 %v446
  %613 = vmatpush1.bf16.msra.mxu0 %v445
  %614 = vmatprep.subr.bf16.mxu0 %v450
  %615 = vmatpush1.bf16.msra.mxu0 %v449
  %616 = vmatprep.subr.bf16.mxu0 %v454
  %617 = vmatpush1.bf16.msra.mxu0 %v453
  %618 = vmatprep.subr.bf16.mxu0 %v458
  %619 = vmatpush1.bf16.msra.mxu0 %v457
  %620 = vmatprep.subr.bf16.mxu0 0
  %621 = vmatpush1.bf16.msra.mxu0 0
  %622 = vmatprep.subr.bf16.mxu0 0
  %623 = vmatpush1.bf16.msra.mxu0 0
  %624 = vmatprep.subr.bf16.mxu0 0
  %625 = vmatpush1.bf16.msra.mxu0 0
  %626 = vmatprep.subr.bf16.mxu0 0
  %627 = vmatpush1.bf16.msra.mxu0 0
  %628 = vmatprep.subr.bf16.mxu0 0
  %629 = vmatpush1.bf16.msra.mxu0 0
  %630 = vmatprep.subr.bf16.mxu0 0
  %631 = vmatpush1.bf16.msra.mxu0 0
  %632 = vmatprep.subr.bf16.mxu0 0
  %633 = vmatpush1.bf16.msra.mxu0 0
  %634 = vmatprep.subr.bf16.mxu0 0
  %635 = vmatpush1.bf16.msra.mxu0 0
  %636 = vmatprep.mubr.bf16.mxu0 0
  %637 = vmatmul.mubr.bf16.gmra.mrb[0].mxu0 %v603
  %v638 = vpop.f32.mrb[0].mxu0
  %v639 = vadd.f32 0.0, %v638
  %v640 = vpop.f32.mrb[0].mxu0
  %v641 = vadd.f32 0.0, %v640
  %v642 = vpop.f32.mrb[0].mxu0
  %v643 = vpop.f32.mrb[0].mxu0
  %644 = vdwg.mxu0
  %645 = vmatprep.subr.bf16.mxu0 %v432
  %646 = vmatpush1.bf16.msra.mxu0 %v431
  %647 = vmatprep.subr.bf16.mxu0 %v436
  %648 = vmatpush1.bf16.msra.mxu0 %v435
  %649 = vmatprep.subr.bf16.mxu0 %v440
  %650 = vmatpush1.bf16.msra.mxu0 %v439
  %651 = vmatprep.subr.bf16.mxu0 %v444
  %652 = vmatpush1.bf16.msra.mxu0 %v443
  %653 = vmatprep.subr.bf16.mxu0 %v448
  %654 = vmatpush1.bf16.msra.mxu0 %v447
  %655 = vmatprep.subr.bf16.mxu0 %v452
  %656 = vmatpush1.bf16.msra.mxu0 %v451
  %657 = vmatprep.subr.bf16.mxu0 %v456
  %658 = vmatpush1.bf16.msra.mxu0 %v455
  %659 = vmatprep.subr.bf16.mxu0 %v460
  %660 = vmatpush1.bf16.msra.mxu0 %v459
  %661 = vmatprep.subr.bf16.mxu0 0
  %662 = vmatpush1.bf16.msra.mxu0 0
  %663 = vmatprep.subr.bf16.mxu0 0
  %664 = vmatpush1.bf16.msra.mxu0 0
  %665 = vmatprep.subr.bf16.mxu0 0
  %666 = vmatpush1.bf16.msra.mxu0 0
  %667 = vmatprep.subr.bf16.mxu0 0
  %668 = vmatpush1.bf16.msra.mxu0 0
  %669 = vmatprep.subr.bf16.mxu0 0
  %670 = vmatpush1.bf16.msra.mxu0 0
  %671 = vmatprep.subr.bf16.mxu0 0
  %672 = vmatpush1.bf16.msra.mxu0 0
  %673 = vmatprep.subr.bf16.mxu0 0
  %674 = vmatpush1.bf16.msra.mxu0 0
  %675 = vmatprep.subr.bf16.mxu0 0
  %676 = vmatpush1.bf16.msra.mxu0 0
  %677 = vmatprep.mubr.bf16.mxu0 0
  %678 = vmatmul.mubr.bf16.gmra.mrb[0].mxu0 %v603
  %v679 = vpop.f32.mrb[0].mxu0
  %v680 = vadd.f32 0.0, %v679
  %v681 = vpop.f32.mrb[0].mxu0
  %v682 = vadd.f32 0.0, %v681
  %v683 = vpop.f32.mrb[0].mxu0
  %v684 = vpop.f32.mrb[0].mxu0
  %685 = vdwg.mxu0
  %v686 = vadd.f32 %v226, %v639
  %v687 = vadd.f32 %v228, %v641
  %v688 = vadd.f32 %v299, %v680
  %v689 = vadd.f32 %v301, %v682
  %v690 = vxor.u32 %v686, 2147483648
  %v691 = vmul.f32 %v690, 1.442695
  %v692 = vpow.pop %v691
  %v693 = vadd.f32 %v692, 1.0
  %v694 = vrcp.pop %v693
  %v695 = vmul.f32 1.0, %v694
  %v696 = vxor.u32 %v687, 2147483648
  %v697 = vmul.f32 %v696, 1.442695
  %v698 = vpow.pop %v697
  %v699 = vadd.f32 %v698, 1.0
  %v700 = vrcp.pop %v699
  %v701 = vmul.f32 1.0, %v700
  %v702 = vtanh.pop %v688
  %v703 = vxor.u32 %v689, 2147483648
  %v704 = vmul.f32 %v703, 1.442695
  %v705 = vpow.pop %v704
  %v706 = vadd.f32 %v705, 1.0
  %v707 = vrcp.pop %v706
  %v708 = vmul.f32 1.0, %v707
  %v709 = vmul.f32 %v701, %v600
  %v710 = vmul.f32 %v695, %v702
  %v711 = vadd.f32 %v709, %v710
  %v712 = vtanh.pop %v711
  %v713 = vmul.f32 %v708, %v712
  %v714 = vpack.c.bf16 %v713, %v713
  %715 = vmatprep.subr.bf16.mxu0 %v430
  %716 = vmatpush1.bf16.msra.mxu0 %v429
  %717 = vmatprep.subr.bf16.mxu0 %v434
  %718 = vmatpush1.bf16.msra.mxu0 %v433
  %719 = vmatprep.subr.bf16.mxu0 %v438
  %720 = vmatpush1.bf16.msra.mxu0 %v437
  %721 = vmatprep.subr.bf16.mxu0 %v442
  %722 = vmatpush1.bf16.msra.mxu0 %v441
  %723 = vmatprep.subr.bf16.mxu0 %v446
  %724 = vmatpush1.bf16.msra.mxu0 %v445
  %725 = vmatprep.subr.bf16.mxu0 %v450
  %726 = vmatpush1.bf16.msra.mxu0 %v449
  %727 = vmatprep.subr.bf16.mxu0 %v454
  %728 = vmatpush1.bf16.msra.mxu0 %v453
  %729 = vmatprep.subr.bf16.mxu0 %v458
  %730 = vmatpush1.bf16.msra.mxu0 %v457
  %731 = vmatprep.subr.bf16.mxu0 0
  %732 = vmatpush1.bf16.msra.mxu0 0
  %733 = vmatprep.subr.bf16.mxu0 0
  %734 = vmatpush1.bf16.msra.mxu0 0
  %735 = vmatprep.subr.bf16.mxu0 0
  %736 = vmatpush1.bf16.msra.mxu0 0
  %737 = vmatprep.subr.bf16.mxu0 0
  %738 = vmatpush1.bf16.msra.mxu0 0
  %739 = vmatprep.subr.bf16.mxu0 0
  %740 = vmatpush1.bf16.msra.mxu0 0
  %741 = vmatprep.subr.bf16.mxu0 0
  %742 = vmatpush1.bf16.msra.mxu0 0
  %743 = vmatprep.subr.bf16.mxu0 0
  %744 = vmatpush1.bf16.msra.mxu0 0
  %745 = vmatprep.subr.bf16.mxu0 0
  %746 = vmatpush1.bf16.msra.mxu0 0
  %747 = vmatprep.mubr.bf16.mxu0 0
  %748 = vmatmul.mubr.bf16.gmra.mrb[0].mxu0 %v714
  %v749 = vpop.f32.mrb[0].mxu0
  %v750 = vadd.f32 0.0, %v749
  %v751 = vpop.f32.mrb[0].mxu0
  %v752 = vadd.f32 0.0, %v751
  %v753 = vpop.f32.mrb[0].mxu0
  %v754 = vpop.f32.mrb[0].mxu0
  %755 = vdwg.mxu0
  %756 = vmatprep.subr.bf16.mxu0 %v432
  %757 = vmatpush1.bf16.msra.mxu0 %v431
  %758 = vmatprep.subr.bf16.mxu0 %v436
  %759 = vmatpush1.bf16.msra.mxu0 %v435
  %760 = vmatprep.subr.bf16.mxu0 %v440
  %761 = vmatpush1.bf16.msra.mxu0 %v439
  %762 = vmatprep.subr.bf16.mxu0 %v444
  %763 = vmatpush1.bf16.msra.mxu0 %v443
  %764 = vmatprep.subr.bf16.mxu0 %v448
  %765 = vmatpush1.bf16.msra.mxu0 %v447
  %766 = vmatprep.subr.bf16.mxu0 %v452
  %767 = vmatpush1.bf16.msra.mxu0 %v451
  %768 = vmatprep.subr.bf16.mxu0 %v456
  %769 = vmatpush1.bf16.msra.mxu0 %v455
  %770 = vmatprep.subr.bf16.mxu0 %v460
  %771 = vmatpush1.bf16.msra.mxu0 %v459
  %772 = vmatprep.subr.bf16.mxu0 0
  %773 = vmatpush1.bf16.msra.mxu0 0
  %774 = vmatprep.subr.bf16.mxu0 0
  %775 = vmatpush1.bf16.msra.mxu0 0
  %776 = vmatprep.subr.bf16.mxu0 0
  %777 = vmatpush1.bf16.msra.mxu0 0
  %778 = vmatprep.subr.bf16.mxu0 0
  %779 = vmatpush1.bf16.msra.mxu0 0
  %780 = vmatprep.subr.bf16.mxu0 0
  %781 = vmatpush1.bf16.msra.mxu0 0
  %782 = vmatprep.subr.bf16.mxu0 0
  %783 = vmatpush1.bf16.msra.mxu0 0
  %784 = vmatprep.subr.bf16.mxu0 0
  %785 = vmatpush1.bf16.msra.mxu0 0
  %786 = vmatprep.subr.bf16.mxu0 0
  %787 = vmatpush1.bf16.msra.mxu0 0
  %788 = vmatprep.mubr.bf16.mxu0 0
  %789 = vmatmul.mubr.bf16.gmra.mrb[0].mxu0 %v714
  %v790 = vpop.f32.mrb[0].mxu0
  %v791 = vadd.f32 0.0, %v790
  %v792 = vpop.f32.mrb[0].mxu0
  %v793 = vadd.f32 0.0, %v792
  %v794 = vpop.f32.mrb[0].mxu0
  %v795 = vpop.f32.mrb[0].mxu0
  %796 = vdwg.mxu0
  %v797 = vadd.f32 %v232, %v750
  %v798 = vadd.f32 %v234, %v752
  %v799 = vadd.f32 %v305, %v791
  %v800 = vadd.f32 %v307, %v793
  %v801 = vxor.u32 %v797, 2147483648
  %v802 = vmul.f32 %v801, 1.442695
  %v803 = vpow.pop %v802
  %v804 = vadd.f32 %v803, 1.0
  %v805 = vrcp.pop %v804
  %v806 = vmul.f32 1.0, %v805
  %v807 = vxor.u32 %v798, 2147483648
  %v808 = vmul.f32 %v807, 1.442695
  %v809 = vpow.pop %v808
  %v810 = vadd.f32 %v809, 1.0
  %v811 = vrcp.pop %v810
  %v812 = vmul.f32 1.0, %v811
  %v813 = vtanh.pop %v799
  %v814 = vxor.u32 %v800, 2147483648
  %v815 = vmul.f32 %v814, 1.442695
  %v816 = vpow.pop %v815
  %v817 = vadd.f32 %v816, 1.0
  %v818 = vrcp.pop %v817
  %v819 = vmul.f32 1.0, %v818
  %v820 = vmul.f32 %v812, %v711
  %v821 = vmul.f32 %v806, %v813
  %v822 = vadd.f32 %v820, %v821
  %v823 = vtanh.pop %v822
  %v824 = vmul.f32 %v819, %v823
  %v825 = vpack.c.bf16 %v824, %v824
  %826 = vmatprep.subr.bf16.mxu0 %v430
  %827 = vmatpush1.bf16.msra.mxu0 %v429
  %828 = vmatprep.subr.bf16.mxu0 %v434
  %829 = vmatpush1.bf16.msra.mxu0 %v433
  %830 = vmatprep.subr.bf16.mxu0 %v438
  %831 = vmatpush1.bf16.msra.mxu0 %v437
  %832 = vmatprep.subr.bf16.mxu0 %v442
  %833 = vmatpush1.bf16.msra.mxu0 %v441
  %834 = vmatprep.subr.bf16.mxu0 %v446
  %835 = vmatpush1.bf16.msra.mxu0 %v445
  %836 = vmatprep.subr.bf16.mxu0 %v450
  %837 = vmatpush1.bf16.msra.mxu0 %v449
  %838 = vmatprep.subr.bf16.mxu0 %v454
  %839 = vmatpush1.bf16.msra.mxu0 %v453
  %840 = vmatprep.subr.bf16.mxu0 %v458
  %841 = vmatpush1.bf16.msra.mxu0 %v457
  %842 = vmatprep.subr.bf16.mxu0 0
  %843 = vmatpush1.bf16.msra.mxu0 0
  %844 = vmatprep.subr.bf16.mxu0 0
  %845 = vmatpush1.bf16.msra.mxu0 0
  %846 = vmatprep.subr.bf16.mxu0 0
  %847 = vmatpush1.bf16.msra.mxu0 0
  %848 = vmatprep.subr.bf16.mxu0 0
  %849 = vmatpush1.bf16.msra.mxu0 0
  %850 = vmatprep.subr.bf16.mxu0 0
  %851 = vmatpush1.bf16.msra.mxu0 0
  %852 = vmatprep.subr.bf16.mxu0 0
  %853 = vmatpush1.bf16.msra.mxu0 0
  %854 = vmatprep.subr.bf16.mxu0 0
  %855 = vmatpush1.bf16.msra.mxu0 0
  %856 = vmatprep.subr.bf16.mxu0 0
  %857 = vmatpush1.bf16.msra.mxu0 0
  %858 = vmatprep.mubr.bf16.mxu0 0
  %859 = vmatmul.mubr.bf16.gmra.mrb[0].mxu0 %v825
  %v860 = vpop.f32.mrb[0].mxu0
  %v861 = vadd.f32 0.0, %v860
  %v862 = vpop.f32.mrb[0].mxu0
  %v863 = vadd.f32 0.0, %v862
  %v864 = vpop.f32.mrb[0].mxu0
  %v865 = vpop.f32.mrb[0].mxu0
  %866 = vdwg.mxu0
  %867 = vmatprep.subr.bf16.mxu0 %v432
  %868 = vmatpush1.bf16.msra.mxu0 %v431
  %869 = vmatprep.subr.bf16.mxu0 %v436
  %870 = vmatpush1.bf16.msra.mxu0 %v435
  %871 = vmatprep.subr.bf16.mxu0 %v440
  %872 = vmatpush1.bf16.msra.mxu0 %v439
  %873 = vmatprep.subr.bf16.mxu0 %v444
  %874 = vmatpush1.bf16.msra.mxu0 %v443
  %875 = vmatprep.subr.bf16.mxu0 %v448
  %876 = vmatpush1.bf16.msra.mxu0 %v447
  %877 = vmatprep.subr.bf16.mxu0 %v452
  %878 = vmatpush1.bf16.msra.mxu0 %v451
  %879 = vmatprep.subr.bf16.mxu0 %v456
  %880 = vmatpush1.bf16.msra.mxu0 %v455
  %881 = vmatprep.subr.bf16.mxu0 %v460
  %882 = vmatpush1.bf16.msra.mxu0 %v459
  %883 = vmatprep.subr.bf16.mxu0 0
  %884 = vmatpush1.bf16.msra.mxu0 0
  %885 = vmatprep.subr.bf16.mxu0 0
  %886 = vmatpush1.bf16.msra.mxu0 0
  %887 = vmatprep.subr.bf16.mxu0 0
  %888 = vmatpush1.bf16.msra.mxu0 0
  %889 = vmatprep.subr.bf16.mxu0 0
  %890 = vmatpush1.bf16.msra.mxu0 0
  %891 = vmatprep.subr.bf16.mxu0 0
  %892 = vmatpush1.bf16.msra.mxu0 0
  %893 = vmatprep.subr.bf16.mxu0 0
  %894 = vmatpush1.bf16.msra.mxu0 0
  %895 = vmatprep.subr.bf16.mxu0 0
  %896 = vmatpush1.bf16.msra.mxu0 0
  %897 = vmatprep.subr.bf16.mxu0 0
  %898 = vmatpush1.bf16.msra.mxu0 0
  %899 = vmatprep.mubr.bf16.mxu0 0
  %900 = vmatmul.mubr.bf16.gmra.mrb[0].mxu0 %v825
  %v901 = vpop.f32.mrb[0].mxu0
  %v902 = vadd.f32 0.0, %v901
  %v903 = vpop.f32.mrb[0].mxu0
  %v904 = vadd.f32 0.0, %v903
  %v905 = vpop.f32.mrb[0].mxu0
  %v906 = vpop.f32.mrb[0].mxu0
  %907 = vdwg.mxu0
  %v908 = vadd.f32 %v236, %v861
  %v909 = vadd.f32 %v238, %v863
  %v910 = vadd.f32 %v309, %v902
  %v911 = vadd.f32 %v311, %v904
  %v912 = vxor.u32 %v908, 2147483648
  %v913 = vmul.f32 %v912, 1.442695
  %v914 = vpow.pop %v913
  %v915 = vadd.f32 %v914, 1.0
  %v916 = vrcp.pop %v915
  %v917 = vmul.f32 1.0, %v916
  %v918 = vxor.u32 %v909, 2147483648
  %v919 = vmul.f32 %v918, 1.442695
  %v920 = vpow.pop %v919
  %v921 = vadd.f32 %v920, 1.0
  %v922 = vrcp.pop %v921
  %v923 = vmul.f32 1.0, %v922
  %v924 = vtanh.pop %v910
  %v925 = vxor.u32 %v911, 2147483648
  %v926 = vmul.f32 %v925, 1.442695
  %v927 = vpow.pop %v926
  %v928 = vadd.f32 %v927, 1.0
  %v929 = vrcp.pop %v928
  %v930 = vmul.f32 1.0, %v929
  %v931 = vmul.f32 %v923, %v822
  %v932 = vmul.f32 %v917, %v924
  %v933 = vadd.f32 %v931, %v932
  %v934 = vtanh.pop %v933
  %v935 = vmul.f32 %v930, %v934
  %v936 = vpack.c.bf16 %v935, %v935
  %937 = vmatprep.subr.bf16.mxu0 %v430
  %938 = vmatpush1.bf16.msra.mxu0 %v429
  %939 = vmatprep.subr.bf16.mxu0 %v434
  %940 = vmatpush1.bf16.msra.mxu0 %v433
  %941 = vmatprep.subr.bf16.mxu0 %v438
  %942 = vmatpush1.bf16.msra.mxu0 %v437
  %943 = vmatprep.subr.bf16.mxu0 %v442
  %944 = vmatpush1.bf16.msra.mxu0 %v441
  %945 = vmatprep.subr.bf16.mxu0 %v446
  %946 = vmatpush1.bf16.msra.mxu0 %v445
  %947 = vmatprep.subr.bf16.mxu0 %v450
  %948 = vmatpush1.bf16.msra.mxu0 %v449
  %949 = vmatprep.subr.bf16.mxu0 %v454
  %950 = vmatpush1.bf16.msra.mxu0 %v453
  %951 = vmatprep.subr.bf16.mxu0 %v458
  %952 = vmatpush1.bf16.msra.mxu0 %v457
  %953 = vmatprep.subr.bf16.mxu0 0
  %954 = vmatpush1.bf16.msra.mxu0 0
  %955 = vmatprep.subr.bf16.mxu0 0
  %956 = vmatpush1.bf16.msra.mxu0 0
  %957 = vmatprep.subr.bf16.mxu0 0
  %958 = vmatpush1.bf16.msra.mxu0 0
  %959 = vmatprep.subr.bf16.mxu0 0
  %960 = vmatpush1.bf16.msra.mxu0 0
  %961 = vmatprep.subr.bf16.mxu0 0
  %962 = vmatpush1.bf16.msra.mxu0 0
  %963 = vmatprep.subr.bf16.mxu0 0
  %964 = vmatpush1.bf16.msra.mxu0 0
  %965 = vmatprep.subr.bf16.mxu0 0
  %966 = vmatpush1.bf16.msra.mxu0 0
  %967 = vmatprep.subr.bf16.mxu0 0
  %968 = vmatpush1.bf16.msra.mxu0 0
  %969 = vmatprep.mubr.bf16.mxu0 0
  %970 = vmatmul.mubr.bf16.gmra.mrb[0].mxu0 %v936
  %v971 = vpop.f32.mrb[0].mxu0
  %v972 = vadd.f32 0.0, %v971
  %v973 = vpop.f32.mrb[0].mxu0
  %v974 = vadd.f32 0.0, %v973
  %v975 = vpop.f32.mrb[0].mxu0
  %v976 = vpop.f32.mrb[0].mxu0
  %977 = vdwg.mxu0
  %978 = vmatprep.subr.bf16.mxu0 %v432
  %979 = vmatpush1.bf16.msra.mxu0 %v431
  %980 = vmatprep.subr.bf16.mxu0 %v436
  %981 = vmatpush1.bf16.msra.mxu0 %v435
  %982 = vmatprep.subr.bf16.mxu0 %v440
  %983 = vmatpush1.bf16.msra.mxu0 %v439
  %984 = vmatprep.subr.bf16.mxu0 %v444
  %985 = vmatpush1.bf16.msra.mxu0 %v443
  %986 = vmatprep.subr.bf16.mxu0 %v448
  %987 = vmatpush1.bf16.msra.mxu0 %v447
  %988 = vmatprep.subr.bf16.mxu0 %v452
  %989 = vmatpush1.bf16.msra.mxu0 %v451
  %990 = vmatprep.subr.bf16.mxu0 %v456
  %991 = vmatpush1.bf16.msra.mxu0 %v455
  %992 = vmatprep.subr.bf16.mxu0 %v460
  %993 = vmatpush1.bf16.msra.mxu0 %v459
  %994 = vmatprep.subr.bf16.mxu0 0
  %995 = vmatpush1.bf16.msra.mxu0 0
  %996 = vmatprep.subr.bf16.mxu0 0
  %997 = vmatpush1.bf16.msra.mxu0 0
  %998 = vmatprep.subr.bf16.mxu0 0
  %999 = vmatpush1.bf16.msra.mxu0 0
  %1000 = vmatprep.subr.bf16.mxu0 0
  %1001 = vmatpush1.bf16.msra.mxu0 0
  %1002 = vmatprep.subr.bf16.mxu0 0
  %1003 = vmatpush1.bf16.msra.mxu0 0
  %1004 = vmatprep.subr.bf16.mxu0 0
  %1005 = vmatpush1.bf16.msra.mxu0 0
  %1006 = vmatprep.subr.bf16.mxu0 0
  %1007 = vmatpush1.bf16.msra.mxu0 0
  %1008 = vmatprep.subr.bf16.mxu0 0
  %1009 = vmatpush1.bf16.msra.mxu0 0
  %1010 = vmatprep.mubr.bf16.mxu0 0
  %1011 = vmatmul.mubr.bf16.gmra.mrb[0].mxu0 %v936
  %v1012 = vpop.f32.mrb[0].mxu0
  %v1013 = vadd.f32 0.0, %v1012
  %v1014 = vpop.f32.mrb[0].mxu0
  %v1015 = vadd.f32 0.0, %v1014
  %v1016 = vpop.f32.mrb[0].mxu0
  %v1017 = vpop.f32.mrb[0].mxu0
  %1018 = vdwg.mxu0
  %v1019 = vadd.f32 %v242, %v972
  %v1020 = vadd.f32 %v244, %v974
  %v1021 = vadd.f32 %v315, %v1013
  %v1022 = vadd.f32 %v317, %v1015
  %v1023 = vxor.u32 %v1019, 2147483648
  %v1024 = vmul.f32 %v1023, 1.442695
  %v1025 = vpow.pop %v1024
  %v1026 = vadd.f32 %v1025, 1.0
  %v1027 = vrcp.pop %v1026
  %v1028 = vmul.f32 1.0, %v1027
  %v1029 = vxor.u32 %v1020, 2147483648
  %v1030 = vmul.f32 %v1029, 1.442695
  %v1031 = vpow.pop %v1030
  %v1032 = vadd.f32 %v1031, 1.0
  %v1033 = vrcp.pop %v1032
  %v1034 = vmul.f32 1.0, %v1033
  %v1035 = vtanh.pop %v1021
  %v1036 = vxor.u32 %v1022, 2147483648
  %v1037 = vmul.f32 %v1036, 1.442695
  %v1038 = vpow.pop %v1037
  %v1039 = vadd.f32 %v1038, 1.0
  %v1040 = vrcp.pop %v1039
  %v1041 = vmul.f32 1.0, %v1040
  %v1042 = vmul.f32 %v1034, %v933
  %v1043 = vmul.f32 %v1028, %v1035
  %v1044 = vadd.f32 %v1042, %v1043
  %v1045 = vtanh.pop %v1044
  %v1046 = vmul.f32 %v1041, %v1045
  %v1047 = vpack.c.bf16 %v1046, %v1046
  %1048 = vmatprep.subr.bf16.mxu0 %v430
  %1049 = vmatpush1.bf16.msra.mxu0 %v429
  %1050 = vmatprep.subr.bf16.mxu0 %v434
  %1051 = vmatpush1.bf16.msra.mxu0 %v433
  %1052 = vmatprep.subr.bf16.mxu0 %v438
  %1053 = vmatpush1.bf16.msra.mxu0 %v437
  %1054 = vmatprep.subr.bf16.mxu0 %v442
  %1055 = vmatpush1.bf16.msra.mxu0 %v441
  %1056 = vmatprep.subr.bf16.mxu0 %v446
  %1057 = vmatpush1.bf16.msra.mxu0 %v445
  %1058 = vmatprep.subr.bf16.mxu0 %v450
  %1059 = vmatpush1.bf16.msra.mxu0 %v449
  %1060 = vmatprep.subr.bf16.mxu0 %v454
  %1061 = vmatpush1.bf16.msra.mxu0 %v453
  %1062 = vmatprep.subr.bf16.mxu0 %v458
  %1063 = vmatpush1.bf16.msra.mxu0 %v457
  %1064 = vmatprep.subr.bf16.mxu0 0
  %1065 = vmatpush1.bf16.msra.mxu0 0
  %1066 = vmatprep.subr.bf16.mxu0 0
  %1067 = vmatpush1.bf16.msra.mxu0 0
  %1068 = vmatprep.subr.bf16.mxu0 0
  %1069 = vmatpush1.bf16.msra.mxu0 0
  %1070 = vmatprep.subr.bf16.mxu0 0
  %1071 = vmatpush1.bf16.msra.mxu0 0
  %1072 = vmatprep.subr.bf16.mxu0 0
  %1073 = vmatpush1.bf16.msra.mxu0 0
  %1074 = vmatprep.subr.bf16.mxu0 0
  %1075 = vmatpush1.bf16.msra.mxu0 0
  %1076 = vmatprep.subr.bf16.mxu0 0
  %1077 = vmatpush1.bf16.msra.mxu0 0
  %1078 = vmatprep.subr.bf16.mxu0 0
  %1079 = vmatpush1.bf16.msra.mxu0 0
  %1080 = vmatprep.mubr.bf16.mxu0 0
  %1081 = vmatmul.mubr.bf16.gmra.mrb[0].mxu0 %v1047
  %v1082 = vpop.f32.mrb[0].mxu0
  %v1083 = vadd.f32 0.0, %v1082
  %v1084 = vpop.f32.mrb[0].mxu0
  %v1085 = vadd.f32 0.0, %v1084
  %v1086 = vpop.f32.mrb[0].mxu0
  %v1087 = vpop.f32.mrb[0].mxu0
  %1088 = vdwg.mxu0
  %1089 = vmatprep.subr.bf16.mxu0 %v432
  %1090 = vmatpush1.bf16.msra.mxu0 %v431
  %1091 = vmatprep.subr.bf16.mxu0 %v436
  %1092 = vmatpush1.bf16.msra.mxu0 %v435
  %1093 = vmatprep.subr.bf16.mxu0 %v440
  %1094 = vmatpush1.bf16.msra.mxu0 %v439
  %1095 = vmatprep.subr.bf16.mxu0 %v444
  %1096 = vmatpush1.bf16.msra.mxu0 %v443
  %1097 = vmatprep.subr.bf16.mxu0 %v448
  %1098 = vmatpush1.bf16.msra.mxu0 %v447
  %1099 = vmatprep.subr.bf16.mxu0 %v452
  %1100 = vmatpush1.bf16.msra.mxu0 %v451
  %1101 = vmatprep.subr.bf16.mxu0 %v456
  %1102 = vmatpush1.bf16.msra.mxu0 %v455
  %1103 = vmatprep.subr.bf16.mxu0 %v460
  %1104 = vmatpush1.bf16.msra.mxu0 %v459
  %1105 = vmatprep.subr.bf16.mxu0 0
  %1106 = vmatpush1.bf16.msra.mxu0 0
  %1107 = vmatprep.subr.bf16.mxu0 0
  %1108 = vmatpush1.bf16.msra.mxu0 0
  %1109 = vmatprep.subr.bf16.mxu0 0
  %1110 = vmatpush1.bf16.msra.mxu0 0
  %1111 = vmatprep.subr.bf16.mxu0 0
  %1112 = vmatpush1.bf16.msra.mxu0 0
  %1113 = vmatprep.subr.bf16.mxu0 0
  %1114 = vmatpush1.bf16.msra.mxu0 0
  %1115 = vmatprep.subr.bf16.mxu0 0
  %1116 = vmatpush1.bf16.msra.mxu0 0
  %1117 = vmatprep.subr.bf16.mxu0 0
  %1118 = vmatpush1.bf16.msra.mxu0 0
  %1119 = vmatprep.subr.bf16.mxu0 0
  %1120 = vmatpush1.bf16.msra.mxu0 0
  %1121 = vmatprep.mubr.bf16.mxu0 0
  %1122 = vmatmul.mubr.bf16.gmra.mrb[0].mxu0 %v1047
  %v1123 = vpop.f32.mrb[0].mxu0
  %v1124 = vadd.f32 0.0, %v1123
  %v1125 = vpop.f32.mrb[0].mxu0
  %v1126 = vadd.f32 0.0, %v1125
  %v1127 = vpop.f32.mrb[0].mxu0
  %v1128 = vpop.f32.mrb[0].mxu0
  %1129 = vdwg.mxu0
  %v1130 = vadd.f32 %v246, %v1083
  %v1131 = vadd.f32 %v248, %v1085
  %v1132 = vadd.f32 %v319, %v1124
  %v1133 = vadd.f32 %v321, %v1126
  %v1134 = vxor.u32 %v1130, 2147483648
  %v1135 = vmul.f32 %v1134, 1.442695
  %v1136 = vpow.pop %v1135
  %v1137 = vadd.f32 %v1136, 1.0
  %v1138 = vrcp.pop %v1137
  %v1139 = vmul.f32 1.0, %v1138
  %v1140 = vxor.u32 %v1131, 2147483648
  %v1141 = vmul.f32 %v1140, 1.442695
  %v1142 = vpow.pop %v1141
  %v1143 = vadd.f32 %v1142, 1.0
  %v1144 = vrcp.pop %v1143
  %v1145 = vmul.f32 1.0, %v1144
  %v1146 = vtanh.pop %v1132
  %v1147 = vxor.u32 %v1133, 2147483648
  %v1148 = vmul.f32 %v1147, 1.442695
  %v1149 = vpow.pop %v1148
  %v1150 = vadd.f32 %v1149, 1.0
  %v1151 = vrcp.pop %v1150
  %v1152 = vmul.f32 1.0, %v1151
  %v1153 = vmul.f32 %v1145, %v1044
  %v1154 = vmul.f32 %v1139, %v1146
  %v1155 = vadd.f32 %v1153, %v1154
  %v1156 = vtanh.pop %v1155
  %v1157 = vmul.f32 %v1152, %v1156
  %v1158 = vpack.c.bf16 %v1157, %v1157
  %1159 = vmatprep.subr.bf16.mxu0 %v430
  %1160 = vmatpush1.bf16.msra.mxu0 %v429
  %1161 = vmatprep.subr.bf16.mxu0 %v434
  %1162 = vmatpush1.bf16.msra.mxu0 %v433
  %1163 = vmatprep.subr.bf16.mxu0 %v438
  %1164 = vmatpush1.bf16.msra.mxu0 %v437
  %1165 = vmatprep.subr.bf16.mxu0 %v442
  %1166 = vmatpush1.bf16.msra.mxu0 %v441
  %1167 = vmatprep.subr.bf16.mxu0 %v446
  %1168 = vmatpush1.bf16.msra.mxu0 %v445
  %1169 = vmatprep.subr.bf16.mxu0 %v450
  %1170 = vmatpush1.bf16.msra.mxu0 %v449
  %1171 = vmatprep.subr.bf16.mxu0 %v454
  %1172 = vmatpush1.bf16.msra.mxu0 %v453
  %1173 = vmatprep.subr.bf16.mxu0 %v458
  %1174 = vmatpush1.bf16.msra.mxu0 %v457
  %1175 = vmatprep.subr.bf16.mxu0 0
  %1176 = vmatpush1.bf16.msra.mxu0 0
  %1177 = vmatprep.subr.bf16.mxu0 0
  %1178 = vmatpush1.bf16.msra.mxu0 0
  %1179 = vmatprep.subr.bf16.mxu0 0
  %1180 = vmatpush1.bf16.msra.mxu0 0
  %1181 = vmatprep.subr.bf16.mxu0 0
  %1182 = vmatpush1.bf16.msra.mxu0 0
  %1183 = vmatprep.subr.bf16.mxu0 0
  %1184 = vmatpush1.bf16.msra.mxu0 0
  %1185 = vmatprep.subr.bf16.mxu0 0
  %1186 = vmatpush1.bf16.msra.mxu0 0
  %1187 = vmatprep.subr.bf16.mxu0 0
  %1188 = vmatpush1.bf16.msra.mxu0 0
  %1189 = vmatprep.subr.bf16.mxu0 0
  %1190 = vmatpush1.bf16.msra.mxu0 0
  %1191 = vmatprep.mubr.bf16.mxu0 0
  %1192 = vmatmul.mubr.bf16.gmra.mrb[0].mxu0 %v1158
  %v1193 = vpop.f32.mrb[0].mxu0
  %v1194 = vadd.f32 0.0, %v1193
  %v1195 = vpop.f32.mrb[0].mxu0
  %v1196 = vadd.f32 0.0, %v1195
  %v1197 = vpop.f32.mrb[0].mxu0
  %v1198 = vpop.f32.mrb[0].mxu0
  %1199 = vdwg.mxu0
  %1200 = vmatprep.subr.bf16.mxu0 %v432
  %1201 = vmatpush1.bf16.msra.mxu0 %v431
  %1202 = vmatprep.subr.bf16.mxu0 %v436
  %1203 = vmatpush1.bf16.msra.mxu0 %v435
  %1204 = vmatprep.subr.bf16.mxu0 %v440
  %1205 = vmatpush1.bf16.msra.mxu0 %v439
  %1206 = vmatprep.subr.bf16.mxu0 %v444
  %1207 = vmatpush1.bf16.msra.mxu0 %v443
  %1208 = vmatprep.subr.bf16.mxu0 %v448
  %1209 = vmatpush1.bf16.msra.mxu0 %v447
  %1210 = vmatprep.subr.bf16.mxu0 %v452
  %1211 = vmatpush1.bf16.msra.mxu0 %v451
  %1212 = vmatprep.subr.bf16.mxu0 %v456
  %1213 = vmatpush1.bf16.msra.mxu0 %v455
  %1214 = vmatprep.subr.bf16.mxu0 %v460
  %1215 = vmatpush1.bf16.msra.mxu0 %v459
  %1216 = vmatprep.subr.bf16.mxu0 0
  %1217 = vmatpush1.bf16.msra.mxu0 0
  %1218 = vmatprep.subr.bf16.mxu0 0
  %1219 = vmatpush1.bf16.msra.mxu0 0
  %1220 = vmatprep.subr.bf16.mxu0 0
  %1221 = vmatpush1.bf16.msra.mxu0 0
  %1222 = vmatprep.subr.bf16.mxu0 0
  %1223 = vmatpush1.bf16.msra.mxu0 0
  %1224 = vmatprep.subr.bf16.mxu0 0
  %1225 = vmatpush1.bf16.msra.mxu0 0
  %1226 = vmatprep.subr.bf16.mxu0 0
  %1227 = vmatpush1.bf16.msra.mxu0 0
  %1228 = vmatprep.subr.bf16.mxu0 0
  %1229 = vmatpush1.bf16.msra.mxu0 0
  %1230 = vmatprep.subr.bf16.mxu0 0
  %1231 = vmatpush1.bf16.msra.mxu0 0
  %1232 = vmatprep.mubr.bf16.mxu0 0
  %1233 = vmatmul.mubr.bf16.gmra.mrb[0].mxu0 %v1158
  %v1234 = vpop.f32.mrb[0].mxu0
  %v1235 = vadd.f32 0.0, %v1234
  %v1236 = vpop.f32.mrb[0].mxu0
  %v1237 = vadd.f32 0.0, %v1236
  %v1238 = vpop.f32.mrb[0].mxu0
  %v1239 = vpop.f32.mrb[0].mxu0
  %1240 = vdwg.mxu0
  %v1241 = vadd.f32 %v252, %v1194
  %v1242 = vadd.f32 %v254, %v1196
  %v1243 = vadd.f32 %v325, %v1235
  %v1244 = vadd.f32 %v327, %v1237
  %v1245 = vxor.u32 %v1241, 2147483648
  %v1246 = vmul.f32 %v1245, 1.442695
  %v1247 = vpow.pop %v1246
  %v1248 = vadd.f32 %v1247, 1.0
  %v1249 = vrcp.pop %v1248
  %v1250 = vmul.f32 1.0, %v1249
  %v1251 = vxor.u32 %v1242, 2147483648
  %v1252 = vmul.f32 %v1251, 1.442695
  %v1253 = vpow.pop %v1252
  %v1254 = vadd.f32 %v1253, 1.0
  %v1255 = vrcp.pop %v1254
  %v1256 = vmul.f32 1.0, %v1255
  %v1257 = vtanh.pop %v1243
  %v1258 = vxor.u32 %v1244, 2147483648
  %v1259 = vmul.f32 %v1258, 1.442695
  %v1260 = vpow.pop %v1259
  %v1261 = vadd.f32 %v1260, 1.0
  %v1262 = vrcp.pop %v1261
  %v1263 = vmul.f32 1.0, %v1262
  %v1264 = vmul.f32 %v1256, %v1155
  %v1265 = vmul.f32 %v1250, %v1257
  %v1266 = vadd.f32 %v1264, %v1265
  %v1267 = vtanh.pop %v1266
  %v1268 = vmul.f32 %v1263, %v1267
  %v1269 = vpack.c.bf16 %v1268, %v1268
  %1270 = vmatprep.subr.bf16.mxu0 %v430
  %1271 = vmatpush1.bf16.msra.mxu0 %v429
  %1272 = vmatprep.subr.bf16.mxu0 %v434
  %1273 = vmatpush1.bf16.msra.mxu0 %v433
  %1274 = vmatprep.subr.bf16.mxu0 %v438
  %1275 = vmatpush1.bf16.msra.mxu0 %v437
  %1276 = vmatprep.subr.bf16.mxu0 %v442
  %1277 = vmatpush1.bf16.msra.mxu0 %v441
  %1278 = vmatprep.subr.bf16.mxu0 %v446
  %1279 = vmatpush1.bf16.msra.mxu0 %v445
  %1280 = vmatprep.subr.bf16.mxu0 %v450
  %1281 = vmatpush1.bf16.msra.mxu0 %v449
  %1282 = vmatprep.subr.bf16.mxu0 %v454
  %1283 = vmatpush1.bf16.msra.mxu0 %v453
  %1284 = vmatprep.subr.bf16.mxu0 %v458
  %1285 = vmatpush1.bf16.msra.mxu0 %v457
  %1286 = vmatprep.subr.bf16.mxu0 0
  %1287 = vmatpush1.bf16.msra.mxu0 0
  %1288 = vmatprep.subr.bf16.mxu0 0
  %1289 = vmatpush1.bf16.msra.mxu0 0
  %1290 = vmatprep.subr.bf16.mxu0 0
  %1291 = vmatpush1.bf16.msra.mxu0 0
  %1292 = vmatprep.subr.bf16.mxu0 0
  %1293 = vmatpush1.bf16.msra.mxu0 0
  %1294 = vmatprep.subr.bf16.mxu0 0
  %1295 = vmatpush1.bf16.msra.mxu0 0
  %1296 = vmatprep.subr.bf16.mxu0 0
  %1297 = vmatpush1.bf16.msra.mxu0 0
  %1298 = vmatprep.subr.bf16.mxu0 0
  %1299 = vmatpush1.bf16.msra.mxu0 0
  %1300 = vmatprep.subr.bf16.mxu0 0
  %1301 = vmatpush1.bf16.msra.mxu0 0
  %1302 = vmatprep.mubr.bf16.mxu0 0
  %1303 = vmatmul.mubr.bf16.gmra.mrb[0].mxu0 %v1269
  %v1304 = vpop.f32.mrb[0].mxu0
  %v1305 = vadd.f32 0.0, %v1304
  %v1306 = vpop.f32.mrb[0].mxu0
  %v1307 = vadd.f32 0.0, %v1306
  %v1308 = vpop.f32.mrb[0].mxu0
  %v1309 = vpop.f32.mrb[0].mxu0
  %1310 = vdwg.mxu0
  %1311 = vmatprep.subr.bf16.mxu0 %v432
  %1312 = vmatpush1.bf16.msra.mxu0 %v431
  %1313 = vmatprep.subr.bf16.mxu0 %v436
  %1314 = vmatpush1.bf16.msra.mxu0 %v435
  %1315 = vmatprep.subr.bf16.mxu0 %v440
  %1316 = vmatpush1.bf16.msra.mxu0 %v439
  %1317 = vmatprep.subr.bf16.mxu0 %v444
  %1318 = vmatpush1.bf16.msra.mxu0 %v443
  %1319 = vmatprep.subr.bf16.mxu0 %v448
  %1320 = vmatpush1.bf16.msra.mxu0 %v447
  %1321 = vmatprep.subr.bf16.mxu0 %v452
  %1322 = vmatpush1.bf16.msra.mxu0 %v451
  %1323 = vmatprep.subr.bf16.mxu0 %v456
  %1324 = vmatpush1.bf16.msra.mxu0 %v455
  %1325 = vmatprep.subr.bf16.mxu0 %v460
  %1326 = vmatpush1.bf16.msra.mxu0 %v459
  %1327 = vmatprep.subr.bf16.mxu0 0
  %1328 = vmatpush1.bf16.msra.mxu0 0
  %1329 = vmatprep.subr.bf16.mxu0 0
  %1330 = vmatpush1.bf16.msra.mxu0 0
  %1331 = vmatprep.subr.bf16.mxu0 0
  %1332 = vmatpush1.bf16.msra.mxu0 0
  %1333 = vmatprep.subr.bf16.mxu0 0
  %1334 = vmatpush1.bf16.msra.mxu0 0
  %1335 = vmatprep.subr.bf16.mxu0 0
  %1336 = vmatpush1.bf16.msra.mxu0 0
  %1337 = vmatprep.subr.bf16.mxu0 0
  %1338 = vmatpush1.bf16.msra.mxu0 0
  %1339 = vmatprep.subr.bf16.mxu0 0
  %1340 = vmatpush1.bf16.msra.mxu0 0
  %1341 = vmatprep.subr.bf16.mxu0 0
  %1342 = vmatpush1.bf16.msra.mxu0 0
  %1343 = vmatprep.mubr.bf16.mxu0 0
  %1344 = vmatmul.mubr.bf16.gmra.mrb[0].mxu0 %v1269
  %v1345 = vpop.f32.mrb[0].mxu0
  %v1346 = vadd.f32 0.0, %v1345
  %v1347 = vpop.f32.mrb[0].mxu0
  %v1348 = vadd.f32 0.0, %v1347
  %v1349 = vpop.f32.mrb[0].mxu0
  %v1350 = vpop.f32.mrb[0].mxu0
  %1351 = vdwg.mxu0
  %v1352 = vadd.f32 %v256, %v1305
  %v1353 = vadd.f32 %v258, %v1307
  %v1354 = vadd.f32 %v329, %v1346
  %v1355 = vadd.f32 %v331, %v1348
  %v1356 = vxor.u32 %v1352, 2147483648
  %v1357 = vmul.f32 %v1356, 1.442695
  %v1358 = vpow.pop %v1357
  %v1359 = vadd.f32 %v1358, 1.0
  %v1360 = vrcp.pop %v1359
  %v1361 = vmul.f32 1.0, %v1360
  %v1362 = vxor.u32 %v1353, 2147483648
  %v1363 = vmul.f32 %v1362, 1.442695
  %v1364 = vpow.pop %v1363
  %v1365 = vadd.f32 %v1364, 1.0
  %v1366 = vrcp.pop %v1365
  %v1367 = vmul.f32 1.0, %v1366
  %v1368 = vtanh.pop %v1354
  %v1369 = vxor.u32 %v1355, 2147483648
  %v1370 = vmul.f32 %v1369, 1.442695
  %v1371 = vpow.pop %v1370
  %v1372 = vadd.f32 %v1371, 1.0
  %v1373 = vrcp.pop %v1372
  %v1374 = vmul.f32 1.0, %v1373
  %v1375 = vmul.f32 %v1367, %v1266
  %v1376 = vmul.f32 %v1361, %v1368
  %v1377 = vadd.f32 %v1375, %v1376
  %v1378 = vtanh.pop %v1377
  %v1379 = vmul.f32 %v1374, %v1378
  %v1380 = vpack.c.bf16 %v1379, %v1379
  %v1381 = vld [vmem:[%s4] sm:$0xff]
  %v1382 = vld [vmem:[%s4 + $0x8] sm:$0xff]
  %v1383 = vld [vmem:[%s4 + $0x10] sm:$0xff]
  %v1384 = vld [vmem:[%s4 + $0x18] sm:$0xff]
  %v1385 = vld [vmem:[%s4 + $0x20] sm:$0xff]
  %v1386 = vld [vmem:[%s4 + $0x28] sm:$0xff]
  %v1387 = vld [vmem:[%s4 + $0x30] sm:$0xff]
  %v1388 = vld [vmem:[%s4 + $0x38] sm:$0xff]
  %v1389 = vld [vmem:[%s4 + $0x40] sm:$0xff]
  %v1390 = vld [vmem:[%s4 + $0x48] sm:$0xff]
  %v1391 = vld [vmem:[%s4 + $0x50] sm:$0xff]
  %v1392 = vld [vmem:[%s4 + $0x58] sm:$0xff]
  %v1393 = vld [vmem:[%s4 + $0x60] sm:$0xff]
  %v1394 = vld [vmem:[%s4 + $0x68] sm:$0xff]
  %v1395 = vld [vmem:[%s4 + $0x70] sm:$0xff]
  %v1396 = vld [vmem:[%s4 + $0x78] sm:$0xff]
  %v1397 = vld [vmem:[%s4 + $0x80] sm:$0xff]
  %v1398 = vld [vmem:[%s4 + $0x88] sm:$0xff]
  %v1399 = vld [vmem:[%s4 + $0x90] sm:$0xff]
  %v1400 = vld [vmem:[%s4 + $0x98] sm:$0xff]
  %v1401 = vld [vmem:[%s4 + $0xa0] sm:$0xff]
  %v1402 = vld [vmem:[%s4 + $0xa8] sm:$0xff]
  %v1403 = vld [vmem:[%s4 + $0xb0] sm:$0xff]
  %v1404 = vld [vmem:[%s4 + $0xb8] sm:$0xff]
  %v1405 = vld [vmem:[%s4 + $0xc0] sm:$0xff]
  %v1406 = vld [vmem:[%s4 + $0xc8] sm:$0xff]
  %v1407 = vld [vmem:[%s4 + $0xd0] sm:$0xff]
  %v1408 = vld [vmem:[%s4 + $0xd8] sm:$0xff]
  %v1409 = vld [vmem:[%s4 + $0xe0] sm:$0xff]
  %v1410 = vld [vmem:[%s4 + $0xe8] sm:$0xff]
  %v1411 = vld [vmem:[%s4 + $0xf0] sm:$0xff]
  %v1412 = vld [vmem:[%s4 + $0xf8] sm:$0xff]
  %v1413 = vld [vmem:[%s5] sm:$0xff]
  %v1414 = vld [vmem:[%s5 + $0x8] sm:$0xff]
  %v1415 = vld [vmem:[%s5 + $0x10] sm:$0xff]
  %v1416 = vld [vmem:[%s5 + $0x18] sm:$0xff]
  %v1417 = vld [vmem:[%s5 + $0x20] sm:$0xff]
  %v1418 = vld [vmem:[%s5 + $0x28] sm:$0xff]
  %v1419 = vld [vmem:[%s5 + $0x30] sm:$0xff]
  %v1420 = vld [vmem:[%s5 + $0x38] sm:$0xff]
  %v1421 = vld [vmem:[%s5 + $0x40] sm:$0xff]
  %v1422 = vld [vmem:[%s5 + $0x48] sm:$0xff]
  %v1423 = vld [vmem:[%s5 + $0x50] sm:$0xff]
  %v1424 = vld [vmem:[%s5 + $0x58] sm:$0xff]
  %v1425 = vld [vmem:[%s5 + $0x60] sm:$0xff]
  %v1426 = vld [vmem:[%s5 + $0x68] sm:$0xff]
  %v1427 = vld [vmem:[%s5 + $0x70] sm:$0xff]
  %v1428 = vld [vmem:[%s5 + $0x78] sm:$0xff]
  %v1429 = vld [vmem:[%s5 + $0x80] sm:$0xff]
  %v1430 = vld [vmem:[%s5 + $0x88] sm:$0xff]
  %v1431 = vld [vmem:[%s5 + $0x90] sm:$0xff]
  %v1432 = vld [vmem:[%s5 + $0x98] sm:$0xff]
  %v1433 = vld [vmem:[%s5 + $0xa0] sm:$0xff]
  %v1434 = vld [vmem:[%s5 + $0xa8] sm:$0xff]
  %v1435 = vld [vmem:[%s5 + $0xb0] sm:$0xff]
  %v1436 = vld [vmem:[%s5 + $0xb8] sm:$0xff]
  %v1437 = vld [vmem:[%s5 + $0xc0] sm:$0xff]
  %v1438 = vld [vmem:[%s5 + $0xc8] sm:$0xff]
  %v1439 = vld [vmem:[%s5 + $0xd0] sm:$0xff]
  %v1440 = vld [vmem:[%s5 + $0xd8] sm:$0xff]
  %v1441 = vld [vmem:[%s5 + $0xe0] sm:$0xff]
  %v1442 = vld [vmem:[%s5 + $0xe8] sm:$0xff]
  %v1443 = vld [vmem:[%s5 + $0xf0] sm:$0xff]
  %v1444 = vld [vmem:[%s5 + $0xf8] sm:$0xff]
  %v1445 = vld [vmem:[%s6] sm:$0xf]
  %v1447 = vlaneseq
  %v1448 = vshrl.u32 %v1447, 7
  %v1449 = vsub.s32 0, %v1448
  %v1450 = vrot.slane %v1445, %v1449
  %v1451 = vlaneseq
  %v1452 = vshrl.u32 %v1451, 7
  %v1453 = vsub.s32 1, %v1452
  %v1454 = vrot.slane %v1445, %v1453
  %v1455 = vlaneseq
  %v1456 = vshrl.u32 %v1455, 7
  %v1457 = vsub.s32 2, %v1456
  %v1458 = vrot.slane %v1445, %v1457
  %v1459 = vlaneseq
  %v1460 = vshrl.u32 %v1459, 7
  %v1461 = vsub.s32 3, %v1460
  %v1462 = vrot.slane %v1445, %v1461
  %v1499 = vunpack.c.l.b16 %v1381
  %v1500 = vunpack.c.h.b16 %v1381
  %v1501 = vunpack.c.l.b16 %v1382
  %v1502 = vunpack.c.h.b16 %v1382
  %v1503 = vunpack.c.l.b16 %v1383
  %v1504 = vunpack.c.h.b16 %v1383
  %v1505 = vunpack.c.l.b16 %v1384
  %v1506 = vunpack.c.h.b16 %v1384
  %v1507 = vunpack.c.l.b16 %v1385
  %v1508 = vunpack.c.h.b16 %v1385
  %v1509 = vunpack.c.l.b16 %v1386
  %v1510 = vunpack.c.h.b16 %v1386
  %v1511 = vunpack.c.l.b16 %v1387
  %v1512 = vunpack.c.h.b16 %v1387
  %v1513 = vunpack.c.l.b16 %v1388
  %v1514 = vunpack.c.h.b16 %v1388
  %v1515 = vunpack.c.l.b16 %v1389
  %v1516 = vunpack.c.h.b16 %v1389
  %v1517 = vunpack.c.l.b16 %v1390
  %v1518 = vunpack.c.h.b16 %v1390
  %v1519 = vunpack.c.l.b16 %v1391
  %v1520 = vunpack.c.h.b16 %v1391
  %v1521 = vunpack.c.l.b16 %v1392
  %v1522 = vunpack.c.h.b16 %v1392
  %v1523 = vunpack.c.l.b16 %v1393
  %v1524 = vunpack.c.h.b16 %v1393
  %v1525 = vunpack.c.l.b16 %v1394
  %v1526 = vunpack.c.h.b16 %v1394
  %v1527 = vunpack.c.l.b16 %v1395
  %v1528 = vunpack.c.h.b16 %v1395
  %v1529 = vunpack.c.l.b16 %v1396
  %v1530 = vunpack.c.h.b16 %v1396
  %v1531 = vunpack.c.l.b16 %v1397
  %v1532 = vunpack.c.h.b16 %v1397
  %v1533 = vunpack.c.l.b16 %v1398
  %v1534 = vunpack.c.h.b16 %v1398
  %v1535 = vunpack.c.l.b16 %v1399
  %v1536 = vunpack.c.h.b16 %v1399
  %v1537 = vunpack.c.l.b16 %v1400
  %v1538 = vunpack.c.h.b16 %v1400
  %v1539 = vunpack.c.l.b16 %v1401
  %v1540 = vunpack.c.h.b16 %v1401
  %v1541 = vunpack.c.l.b16 %v1402
  %v1542 = vunpack.c.h.b16 %v1402
  %v1543 = vunpack.c.l.b16 %v1403
  %v1544 = vunpack.c.h.b16 %v1403
  %v1545 = vunpack.c.l.b16 %v1404
  %v1546 = vunpack.c.h.b16 %v1404
  %v1547 = vunpack.c.l.b16 %v1405
  %v1548 = vunpack.c.h.b16 %v1405
  %v1549 = vunpack.c.l.b16 %v1406
  %v1550 = vunpack.c.h.b16 %v1406
  %v1551 = vunpack.c.l.b16 %v1407
  %v1552 = vunpack.c.h.b16 %v1407
  %v1553 = vunpack.c.l.b16 %v1408
  %v1554 = vunpack.c.h.b16 %v1408
  %v1555 = vunpack.c.l.b16 %v1409
  %v1556 = vunpack.c.h.b16 %v1409
  %v1557 = vunpack.c.l.b16 %v1410
  %v1558 = vunpack.c.h.b16 %v1410
  %v1559 = vunpack.c.l.b16 %v1411
  %v1560 = vunpack.c.h.b16 %v1411
  %v1561 = vunpack.c.l.b16 %v1412
  %v1562 = vunpack.c.h.b16 %v1412
  %v1563 = vpack.c.b16 %v1503, %v1499
  %v1564 = vpack.c.b16 %v1504, %v1500
  %v1565 = vpack.c.b16 %v1505, %v1501
  %v1566 = vpack.c.b16 %v1506, %v1502
  %v1567 = vpack.c.b16 %v1511, %v1507
  %v1568 = vpack.c.b16 %v1512, %v1508
  %v1569 = vpack.c.b16 %v1513, %v1509
  %v1570 = vpack.c.b16 %v1514, %v1510
  %v1571 = vpack.c.b16 %v1519, %v1515
  %v1572 = vpack.c.b16 %v1520, %v1516
  %v1573 = vpack.c.b16 %v1521, %v1517
  %v1574 = vpack.c.b16 %v1522, %v1518
  %v1575 = vpack.c.b16 %v1527, %v1523
  %v1576 = vpack.c.b16 %v1528, %v1524
  %v1577 = vpack.c.b16 %v1529, %v1525
  %v1578 = vpack.c.b16 %v1530, %v1526
  %v1579 = vpack.c.b16 %v1535, %v1531
  %v1580 = vpack.c.b16 %v1536, %v1532
  %v1581 = vpack.c.b16 %v1537, %v1533
  %v1582 = vpack.c.b16 %v1538, %v1534
  %v1583 = vpack.c.b16 %v1543, %v1539
  %v1584 = vpack.c.b16 %v1544, %v1540
  %v1585 = vpack.c.b16 %v1545, %v1541
  %v1586 = vpack.c.b16 %v1546, %v1542
  %v1587 = vpack.c.b16 %v1551, %v1547
  %v1588 = vpack.c.b16 %v1552, %v1548
  %v1589 = vpack.c.b16 %v1553, %v1549
  %v1590 = vpack.c.b16 %v1554, %v1550
  %v1591 = vpack.c.b16 %v1559, %v1555
  %v1592 = vpack.c.b16 %v1560, %v1556
  %v1593 = vpack.c.b16 %v1561, %v1557
  %v1594 = vpack.c.b16 %v1562, %v1558
  %1627 = vmatprep.subr.bf16.mxu0 %v1564
  %1628 = vmatpush1.bf16.msra.mxu0 %v1563
  %1629 = vmatprep.subr.bf16.mxu0 %v1568
  %1630 = vmatpush1.bf16.msra.mxu0 %v1567
  %1631 = vmatprep.subr.bf16.mxu0 %v1572
  %1632 = vmatpush1.bf16.msra.mxu0 %v1571
  %1633 = vmatprep.subr.bf16.mxu0 %v1576
  %1634 = vmatpush1.bf16.msra.mxu0 %v1575
  %1635 = vmatprep.subr.bf16.mxu0 %v1580
  %1636 = vmatpush1.bf16.msra.mxu0 %v1579
  %1637 = vmatprep.subr.bf16.mxu0 %v1584
  %1638 = vmatpush1.bf16.msra.mxu0 %v1583
  %1639 = vmatprep.subr.bf16.mxu0 %v1588
  %1640 = vmatpush1.bf16.msra.mxu0 %v1587
  %1641 = vmatprep.subr.bf16.mxu0 %v1592
  %1642 = vmatpush1.bf16.msra.mxu0 %v1591
  %1643 = vmatprep.subr.bf16.mxu0 0
  %1644 = vmatpush1.bf16.msra.mxu0 0
  %1645 = vmatprep.subr.bf16.mxu0 0
  %1646 = vmatpush1.bf16.msra.mxu0 0
  %1647 = vmatprep.subr.bf16.mxu0 0
  %1648 = vmatpush1.bf16.msra.mxu0 0
  %1649 = vmatprep.subr.bf16.mxu0 0
  %1650 = vmatpush1.bf16.msra.mxu0 0
  %1651 = vmatprep.subr.bf16.mxu0 0
  %1652 = vmatpush1.bf16.msra.mxu0 0
  %1653 = vmatprep.subr.bf16.mxu0 0
  %1654 = vmatpush1.bf16.msra.mxu0 0
  %1655 = vmatprep.subr.bf16.mxu0 0
  %1656 = vmatpush1.bf16.msra.mxu0 0
  %1657 = vmatprep.subr.bf16.mxu0 0
  %1658 = vmatpush1.bf16.msra.mxu0 0
  %1659 = vmatprep.mubr.bf16.mxu0 0
  %1660 = vmatmul.mubr.bf16.gmra.mrb[0].mxu0 %v603
  %v1661 = vpop.f32.mrb[0].mxu0
  %v1662 = vadd.f32 %v1450, %v1661
  %v1663 = vpop.f32.mrb[0].mxu0
  %v1664 = vadd.f32 %v1454, %v1663
  %v1665 = vpop.f32.mrb[0].mxu0
  %v1666 = vpop.f32.mrb[0].mxu0
  %1667 = vdwg.mxu0
  %1668 = vmatprep.subr.bf16.mxu0 %v1566
  %1669 = vmatpush1.bf16.msra.mxu0 %v1565
  %1670 = vmatprep.subr.bf16.mxu0 %v1570
  %1671 = vmatpush1.bf16.msra.mxu0 %v1569
  %1672 = vmatprep.subr.bf16.mxu0 %v1574
  %1673 = vmatpush1.bf16.msra.mxu0 %v1573
  %1674 = vmatprep.subr.bf16.mxu0 %v1578
  %1675 = vmatpush1.bf16.msra.mxu0 %v1577
  %1676 = vmatprep.subr.bf16.mxu0 %v1582
  %1677 = vmatpush1.bf16.msra.mxu0 %v1581
  %1678 = vmatprep.subr.bf16.mxu0 %v1586
  %1679 = vmatpush1.bf16.msra.mxu0 %v1585
  %1680 = vmatprep.subr.bf16.mxu0 %v1590
  %1681 = vmatpush1.bf16.msra.mxu0 %v1589
  %1682 = vmatprep.subr.bf16.mxu0 %v1594
  %1683 = vmatpush1.bf16.msra.mxu0 %v1593
  %1684 = vmatprep.subr.bf16.mxu0 0
  %1685 = vmatpush1.bf16.msra.mxu0 0
  %1686 = vmatprep.subr.bf16.mxu0 0
  %1687 = vmatpush1.bf16.msra.mxu0 0
  %1688 = vmatprep.subr.bf16.mxu0 0
  %1689 = vmatpush1.bf16.msra.mxu0 0
  %1690 = vmatprep.subr.bf16.mxu0 0
  %1691 = vmatpush1.bf16.msra.mxu0 0
  %1692 = vmatprep.subr.bf16.mxu0 0
  %1693 = vmatpush1.bf16.msra.mxu0 0
  %1694 = vmatprep.subr.bf16.mxu0 0
  %1695 = vmatpush1.bf16.msra.mxu0 0
  %1696 = vmatprep.subr.bf16.mxu0 0
  %1697 = vmatpush1.bf16.msra.mxu0 0
  %1698 = vmatprep.subr.bf16.mxu0 0
  %1699 = vmatpush1.bf16.msra.mxu0 0
  %1700 = vmatprep.mubr.bf16.mxu0 0
  %1701 = vmatmul.mubr.bf16.gmra.mrb[0].mxu0 %v603
  %v1702 = vpop.f32.mrb[0].mxu0
  %v1703 = vadd.f32 %v1458, %v1702
  %v1704 = vpop.f32.mrb[0].mxu0
  %v1705 = vadd.f32 %v1462, %v1704
  %v1706 = vpop.f32.mrb[0].mxu0
  %v1707 = vpop.f32.mrb[0].mxu0
  %1708 = vdwg.mxu0
  %v1741 = vunpack.c.l.b16 %v1413
  %v1742 = vunpack.c.h.b16 %v1413
  %v1743 = vunpack.c.l.b16 %v1414
  %v1744 = vunpack.c.h.b16 %v1414
  %v1745 = vunpack.c.l.b16 %v1415
  %v1746 = vunpack.c.h.b16 %v1415
  %v1747 = vunpack.c.l.b16 %v1416
  %v1748 = vunpack.c.h.b16 %v1416
  %v1749 = vunpack.c.l.b16 %v1417
  %v1750 = vunpack.c.h.b16 %v1417
  %v1751 = vunpack.c.l.b16 %v1418
  %v1752 = vunpack.c.h.b16 %v1418
  %v1753 = vunpack.c.l.b16 %v1419
  %v1754 = vunpack.c.h.b16 %v1419
  %v1755 = vunpack.c.l.b16 %v1420
  %v1756 = vunpack.c.h.b16 %v1420
  %v1757 = vunpack.c.l.b16 %v1421
  %v1758 = vunpack.c.h.b16 %v1421
  %v1759 = vunpack.c.l.b16 %v1422
  %v1760 = vunpack.c.h.b16 %v1422
  %v1761 = vunpack.c.l.b16 %v1423
  %v1762 = vunpack.c.h.b16 %v1423
  %v1763 = vunpack.c.l.b16 %v1424
  %v1764 = vunpack.c.h.b16 %v1424
  %v1765 = vunpack.c.l.b16 %v1425
  %v1766 = vunpack.c.h.b16 %v1425
  %v1767 = vunpack.c.l.b16 %v1426
  %v1768 = vunpack.c.h.b16 %v1426
  %v1769 = vunpack.c.l.b16 %v1427
  %v1770 = vunpack.c.h.b16 %v1427
  %v1771 = vunpack.c.l.b16 %v1428
  %v1772 = vunpack.c.h.b16 %v1428
  %v1773 = vunpack.c.l.b16 %v1429
  %v1774 = vunpack.c.h.b16 %v1429
  %v1775 = vunpack.c.l.b16 %v1430
  %v1776 = vunpack.c.h.b16 %v1430
  %v1777 = vunpack.c.l.b16 %v1431
  %v1778 = vunpack.c.h.b16 %v1431
  %v1779 = vunpack.c.l.b16 %v1432
  %v1780 = vunpack.c.h.b16 %v1432
  %v1781 = vunpack.c.l.b16 %v1433
  %v1782 = vunpack.c.h.b16 %v1433
  %v1783 = vunpack.c.l.b16 %v1434
  %v1784 = vunpack.c.h.b16 %v1434
  %v1785 = vunpack.c.l.b16 %v1435
  %v1786 = vunpack.c.h.b16 %v1435
  %v1787 = vunpack.c.l.b16 %v1436
  %v1788 = vunpack.c.h.b16 %v1436
  %v1789 = vunpack.c.l.b16 %v1437
  %v1790 = vunpack.c.h.b16 %v1437
  %v1791 = vunpack.c.l.b16 %v1438
  %v1792 = vunpack.c.h.b16 %v1438
  %v1793 = vunpack.c.l.b16 %v1439
  %v1794 = vunpack.c.h.b16 %v1439
  %v1795 = vunpack.c.l.b16 %v1440
  %v1796 = vunpack.c.h.b16 %v1440
  %v1797 = vunpack.c.l.b16 %v1441
  %v1798 = vunpack.c.h.b16 %v1441
  %v1799 = vunpack.c.l.b16 %v1442
  %v1800 = vunpack.c.h.b16 %v1442
  %v1801 = vunpack.c.l.b16 %v1443
  %v1802 = vunpack.c.h.b16 %v1443
  %v1803 = vunpack.c.l.b16 %v1444
  %v1804 = vunpack.c.h.b16 %v1444
  %v1805 = vpack.c.b16 %v1745, %v1741
  %v1806 = vpack.c.b16 %v1746, %v1742
  %v1807 = vpack.c.b16 %v1747, %v1743
  %v1808 = vpack.c.b16 %v1748, %v1744
  %v1809 = vpack.c.b16 %v1753, %v1749
  %v1810 = vpack.c.b16 %v1754, %v1750
  %v1811 = vpack.c.b16 %v1755, %v1751
  %v1812 = vpack.c.b16 %v1756, %v1752
  %v1813 = vpack.c.b16 %v1761, %v1757
  %v1814 = vpack.c.b16 %v1762, %v1758
  %v1815 = vpack.c.b16 %v1763, %v1759
  %v1816 = vpack.c.b16 %v1764, %v1760
  %v1817 = vpack.c.b16 %v1769, %v1765
  %v1818 = vpack.c.b16 %v1770, %v1766
  %v1819 = vpack.c.b16 %v1771, %v1767
  %v1820 = vpack.c.b16 %v1772, %v1768
  %v1821 = vpack.c.b16 %v1777, %v1773
  %v1822 = vpack.c.b16 %v1778, %v1774
  %v1823 = vpack.c.b16 %v1779, %v1775
  %v1824 = vpack.c.b16 %v1780, %v1776
  %v1825 = vpack.c.b16 %v1785, %v1781
  %v1826 = vpack.c.b16 %v1786, %v1782
  %v1827 = vpack.c.b16 %v1787, %v1783
  %v1828 = vpack.c.b16 %v1788, %v1784
  %v1829 = vpack.c.b16 %v1793, %v1789
  %v1830 = vpack.c.b16 %v1794, %v1790
  %v1831 = vpack.c.b16 %v1795, %v1791
  %v1832 = vpack.c.b16 %v1796, %v1792
  %v1833 = vpack.c.b16 %v1801, %v1797
  %v1834 = vpack.c.b16 %v1802, %v1798
  %v1835 = vpack.c.b16 %v1803, %v1799
  %v1836 = vpack.c.b16 %v1804, %v1800
  %1869 = vmatprep.subr.bf16.mxu0 %v1806
  %1870 = vmatpush1.bf16.msra.mxu0 %v1805
  %1871 = vmatprep.subr.bf16.mxu0 %v1810
  %1872 = vmatpush1.bf16.msra.mxu0 %v1809
  %1873 = vmatprep.subr.bf16.mxu0 %v1814
  %1874 = vmatpush1.bf16.msra.mxu0 %v1813
  %1875 = vmatprep.subr.bf16.mxu0 %v1818
  %1876 = vmatpush1.bf16.msra.mxu0 %v1817
  %1877 = vmatprep.subr.bf16.mxu0 %v1822
  %1878 = vmatpush1.bf16.msra.mxu0 %v1821
  %1879 = vmatprep.subr.bf16.mxu0 %v1826
  %1880 = vmatpush1.bf16.msra.mxu0 %v1825
  %1881 = vmatprep.subr.bf16.mxu0 %v1830
  %1882 = vmatpush1.bf16.msra.mxu0 %v1829
  %1883 = vmatprep.subr.bf16.mxu0 %v1834
  %1884 = vmatpush1.bf16.msra.mxu0 %v1833
  %1885 = vmatprep.subr.bf16.mxu0 0
  %1886 = vmatpush1.bf16.msra.mxu0 0
  %1887 = vmatprep.subr.bf16.mxu0 0
  %1888 = vmatpush1.bf16.msra.mxu0 0
  %1889 = vmatprep.subr.bf16.mxu0 0
  %1890 = vmatpush1.bf16.msra.mxu0 0
  %1891 = vmatprep.subr.bf16.mxu0 0
  %1892 = vmatpush1.bf16.msra.mxu0 0
  %1893 = vmatprep.subr.bf16.mxu0 0
  %1894 = vmatpush1.bf16.msra.mxu0 0
  %1895 = vmatprep.subr.bf16.mxu0 0
  %1896 = vmatpush1.bf16.msra.mxu0 0
  %1897 = vmatprep.subr.bf16.mxu0 0
  %1898 = vmatpush1.bf16.msra.mxu0 0
  %1899 = vmatprep.subr.bf16.mxu0 0
  %1900 = vmatpush1.bf16.msra.mxu0 0
  %1901 = vmatprep.mubr.bf16.mxu0 0
  %1902 = vmatmul.mubr.bf16.gmra.mrb[0].mxu0 0
  %v1903 = vpop.f32.mrb[0].mxu0
  %v1904 = vadd.f32 0.0, %v1903
  %v1905 = vpop.f32.mrb[0].mxu0
  %v1906 = vadd.f32 0.0, %v1905
  %v1907 = vpop.f32.mrb[0].mxu0
  %v1908 = vpop.f32.mrb[0].mxu0
  %1909 = vdwg.mxu0
  %1910 = vmatprep.subr.bf16.mxu0 %v1808
  %1911 = vmatpush1.bf16.msra.mxu0 %v1807
  %1912 = vmatprep.subr.bf16.mxu0 %v1812
  %1913 = vmatpush1.bf16.msra.mxu0 %v1811
  %1914 = vmatprep.subr.bf16.mxu0 %v1816
  %1915 = vmatpush1.bf16.msra.mxu0 %v1815
  %1916 = vmatprep.subr.bf16.mxu0 %v1820
  %1917 = vmatpush1.bf16.msra.mxu0 %v1819
  %1918 = vmatprep.subr.bf16.mxu0 %v1824
  %1919 = vmatpush1.bf16.msra.mxu0 %v1823
  %1920 = vmatprep.subr.bf16.mxu0 %v1828
  %1921 = vmatpush1.bf16.msra.mxu0 %v1827
  %1922 = vmatprep.subr.bf16.mxu0 %v1832
  %1923 = vmatpush1.bf16.msra.mxu0 %v1831
  %1924 = vmatprep.subr.bf16.mxu0 %v1836
  %1925 = vmatpush1.bf16.msra.mxu0 %v1835
  %1926 = vmatprep.subr.bf16.mxu0 0
  %1927 = vmatpush1.bf16.msra.mxu0 0
  %1928 = vmatprep.subr.bf16.mxu0 0
  %1929 = vmatpush1.bf16.msra.mxu0 0
  %1930 = vmatprep.subr.bf16.mxu0 0
  %1931 = vmatpush1.bf16.msra.mxu0 0
  %1932 = vmatprep.subr.bf16.mxu0 0
  %1933 = vmatpush1.bf16.msra.mxu0 0
  %1934 = vmatprep.subr.bf16.mxu0 0
  %1935 = vmatpush1.bf16.msra.mxu0 0
  %1936 = vmatprep.subr.bf16.mxu0 0
  %1937 = vmatpush1.bf16.msra.mxu0 0
  %1938 = vmatprep.subr.bf16.mxu0 0
  %1939 = vmatpush1.bf16.msra.mxu0 0
  %1940 = vmatprep.subr.bf16.mxu0 0
  %1941 = vmatpush1.bf16.msra.mxu0 0
  %1942 = vmatprep.mubr.bf16.mxu0 0
  %1943 = vmatmul.mubr.bf16.gmra.mrb[0].mxu0 0
  %v1944 = vpop.f32.mrb[0].mxu0
  %v1945 = vadd.f32 0.0, %v1944
  %v1946 = vpop.f32.mrb[0].mxu0
  %v1947 = vadd.f32 0.0, %v1946
  %v1948 = vpop.f32.mrb[0].mxu0
  %v1949 = vpop.f32.mrb[0].mxu0
  %1950 = vdwg.mxu0
  %v1951 = vadd.f32 %v1662, %v1904
  %v1952 = vadd.f32 %v1664, %v1906
  %v1953 = vadd.f32 %v1703, %v1945
  %v1954 = vadd.f32 %v1705, %v1947
  %v1955 = vxor.u32 %v1951, 2147483648
  %v1956 = vmul.f32 %v1955, 1.442695
  %v1957 = vpow.pop %v1956
  %v1958 = vadd.f32 %v1957, 1.0
  %v1959 = vrcp.pop %v1958
  %v1960 = vmul.f32 1.0, %v1959
  %v1961 = vxor.u32 %v1952, 2147483648
  %v1962 = vmul.f32 %v1961, 1.442695
  %v1963 = vpow.pop %v1962
  %v1964 = vadd.f32 %v1963, 1.0
  %v1965 = vrcp.pop %v1964
  %v1966 = vmul.f32 1.0, %v1965
  %v1967 = vtanh.pop %v1953
  %v1968 = vxor.u32 %v1954, 2147483648
  %v1969 = vmul.f32 %v1968, 1.442695
  %v1970 = vpow.pop %v1969
  %v1971 = vadd.f32 %v1970, 1.0
  %v1972 = vrcp.pop %v1971
  %v1973 = vmul.f32 1.0, %v1972
  %v1974 = vmul.f32 %v1966, 0.0
  %v1975 = vmul.f32 %v1960, %v1967
  %v1976 = vadd.f32 %v1974, %v1975
  %v1977 = vtanh.pop %v1976
  %v1978 = vmul.f32 %v1973, %v1977
  %1979 = vmatprep.subr.bf16.mxu0 %v1564
  %1980 = vmatpush1.bf16.msra.mxu0 %v1563
  %1981 = vmatprep.subr.bf16.mxu0 %v1568
  %1982 = vmatpush1.bf16.msra.mxu0 %v1567
  %1983 = vmatprep.subr.bf16.mxu0 %v1572
  %1984 = vmatpush1.bf16.msra.mxu0 %v1571
  %1985 = vmatprep.subr.bf16.mxu0 %v1576
  %1986 = vmatpush1.bf16.msra.mxu0 %v1575
  %1987 = vmatprep.subr.bf16.mxu0 %v1580
  %1988 = vmatpush1.bf16.msra.mxu0 %v1579
  %1989 = vmatprep.subr.bf16.mxu0 %v1584
  %1990 = vmatpush1.bf16.msra.mxu0 %v1583
  %1991 = vmatprep.subr.bf16.mxu0 %v1588
  %1992 = vmatpush1.bf16.msra.mxu0 %v1587
  %1993 = vmatprep.subr.bf16.mxu0 %v1592
  %1994 = vmatpush1.bf16.msra.mxu0 %v1591
  %1995 = vmatprep.subr.bf16.mxu0 0
  %1996 = vmatpush1.bf16.msra.mxu0 0
  %1997 = vmatprep.subr.bf16.mxu0 0
  %1998 = vmatpush1.bf16.msra.mxu0 0
  %1999 = vmatprep.subr.bf16.mxu0 0
  %2000 = vmatpush1.bf16.msra.mxu0 0
  %2001 = vmatprep.subr.bf16.mxu0 0
  %2002 = vmatpush1.bf16.msra.mxu0 0
  %2003 = vmatprep.subr.bf16.mxu0 0
  %2004 = vmatpush1.bf16.msra.mxu0 0
  %2005 = vmatprep.subr.bf16.mxu0 0
  %2006 = vmatpush1.bf16.msra.mxu0 0
  %2007 = vmatprep.subr.bf16.mxu0 0
  %2008 = vmatpush1.bf16.msra.mxu0 0
  %2009 = vmatprep.subr.bf16.mxu0 0
  %2010 = vmatpush1.bf16.msra.mxu0 0
  %2011 = vmatprep.mubr.bf16.mxu0 0
  %2012 = vmatmul.mubr.bf16.gmra.mrb[0].mxu0 %v714
  %v2013 = vpop.f32.mrb[0].mxu0
  %v2014 = vadd.f32 %v1450, %v2013
  %v2015 = vpop.f32.mrb[0].mxu0
  %v2016 = vadd.f32 %v1454, %v2015
  %v2017 = vpop.f32.mrb[0].mxu0
  %v2018 = vpop.f32.mrb[0].mxu0
  %2019 = vdwg.mxu0
  %2020 = vmatprep.subr.bf16.mxu0 %v1566
  %2021 = vmatpush1.bf16.msra.mxu0 %v1565
  %2022 = vmatprep.subr.bf16.mxu0 %v1570
  %2023 = vmatpush1.bf16.msra.mxu0 %v1569
  %2024 = vmatprep.subr.bf16.mxu0 %v1574
  %2025 = vmatpush1.bf16.msra.mxu0 %v1573
  %2026 = vmatprep.subr.bf16.mxu0 %v1578
  %2027 = vmatpush1.bf16.msra.mxu0 %v1577
  %2028 = vmatprep.subr.bf16.mxu0 %v1582
  %2029 = vmatpush1.bf16.msra.mxu0 %v1581
  %2030 = vmatprep.subr.bf16.mxu0 %v1586
  %2031 = vmatpush1.bf16.msra.mxu0 %v1585
  %2032 = vmatprep.subr.bf16.mxu0 %v1590
  %2033 = vmatpush1.bf16.msra.mxu0 %v1589
  %2034 = vmatprep.subr.bf16.mxu0 %v1594
  %2035 = vmatpush1.bf16.msra.mxu0 %v1593
  %2036 = vmatprep.subr.bf16.mxu0 0
  %2037 = vmatpush1.bf16.msra.mxu0 0
  %2038 = vmatprep.subr.bf16.mxu0 0
  %2039 = vmatpush1.bf16.msra.mxu0 0
  %2040 = vmatprep.subr.bf16.mxu0 0
  %2041 = vmatpush1.bf16.msra.mxu0 0
  %2042 = vmatprep.subr.bf16.mxu0 0
  %2043 = vmatpush1.bf16.msra.mxu0 0
  %2044 = vmatprep.subr.bf16.mxu0 0
  %2045 = vmatpush1.bf16.msra.mxu0 0
  %2046 = vmatprep.subr.bf16.mxu0 0
  %2047 = vmatpush1.bf16.msra.mxu0 0
  %2048 = vmatprep.subr.bf16.mxu0 0
  %2049 = vmatpush1.bf16.msra.mxu0 0
  %2050 = vmatprep.subr.bf16.mxu0 0
  %2051 = vmatpush1.bf16.msra.mxu0 0
  %2052 = vmatprep.mubr.bf16.mxu0 0
  %2053 = vmatmul.mubr.bf16.gmra.mrb[0].mxu0 %v714
  %v2054 = vpop.f32.mrb[0].mxu0
  %v2055 = vadd.f32 %v1458, %v2054
  %v2056 = vpop.f32.mrb[0].mxu0
  %v2057 = vadd.f32 %v1462, %v2056
  %v2058 = vpop.f32.mrb[0].mxu0
  %v2059 = vpop.f32.mrb[0].mxu0
  %2060 = vdwg.mxu0
  %v2061 = vpack.c.bf16 %v1978, %v1978
  %2062 = vmatprep.subr.bf16.mxu0 %v1806
  %2063 = vmatpush1.bf16.msra.mxu0 %v1805
  %2064 = vmatprep.subr.bf16.mxu0 %v1810
  %2065 = vmatpush1.bf16.msra.mxu0 %v1809
  %2066 = vmatprep.subr.bf16.mxu0 %v1814
  %2067 = vmatpush1.bf16.msra.mxu0 %v1813
  %2068 = vmatprep.subr.bf16.mxu0 %v1818
  %2069 = vmatpush1.bf16.msra.mxu0 %v1817
  %2070 = vmatprep.subr.bf16.mxu0 %v1822
  %2071 = vmatpush1.bf16.msra.mxu0 %v1821
  %2072 = vmatprep.subr.bf16.mxu0 %v1826
  %2073 = vmatpush1.bf16.msra.mxu0 %v1825
  %2074 = vmatprep.subr.bf16.mxu0 %v1830
  %2075 = vmatpush1.bf16.msra.mxu0 %v1829
  %2076 = vmatprep.subr.bf16.mxu0 %v1834
  %2077 = vmatpush1.bf16.msra.mxu0 %v1833
  %2078 = vmatprep.subr.bf16.mxu0 0
  %2079 = vmatpush1.bf16.msra.mxu0 0
  %2080 = vmatprep.subr.bf16.mxu0 0
  %2081 = vmatpush1.bf16.msra.mxu0 0
  %2082 = vmatprep.subr.bf16.mxu0 0
  %2083 = vmatpush1.bf16.msra.mxu0 0
  %2084 = vmatprep.subr.bf16.mxu0 0
  %2085 = vmatpush1.bf16.msra.mxu0 0
  %2086 = vmatprep.subr.bf16.mxu0 0
  %2087 = vmatpush1.bf16.msra.mxu0 0
  %2088 = vmatprep.subr.bf16.mxu0 0
  %2089 = vmatpush1.bf16.msra.mxu0 0
  %2090 = vmatprep.subr.bf16.mxu0 0
  %2091 = vmatpush1.bf16.msra.mxu0 0
  %2092 = vmatprep.subr.bf16.mxu0 0
  %2093 = vmatpush1.bf16.msra.mxu0 0
  %2094 = vmatprep.mubr.bf16.mxu0 0
  %2095 = vmatmul.mubr.bf16.gmra.mrb[0].mxu0 %v2061
  %v2096 = vpop.f32.mrb[0].mxu0
  %v2097 = vadd.f32 0.0, %v2096
  %v2098 = vpop.f32.mrb[0].mxu0
  %v2099 = vadd.f32 0.0, %v2098
  %v2100 = vpop.f32.mrb[0].mxu0
  %v2101 = vpop.f32.mrb[0].mxu0
  %2102 = vdwg.mxu0
  %2103 = vmatprep.subr.bf16.mxu0 %v1808
  %2104 = vmatpush1.bf16.msra.mxu0 %v1807
  %2105 = vmatprep.subr.bf16.mxu0 %v1812
  %2106 = vmatpush1.bf16.msra.mxu0 %v1811
  %2107 = vmatprep.subr.bf16.mxu0 %v1816
  %2108 = vmatpush1.bf16.msra.mxu0 %v1815
  %2109 = vmatprep.subr.bf16.mxu0 %v1820
  %2110 = vmatpush1.bf16.msra.mxu0 %v1819
  %2111 = vmatprep.subr.bf16.mxu0 %v1824
  %2112 = vmatpush1.bf16.msra.mxu0 %v1823
  %2113 = vmatprep.subr.bf16.mxu0 %v1828
  %2114 = vmatpush1.bf16.msra.mxu0 %v1827
  %2115 = vmatprep.subr.bf16.mxu0 %v1832
  %2116 = vmatpush1.bf16.msra.mxu0 %v1831
  %2117 = vmatprep.subr.bf16.mxu0 %v1836
  %2118 = vmatpush1.bf16.msra.mxu0 %v1835
  %2119 = vmatprep.subr.bf16.mxu0 0
  %2120 = vmatpush1.bf16.msra.mxu0 0
  %2121 = vmatprep.subr.bf16.mxu0 0
  %2122 = vmatpush1.bf16.msra.mxu0 0
  %2123 = vmatprep.subr.bf16.mxu0 0
  %2124 = vmatpush1.bf16.msra.mxu0 0
  %2125 = vmatprep.subr.bf16.mxu0 0
  %2126 = vmatpush1.bf16.msra.mxu0 0
  %2127 = vmatprep.subr.bf16.mxu0 0
  %2128 = vmatpush1.bf16.msra.mxu0 0
  %2129 = vmatprep.subr.bf16.mxu0 0
  %2130 = vmatpush1.bf16.msra.mxu0 0
  %2131 = vmatprep.subr.bf16.mxu0 0
  %2132 = vmatpush1.bf16.msra.mxu0 0
  %2133 = vmatprep.subr.bf16.mxu0 0
  %2134 = vmatpush1.bf16.msra.mxu0 0
  %2135 = vmatprep.mubr.bf16.mxu0 0
  %2136 = vmatmul.mubr.bf16.gmra.mrb[0].mxu0 %v2061
  %v2137 = vpop.f32.mrb[0].mxu0
  %v2138 = vadd.f32 0.0, %v2137
  %v2139 = vpop.f32.mrb[0].mxu0
  %v2140 = vadd.f32 0.0, %v2139
  %v2141 = vpop.f32.mrb[0].mxu0
  %v2142 = vpop.f32.mrb[0].mxu0
  %2143 = vdwg.mxu0
  %v2144 = vadd.f32 %v2014, %v2097
  %v2145 = vadd.f32 %v2016, %v2099
  %v2146 = vadd.f32 %v2055, %v2138
  %v2147 = vadd.f32 %v2057, %v2140
  %v2148 = vxor.u32 %v2144, 2147483648
  %v2149 = vmul.f32 %v2148, 1.442695
  %v2150 = vpow.pop %v2149
  %v2151 = vadd.f32 %v2150, 1.0
  %v2152 = vrcp.pop %v2151
  %v2153 = vmul.f32 1.0, %v2152
  %v2154 = vxor.u32 %v2145, 2147483648
  %v2155 = vmul.f32 %v2154, 1.442695
  %v2156 = vpow.pop %v2155
  %v2157 = vadd.f32 %v2156, 1.0
  %v2158 = vrcp.pop %v2157
  %v2159 = vmul.f32 1.0, %v2158
  %v2160 = vtanh.pop %v2146
  %v2161 = vxor.u32 %v2147, 2147483648
  %v2162 = vmul.f32 %v2161, 1.442695
  %v2163 = vpow.pop %v2162
  %v2164 = vadd.f32 %v2163, 1.0
  %v2165 = vrcp.pop %v2164
  %v2166 = vmul.f32 1.0, %v2165
  %v2167 = vmul.f32 %v2159, %v1976
  %v2168 = vmul.f32 %v2153, %v2160
  %v2169 = vadd.f32 %v2167, %v2168
  %v2170 = vtanh.pop %v2169
  %v2171 = vmul.f32 %v2166, %v2170
  %2172 = vmatprep.subr.bf16.mxu0 %v1564
  %2173 = vmatpush1.bf16.msra.mxu0 %v1563
  %2174 = vmatprep.subr.bf16.mxu0 %v1568
  %2175 = vmatpush1.bf16.msra.mxu0 %v1567
  %2176 = vmatprep.subr.bf16.mxu0 %v1572
  %2177 = vmatpush1.bf16.msra.mxu0 %v1571
  %2178 = vmatprep.subr.bf16.mxu0 %v1576
  %2179 = vmatpush1.bf16.msra.mxu0 %v1575
  %2180 = vmatprep.subr.bf16.mxu0 %v1580
  %2181 = vmatpush1.bf16.msra.mxu0 %v1579
  %2182 = vmatprep.subr.bf16.mxu0 %v1584
  %2183 = vmatpush1.bf16.msra.mxu0 %v1583
  %2184 = vmatprep.subr.bf16.mxu0 %v1588
  %2185 = vmatpush1.bf16.msra.mxu0 %v1587
  %2186 = vmatprep.subr.bf16.mxu0 %v1592
  %2187 = vmatpush1.bf16.msra.mxu0 %v1591
  %2188 = vmatprep.subr.bf16.mxu0 0
  %2189 = vmatpush1.bf16.msra.mxu0 0
  %2190 = vmatprep.subr.bf16.mxu0 0
  %2191 = vmatpush1.bf16.msra.mxu0 0
  %2192 = vmatprep.subr.bf16.mxu0 0
  %2193 = vmatpush1.bf16.msra.mxu0 0
  %2194 = vmatprep.subr.bf16.mxu0 0
  %2195 = vmatpush1.bf16.msra.mxu0 0
  %2196 = vmatprep.subr.bf16.mxu0 0
  %2197 = vmatpush1.bf16.msra.mxu0 0
  %2198 = vmatprep.subr.bf16.mxu0 0
  %2199 = vmatpush1.bf16.msra.mxu0 0
  %2200 = vmatprep.subr.bf16.mxu0 0
  %2201 = vmatpush1.bf16.msra.mxu0 0
  %2202 = vmatprep.subr.bf16.mxu0 0
  %2203 = vmatpush1.bf16.msra.mxu0 0
  %2204 = vmatprep.mubr.bf16.mxu0 0
  %2205 = vmatmul.mubr.bf16.gmra.mrb[0].mxu0 %v825
  %v2206 = vpop.f32.mrb[0].mxu0
  %v2207 = vadd.f32 %v1450, %v2206
  %v2208 = vpop.f32.mrb[0].mxu0
  %v2209 = vadd.f32 %v1454, %v2208
  %v2210 = vpop.f32.mrb[0].mxu0
  %v2211 = vpop.f32.mrb[0].mxu0
  %2212 = vdwg.mxu0
  %2213 = vmatprep.subr.bf16.mxu0 %v1566
  %2214 = vmatpush1.bf16.msra.mxu0 %v1565
  %2215 = vmatprep.subr.bf16.mxu0 %v1570
  %2216 = vmatpush1.bf16.msra.mxu0 %v1569
  %2217 = vmatprep.subr.bf16.mxu0 %v1574
  %2218 = vmatpush1.bf16.msra.mxu0 %v1573
  %2219 = vmatprep.subr.bf16.mxu0 %v1578
  %2220 = vmatpush1.bf16.msra.mxu0 %v1577
  %2221 = vmatprep.subr.bf16.mxu0 %v1582
  %2222 = vmatpush1.bf16.msra.mxu0 %v1581
  %2223 = vmatprep.subr.bf16.mxu0 %v1586
  %2224 = vmatpush1.bf16.msra.mxu0 %v1585
  %2225 = vmatprep.subr.bf16.mxu0 %v1590
  %2226 = vmatpush1.bf16.msra.mxu0 %v1589
  %2227 = vmatprep.subr.bf16.mxu0 %v1594
  %2228 = vmatpush1.bf16.msra.mxu0 %v1593
  %2229 = vmatprep.subr.bf16.mxu0 0
  %2230 = vmatpush1.bf16.msra.mxu0 0
  %2231 = vmatprep.subr.bf16.mxu0 0
  %2232 = vmatpush1.bf16.msra.mxu0 0
  %2233 = vmatprep.subr.bf16.mxu0 0
  %2234 = vmatpush1.bf16.msra.mxu0 0
  %2235 = vmatprep.subr.bf16.mxu0 0
  %2236 = vmatpush1.bf16.msra.mxu0 0
  %2237 = vmatprep.subr.bf16.mxu0 0
  %2238 = vmatpush1.bf16.msra.mxu0 0
  %2239 = vmatprep.subr.bf16.mxu0 0
  %2240 = vmatpush1.bf16.msra.mxu0 0
  %2241 = vmatprep.subr.bf16.mxu0 0
  %2242 = vmatpush1.bf16.msra.mxu0 0
  %2243 = vmatprep.subr.bf16.mxu0 0
  %2244 = vmatpush1.bf16.msra.mxu0 0
  %2245 = vmatprep.mubr.bf16.mxu0 0
  %2246 = vmatmul.mubr.bf16.gmra.mrb[0].mxu0 %v825
  %v2247 = vpop.f32.mrb[0].mxu0
  %v2248 = vadd.f32 %v1458, %v2247
  %v2249 = vpop.f32.mrb[0].mxu0
  %v2250 = vadd.f32 %v1462, %v2249
  %v2251 = vpop.f32.mrb[0].mxu0
  %v2252 = vpop.f32.mrb[0].mxu0
  %2253 = vdwg.mxu0
  %v2254 = vpack.c.bf16 %v2171, %v2171
  %2255 = vmatprep.subr.bf16.mxu0 %v1806
  %2256 = vmatpush1.bf16.msra.mxu0 %v1805
  %2257 = vmatprep.subr.bf16.mxu0 %v1810
  %2258 = vmatpush1.bf16.msra.mxu0 %v1809
  %2259 = vmatprep.subr.bf16.mxu0 %v1814
  %2260 = vmatpush1.bf16.msra.mxu0 %v1813
  %2261 = vmatprep.subr.bf16.mxu0 %v1818
  %2262 = vmatpush1.bf16.msra.mxu0 %v1817
  %2263 = vmatprep.subr.bf16.mxu0 %v1822
  %2264 = vmatpush1.bf16.msra.mxu0 %v1821
  %2265 = vmatprep.subr.bf16.mxu0 %v1826
  %2266 = vmatpush1.bf16.msra.mxu0 %v1825
  %2267 = vmatprep.subr.bf16.mxu0 %v1830
  %2268 = vmatpush1.bf16.msra.mxu0 %v1829
  %2269 = vmatprep.subr.bf16.mxu0 %v1834
  %2270 = vmatpush1.bf16.msra.mxu0 %v1833
  %2271 = vmatprep.subr.bf16.mxu0 0
  %2272 = vmatpush1.bf16.msra.mxu0 0
  %2273 = vmatprep.subr.bf16.mxu0 0
  %2274 = vmatpush1.bf16.msra.mxu0 0
  %2275 = vmatprep.subr.bf16.mxu0 0
  %2276 = vmatpush1.bf16.msra.mxu0 0
  %2277 = vmatprep.subr.bf16.mxu0 0
  %2278 = vmatpush1.bf16.msra.mxu0 0
  %2279 = vmatprep.subr.bf16.mxu0 0
  %2280 = vmatpush1.bf16.msra.mxu0 0
  %2281 = vmatprep.subr.bf16.mxu0 0
  %2282 = vmatpush1.bf16.msra.mxu0 0
  %2283 = vmatprep.subr.bf16.mxu0 0
  %2284 = vmatpush1.bf16.msra.mxu0 0
  %2285 = vmatprep.subr.bf16.mxu0 0
  %2286 = vmatpush1.bf16.msra.mxu0 0
  %2287 = vmatprep.mubr.bf16.mxu0 0
  %2288 = vmatmul.mubr.bf16.gmra.mrb[0].mxu0 %v2254
  %v2289 = vpop.f32.mrb[0].mxu0
  %v2290 = vadd.f32 0.0, %v2289
  %v2291 = vpop.f32.mrb[0].mxu0
  %v2292 = vadd.f32 0.0, %v2291
  %v2293 = vpop.f32.mrb[0].mxu0
  %v2294 = vpop.f32.mrb[0].mxu0
  %2295 = vdwg.mxu0
  %2296 = vmatprep.subr.bf16.mxu0 %v1808
  %2297 = vmatpush1.bf16.msra.mxu0 %v1807
  %2298 = vmatprep.subr.bf16.mxu0 %v1812
  %2299 = vmatpush1.bf16.msra.mxu0 %v1811
  %2300 = vmatprep.subr.bf16.mxu0 %v1816
  %2301 = vmatpush1.bf16.msra.mxu0 %v1815
  %2302 = vmatprep.subr.bf16.mxu0 %v1820
  %2303 = vmatpush1.bf16.msra.mxu0 %v1819
  %2304 = vmatprep.subr.bf16.mxu0 %v1824
  %2305 = vmatpush1.bf16.msra.mxu0 %v1823
  %2306 = vmatprep.subr.bf16.mxu0 %v1828
  %2307 = vmatpush1.bf16.msra.mxu0 %v1827
  %2308 = vmatprep.subr.bf16.mxu0 %v1832
  %2309 = vmatpush1.bf16.msra.mxu0 %v1831
  %2310 = vmatprep.subr.bf16.mxu0 %v1836
  %2311 = vmatpush1.bf16.msra.mxu0 %v1835
  %2312 = vmatprep.subr.bf16.mxu0 0
  %2313 = vmatpush1.bf16.msra.mxu0 0
  %2314 = vmatprep.subr.bf16.mxu0 0
  %2315 = vmatpush1.bf16.msra.mxu0 0
  %2316 = vmatprep.subr.bf16.mxu0 0
  %2317 = vmatpush1.bf16.msra.mxu0 0
  %2318 = vmatprep.subr.bf16.mxu0 0
  %2319 = vmatpush1.bf16.msra.mxu0 0
  %2320 = vmatprep.subr.bf16.mxu0 0
  %2321 = vmatpush1.bf16.msra.mxu0 0
  %2322 = vmatprep.subr.bf16.mxu0 0
  %2323 = vmatpush1.bf16.msra.mxu0 0
  %2324 = vmatprep.subr.bf16.mxu0 0
  %2325 = vmatpush1.bf16.msra.mxu0 0
  %2326 = vmatprep.subr.bf16.mxu0 0
  %2327 = vmatpush1.bf16.msra.mxu0 0
  %2328 = vmatprep.mubr.bf16.mxu0 0
  %2329 = vmatmul.mubr.bf16.gmra.mrb[0].mxu0 %v2254
  %v2330 = vpop.f32.mrb[0].mxu0
  %v2331 = vadd.f32 0.0, %v2330
  %v2332 = vpop.f32.mrb[0].mxu0
  %v2333 = vadd.f32 0.0, %v2332
  %v2334 = vpop.f32.mrb[0].mxu0
  %v2335 = vpop.f32.mrb[0].mxu0
  %2336 = vdwg.mxu0
  %v2337 = vadd.f32 %v2207, %v2290
  %v2338 = vadd.f32 %v2209, %v2292
  %v2339 = vadd.f32 %v2248, %v2331
  %v2340 = vadd.f32 %v2250, %v2333
  %v2341 = vxor.u32 %v2337, 2147483648
  %v2342 = vmul.f32 %v2341, 1.442695
  %v2343 = vpow.pop %v2342
  %v2344 = vadd.f32 %v2343, 1.0
  %v2345 = vrcp.pop %v2344
  %v2346 = vmul.f32 1.0, %v2345
  %v2347 = vxor.u32 %v2338, 2147483648
  %v2348 = vmul.f32 %v2347, 1.442695
  %v2349 = vpow.pop %v2348
  %v2350 = vadd.f32 %v2349, 1.0
  %v2351 = vrcp.pop %v2350
  %v2352 = vmul.f32 1.0, %v2351
  %v2353 = vtanh.pop %v2339
  %v2354 = vxor.u32 %v2340, 2147483648
  %v2355 = vmul.f32 %v2354, 1.442695
  %v2356 = vpow.pop %v2355
  %v2357 = vadd.f32 %v2356, 1.0
  %v2358 = vrcp.pop %v2357
  %v2359 = vmul.f32 1.0, %v2358
  %v2360 = vmul.f32 %v2352, %v2169
  %v2361 = vmul.f32 %v2346, %v2353
  %v2362 = vadd.f32 %v2360, %v2361
  %v2363 = vtanh.pop %v2362
  %v2364 = vmul.f32 %v2359, %v2363
  %2365 = vmatprep.subr.bf16.mxu0 %v1564
  %2366 = vmatpush1.bf16.msra.mxu0 %v1563
  %2367 = vmatprep.subr.bf16.mxu0 %v1568
  %2368 = vmatpush1.bf16.msra.mxu0 %v1567
  %2369 = vmatprep.subr.bf16.mxu0 %v1572
  %2370 = vmatpush1.bf16.msra.mxu0 %v1571
  %2371 = vmatprep.subr.bf16.mxu0 %v1576
  %2372 = vmatpush1.bf16.msra.mxu0 %v1575
  %2373 = vmatprep.subr.bf16.mxu0 %v1580
  %2374 = vmatpush1.bf16.msra.mxu0 %v1579
  %2375 = vmatprep.subr.bf16.mxu0 %v1584
  %2376 = vmatpush1.bf16.msra.mxu0 %v1583
  %2377 = vmatprep.subr.bf16.mxu0 %v1588
  %2378 = vmatpush1.bf16.msra.mxu0 %v1587
  %2379 = vmatprep.subr.bf16.mxu0 %v1592
  %2380 = vmatpush1.bf16.msra.mxu0 %v1591
  %2381 = vmatprep.subr.bf16.mxu0 0
  %2382 = vmatpush1.bf16.msra.mxu0 0
  %2383 = vmatprep.subr.bf16.mxu0 0
  %2384 = vmatpush1.bf16.msra.mxu0 0
  %2385 = vmatprep.subr.bf16.mxu0 0
  %2386 = vmatpush1.bf16.msra.mxu0 0
  %2387 = vmatprep.subr.bf16.mxu0 0
  %2388 = vmatpush1.bf16.msra.mxu0 0
  %2389 = vmatprep.subr.bf16.mxu0 0
  %2390 = vmatpush1.bf16.msra.mxu0 0
  %2391 = vmatprep.subr.bf16.mxu0 0
  %2392 = vmatpush1.bf16.msra.mxu0 0
  %2393 = vmatprep.subr.bf16.mxu0 0
  %2394 = vmatpush1.bf16.msra.mxu0 0
  %2395 = vmatprep.subr.bf16.mxu0 0
  %2396 = vmatpush1.bf16.msra.mxu0 0
  %2397 = vmatprep.mubr.bf16.mxu0 0
  %2398 = vmatmul.mubr.bf16.gmra.mrb[0].mxu0 %v936
  %v2399 = vpop.f32.mrb[0].mxu0
  %v2400 = vadd.f32 %v1450, %v2399
  %v2401 = vpop.f32.mrb[0].mxu0
  %v2402 = vadd.f32 %v1454, %v2401
  %v2403 = vpop.f32.mrb[0].mxu0
  %v2404 = vpop.f32.mrb[0].mxu0
  %2405 = vdwg.mxu0
  %2406 = vmatprep.subr.bf16.mxu0 %v1566
  %2407 = vmatpush1.bf16.msra.mxu0 %v1565
  %2408 = vmatprep.subr.bf16.mxu0 %v1570
  %2409 = vmatpush1.bf16.msra.mxu0 %v1569
  %2410 = vmatprep.subr.bf16.mxu0 %v1574
  %2411 = vmatpush1.bf16.msra.mxu0 %v1573
  %2412 = vmatprep.subr.bf16.mxu0 %v1578
  %2413 = vmatpush1.bf16.msra.mxu0 %v1577
  %2414 = vmatprep.subr.bf16.mxu0 %v1582
  %2415 = vmatpush1.bf16.msra.mxu0 %v1581
  %2416 = vmatprep.subr.bf16.mxu0 %v1586
  %2417 = vmatpush1.bf16.msra.mxu0 %v1585
  %2418 = vmatprep.subr.bf16.mxu0 %v1590
  %2419 = vmatpush1.bf16.msra.mxu0 %v1589
  %2420 = vmatprep.subr.bf16.mxu0 %v1594
  %2421 = vmatpush1.bf16.msra.mxu0 %v1593
  %2422 = vmatprep.subr.bf16.mxu0 0
  %2423 = vmatpush1.bf16.msra.mxu0 0
  %2424 = vmatprep.subr.bf16.mxu0 0
  %2425 = vmatpush1.bf16.msra.mxu0 0
  %2426 = vmatprep.subr.bf16.mxu0 0
  %2427 = vmatpush1.bf16.msra.mxu0 0
  %2428 = vmatprep.subr.bf16.mxu0 0
  %2429 = vmatpush1.bf16.msra.mxu0 0
  %2430 = vmatprep.subr.bf16.mxu0 0
  %2431 = vmatpush1.bf16.msra.mxu0 0
  %2432 = vmatprep.subr.bf16.mxu0 0
  %2433 = vmatpush1.bf16.msra.mxu0 0
  %2434 = vmatprep.subr.bf16.mxu0 0
  %2435 = vmatpush1.bf16.msra.mxu0 0
  %2436 = vmatprep.subr.bf16.mxu0 0
  %2437 = vmatpush1.bf16.msra.mxu0 0
  %2438 = vmatprep.mubr.bf16.mxu0 0
  %2439 = vmatmul.mubr.bf16.gmra.mrb[0].mxu0 %v936
  %v2440 = vpop.f32.mrb[0].mxu0
  %v2441 = vadd.f32 %v1458, %v2440
  %v2442 = vpop.f32.mrb[0].mxu0
  %v2443 = vadd.f32 %v1462, %v2442
  %v2444 = vpop.f32.mrb[0].mxu0
  %v2445 = vpop.f32.mrb[0].mxu0
  %2446 = vdwg.mxu0
  %v2447 = vpack.c.bf16 %v2364, %v2364
  %2448 = vmatprep.subr.bf16.mxu0 %v1806
  %2449 = vmatpush1.bf16.msra.mxu0 %v1805
  %2450 = vmatprep.subr.bf16.mxu0 %v1810
  %2451 = vmatpush1.bf16.msra.mxu0 %v1809
  %2452 = vmatprep.subr.bf16.mxu0 %v1814
  %2453 = vmatpush1.bf16.msra.mxu0 %v1813
  %2454 = vmatprep.subr.bf16.mxu0 %v1818
  %2455 = vmatpush1.bf16.msra.mxu0 %v1817
  %2456 = vmatprep.subr.bf16.mxu0 %v1822
  %2457 = vmatpush1.bf16.msra.mxu0 %v1821
  %2458 = vmatprep.subr.bf16.mxu0 %v1826
  %2459 = vmatpush1.bf16.msra.mxu0 %v1825
  %2460 = vmatprep.subr.bf16.mxu0 %v1830
  %2461 = vmatpush1.bf16.msra.mxu0 %v1829
  %2462 = vmatprep.subr.bf16.mxu0 %v1834
  %2463 = vmatpush1.bf16.msra.mxu0 %v1833
  %2464 = vmatprep.subr.bf16.mxu0 0
  %2465 = vmatpush1.bf16.msra.mxu0 0
  %2466 = vmatprep.subr.bf16.mxu0 0
  %2467 = vmatpush1.bf16.msra.mxu0 0
  %2468 = vmatprep.subr.bf16.mxu0 0
  %2469 = vmatpush1.bf16.msra.mxu0 0
  %2470 = vmatprep.subr.bf16.mxu0 0
  %2471 = vmatpush1.bf16.msra.mxu0 0
  %2472 = vmatprep.subr.bf16.mxu0 0
  %2473 = vmatpush1.bf16.msra.mxu0 0
  %2474 = vmatprep.subr.bf16.mxu0 0
  %2475 = vmatpush1.bf16.msra.mxu0 0
  %2476 = vmatprep.subr.bf16.mxu0 0
  %2477 = vmatpush1.bf16.msra.mxu0 0
  %2478 = vmatprep.subr.bf16.mxu0 0
  %2479 = vmatpush1.bf16.msra.mxu0 0
  %2480 = vmatprep.mubr.bf16.mxu0 0
  %2481 = vmatmul.mubr.bf16.gmra.mrb[0].mxu0 %v2447
  %v2482 = vpop.f32.mrb[0].mxu0
  %v2483 = vadd.f32 0.0, %v2482
  %v2484 = vpop.f32.mrb[0].mxu0
  %v2485 = vadd.f32 0.0, %v2484
  %v2486 = vpop.f32.mrb[0].mxu0
  %v2487 = vpop.f32.mrb[0].mxu0
  %2488 = vdwg.mxu0
  %2489 = vmatprep.subr.bf16.mxu0 %v1808
  %2490 = vmatpush1.bf16.msra.mxu0 %v1807
  %2491 = vmatprep.subr.bf16.mxu0 %v1812
  %2492 = vmatpush1.bf16.msra.mxu0 %v1811
  %2493 = vmatprep.subr.bf16.mxu0 %v1816
  %2494 = vmatpush1.bf16.msra.mxu0 %v1815
  %2495 = vmatprep.subr.bf16.mxu0 %v1820
  %2496 = vmatpush1.bf16.msra.mxu0 %v1819
  %2497 = vmatprep.subr.bf16.mxu0 %v1824
  %2498 = vmatpush1.bf16.msra.mxu0 %v1823
  %2499 = vmatprep.subr.bf16.mxu0 %v1828
  %2500 = vmatpush1.bf16.msra.mxu0 %v1827
  %2501 = vmatprep.subr.bf16.mxu0 %v1832
  %2502 = vmatpush1.bf16.msra.mxu0 %v1831
  %2503 = vmatprep.subr.bf16.mxu0 %v1836
  %2504 = vmatpush1.bf16.msra.mxu0 %v1835
  %2505 = vmatprep.subr.bf16.mxu0 0
  %2506 = vmatpush1.bf16.msra.mxu0 0
  %2507 = vmatprep.subr.bf16.mxu0 0
  %2508 = vmatpush1.bf16.msra.mxu0 0
  %2509 = vmatprep.subr.bf16.mxu0 0
  %2510 = vmatpush1.bf16.msra.mxu0 0
  %2511 = vmatprep.subr.bf16.mxu0 0
  %2512 = vmatpush1.bf16.msra.mxu0 0
  %2513 = vmatprep.subr.bf16.mxu0 0
  %2514 = vmatpush1.bf16.msra.mxu0 0
  %2515 = vmatprep.subr.bf16.mxu0 0
  %2516 = vmatpush1.bf16.msra.mxu0 0
  %2517 = vmatprep.subr.bf16.mxu0 0
  %2518 = vmatpush1.bf16.msra.mxu0 0
  %2519 = vmatprep.subr.bf16.mxu0 0
  %2520 = vmatpush1.bf16.msra.mxu0 0
  %2521 = vmatprep.mubr.bf16.mxu0 0
  %2522 = vmatmul.mubr.bf16.gmra.mrb[0].mxu0 %v2447
  %v2523 = vpop.f32.mrb[0].mxu0
  %v2524 = vadd.f32 0.0, %v2523
  %v2525 = vpop.f32.mrb[0].mxu0
  %v2526 = vadd.f32 0.0, %v2525
  %v2527 = vpop.f32.mrb[0].mxu0
  %v2528 = vpop.f32.mrb[0].mxu0
  %2529 = vdwg.mxu0
  %v2530 = vadd.f32 %v2400, %v2483
  %v2531 = vadd.f32 %v2402, %v2485
  %v2532 = vadd.f32 %v2441, %v2524
  %v2533 = vadd.f32 %v2443, %v2526
  %v2534 = vxor.u32 %v2530, 2147483648
  %v2535 = vmul.f32 %v2534, 1.442695
  %v2536 = vpow.pop %v2535
  %v2537 = vadd.f32 %v2536, 1.0
  %v2538 = vrcp.pop %v2537
  %v2539 = vmul.f32 1.0, %v2538
  %v2540 = vxor.u32 %v2531, 2147483648
  %v2541 = vmul.f32 %v2540, 1.442695
  %v2542 = vpow.pop %v2541
  %v2543 = vadd.f32 %v2542, 1.0
  %v2544 = vrcp.pop %v2543
  %v2545 = vmul.f32 1.0, %v2544
  %v2546 = vtanh.pop %v2532
  %v2547 = vxor.u32 %v2533, 2147483648
  %v2548 = vmul.f32 %v2547, 1.442695
  %v2549 = vpow.pop %v2548
  %v2550 = vadd.f32 %v2549, 1.0
  %v2551 = vrcp.pop %v2550
  %v2552 = vmul.f32 1.0, %v2551
  %v2553 = vmul.f32 %v2545, %v2362
  %v2554 = vmul.f32 %v2539, %v2546
  %v2555 = vadd.f32 %v2553, %v2554
  %v2556 = vtanh.pop %v2555
  %v2557 = vmul.f32 %v2552, %v2556
  %2558 = vmatprep.subr.bf16.mxu0 %v1564
  %2559 = vmatpush1.bf16.msra.mxu0 %v1563
  %2560 = vmatprep.subr.bf16.mxu0 %v1568
  %2561 = vmatpush1.bf16.msra.mxu0 %v1567
  %2562 = vmatprep.subr.bf16.mxu0 %v1572
  %2563 = vmatpush1.bf16.msra.mxu0 %v1571
  %2564 = vmatprep.subr.bf16.mxu0 %v1576
  %2565 = vmatpush1.bf16.msra.mxu0 %v1575
  %2566 = vmatprep.subr.bf16.mxu0 %v1580
  %2567 = vmatpush1.bf16.msra.mxu0 %v1579
  %2568 = vmatprep.subr.bf16.mxu0 %v1584
  %2569 = vmatpush1.bf16.msra.mxu0 %v1583
  %2570 = vmatprep.subr.bf16.mxu0 %v1588
  %2571 = vmatpush1.bf16.msra.mxu0 %v1587
  %2572 = vmatprep.subr.bf16.mxu0 %v1592
  %2573 = vmatpush1.bf16.msra.mxu0 %v1591
  %2574 = vmatprep.subr.bf16.mxu0 0
  %2575 = vmatpush1.bf16.msra.mxu0 0
  %2576 = vmatprep.subr.bf16.mxu0 0
  %2577 = vmatpush1.bf16.msra.mxu0 0
  %2578 = vmatprep.subr.bf16.mxu0 0
  %2579 = vmatpush1.bf16.msra.mxu0 0
  %2580 = vmatprep.subr.bf16.mxu0 0
  %2581 = vmatpush1.bf16.msra.mxu0 0
  %2582 = vmatprep.subr.bf16.mxu0 0
  %2583 = vmatpush1.bf16.msra.mxu0 0
  %2584 = vmatprep.subr.bf16.mxu0 0
  %2585 = vmatpush1.bf16.msra.mxu0 0
  %2586 = vmatprep.subr.bf16.mxu0 0
  %2587 = vmatpush1.bf16.msra.mxu0 0
  %2588 = vmatprep.subr.bf16.mxu0 0
  %2589 = vmatpush1.bf16.msra.mxu0 0
  %2590 = vmatprep.mubr.bf16.mxu0 0
  %2591 = vmatmul.mubr.bf16.gmra.mrb[0].mxu0 %v1047
  %v2592 = vpop.f32.mrb[0].mxu0
  %v2593 = vadd.f32 %v1450, %v2592
  %v2594 = vpop.f32.mrb[0].mxu0
  %v2595 = vadd.f32 %v1454, %v2594
  %v2596 = vpop.f32.mrb[0].mxu0
  %v2597 = vpop.f32.mrb[0].mxu0
  %2598 = vdwg.mxu0
  %2599 = vmatprep.subr.bf16.mxu0 %v1566
  %2600 = vmatpush1.bf16.msra.mxu0 %v1565
  %2601 = vmatprep.subr.bf16.mxu0 %v1570
  %2602 = vmatpush1.bf16.msra.mxu0 %v1569
  %2603 = vmatprep.subr.bf16.mxu0 %v1574
  %2604 = vmatpush1.bf16.msra.mxu0 %v1573
  %2605 = vmatprep.subr.bf16.mxu0 %v1578
  %2606 = vmatpush1.bf16.msra.mxu0 %v1577
  %2607 = vmatprep.subr.bf16.mxu0 %v1582
  %2608 = vmatpush1.bf16.msra.mxu0 %v1581
  %2609 = vmatprep.subr.bf16.mxu0 %v1586
  %2610 = vmatpush1.bf16.msra.mxu0 %v1585
  %2611 = vmatprep.subr.bf16.mxu0 %v1590
  %2612 = vmatpush1.bf16.msra.mxu0 %v1589
  %2613 = vmatprep.subr.bf16.mxu0 %v1594
  %2614 = vmatpush1.bf16.msra.mxu0 %v1593
  %2615 = vmatprep.subr.bf16.mxu0 0
  %2616 = vmatpush1.bf16.msra.mxu0 0
  %2617 = vmatprep.subr.bf16.mxu0 0
  %2618 = vmatpush1.bf16.msra.mxu0 0
  %2619 = vmatprep.subr.bf16.mxu0 0
  %2620 = vmatpush1.bf16.msra.mxu0 0
  %2621 = vmatprep.subr.bf16.mxu0 0
  %2622 = vmatpush1.bf16.msra.mxu0 0
  %2623 = vmatprep.subr.bf16.mxu0 0
  %2624 = vmatpush1.bf16.msra.mxu0 0
  %2625 = vmatprep.subr.bf16.mxu0 0
  %2626 = vmatpush1.bf16.msra.mxu0 0
  %2627 = vmatprep.subr.bf16.mxu0 0
  %2628 = vmatpush1.bf16.msra.mxu0 0
  %2629 = vmatprep.subr.bf16.mxu0 0
  %2630 = vmatpush1.bf16.msra.mxu0 0
  %2631 = vmatprep.mubr.bf16.mxu0 0
  %2632 = vmatmul.mubr.bf16.gmra.mrb[0].mxu0 %v1047
  %v2633 = vpop.f32.mrb[0].mxu0
  %v2634 = vadd.f32 %v1458, %v2633
  %v2635 = vpop.f32.mrb[0].mxu0
  %v2636 = vadd.f32 %v1462, %v2635
  %v2637 = vpop.f32.mrb[0].mxu0
  %v2638 = vpop.f32.mrb[0].mxu0
  %2639 = vdwg.mxu0
  %v2640 = vpack.c.bf16 %v2557, %v2557
  %2641 = vmatprep.subr.bf16.mxu0 %v1806
  %2642 = vmatpush1.bf16.msra.mxu0 %v1805
  %2643 = vmatprep.subr.bf16.mxu0 %v1810
  %2644 = vmatpush1.bf16.msra.mxu0 %v1809
  %2645 = vmatprep.subr.bf16.mxu0 %v1814
  %2646 = vmatpush1.bf16.msra.mxu0 %v1813
  %2647 = vmatprep.subr.bf16.mxu0 %v1818
  %2648 = vmatpush1.bf16.msra.mxu0 %v1817
  %2649 = vmatprep.subr.bf16.mxu0 %v1822
  %2650 = vmatpush1.bf16.msra.mxu0 %v1821
  %2651 = vmatprep.subr.bf16.mxu0 %v1826
  %2652 = vmatpush1.bf16.msra.mxu0 %v1825
  %2653 = vmatprep.subr.bf16.mxu0 %v1830
  %2654 = vmatpush1.bf16.msra.mxu0 %v1829
  %2655 = vmatprep.subr.bf16.mxu0 %v1834
  %2656 = vmatpush1.bf16.msra.mxu0 %v1833
  %2657 = vmatprep.subr.bf16.mxu0 0
  %2658 = vmatpush1.bf16.msra.mxu0 0
  %2659 = vmatprep.subr.bf16.mxu0 0
  %2660 = vmatpush1.bf16.msra.mxu0 0
  %2661 = vmatprep.subr.bf16.mxu0 0
  %2662 = vmatpush1.bf16.msra.mxu0 0
  %2663 = vmatprep.subr.bf16.mxu0 0
  %2664 = vmatpush1.bf16.msra.mxu0 0
  %2665 = vmatprep.subr.bf16.mxu0 0
  %2666 = vmatpush1.bf16.msra.mxu0 0
  %2667 = vmatprep.subr.bf16.mxu0 0
  %2668 = vmatpush1.bf16.msra.mxu0 0
  %2669 = vmatprep.subr.bf16.mxu0 0
  %2670 = vmatpush1.bf16.msra.mxu0 0
  %2671 = vmatprep.subr.bf16.mxu0 0
  %2672 = vmatpush1.bf16.msra.mxu0 0
  %2673 = vmatprep.mubr.bf16.mxu0 0
  %2674 = vmatmul.mubr.bf16.gmra.mrb[0].mxu0 %v2640
  %v2675 = vpop.f32.mrb[0].mxu0
  %v2676 = vadd.f32 0.0, %v2675
  %v2677 = vpop.f32.mrb[0].mxu0
  %v2678 = vadd.f32 0.0, %v2677
  %v2679 = vpop.f32.mrb[0].mxu0
  %v2680 = vpop.f32.mrb[0].mxu0
  %2681 = vdwg.mxu0
  %2682 = vmatprep.subr.bf16.mxu0 %v1808
  %2683 = vmatpush1.bf16.msra.mxu0 %v1807
  %2684 = vmatprep.subr.bf16.mxu0 %v1812
  %2685 = vmatpush1.bf16.msra.mxu0 %v1811
  %2686 = vmatprep.subr.bf16.mxu0 %v1816
  %2687 = vmatpush1.bf16.msra.mxu0 %v1815
  %2688 = vmatprep.subr.bf16.mxu0 %v1820
  %2689 = vmatpush1.bf16.msra.mxu0 %v1819
  %2690 = vmatprep.subr.bf16.mxu0 %v1824
  %2691 = vmatpush1.bf16.msra.mxu0 %v1823
  %2692 = vmatprep.subr.bf16.mxu0 %v1828
  %2693 = vmatpush1.bf16.msra.mxu0 %v1827
  %2694 = vmatprep.subr.bf16.mxu0 %v1832
  %2695 = vmatpush1.bf16.msra.mxu0 %v1831
  %2696 = vmatprep.subr.bf16.mxu0 %v1836
  %2697 = vmatpush1.bf16.msra.mxu0 %v1835
  %2698 = vmatprep.subr.bf16.mxu0 0
  %2699 = vmatpush1.bf16.msra.mxu0 0
  %2700 = vmatprep.subr.bf16.mxu0 0
  %2701 = vmatpush1.bf16.msra.mxu0 0
  %2702 = vmatprep.subr.bf16.mxu0 0
  %2703 = vmatpush1.bf16.msra.mxu0 0
  %2704 = vmatprep.subr.bf16.mxu0 0
  %2705 = vmatpush1.bf16.msra.mxu0 0
  %2706 = vmatprep.subr.bf16.mxu0 0
  %2707 = vmatpush1.bf16.msra.mxu0 0
  %2708 = vmatprep.subr.bf16.mxu0 0
  %2709 = vmatpush1.bf16.msra.mxu0 0
  %2710 = vmatprep.subr.bf16.mxu0 0
  %2711 = vmatpush1.bf16.msra.mxu0 0
  %2712 = vmatprep.subr.bf16.mxu0 0
  %2713 = vmatpush1.bf16.msra.mxu0 0
  %2714 = vmatprep.mubr.bf16.mxu0 0
  %2715 = vmatmul.mubr.bf16.gmra.mrb[0].mxu0 %v2640
  %v2716 = vpop.f32.mrb[0].mxu0
  %v2717 = vadd.f32 0.0, %v2716
  %v2718 = vpop.f32.mrb[0].mxu0
  %v2719 = vadd.f32 0.0, %v2718
  %v2720 = vpop.f32.mrb[0].mxu0
  %v2721 = vpop.f32.mrb[0].mxu0
  %2722 = vdwg.mxu0
  %v2723 = vadd.f32 %v2593, %v2676
  %v2724 = vadd.f32 %v2595, %v2678
  %v2725 = vadd.f32 %v2634, %v2717
  %v2726 = vadd.f32 %v2636, %v2719
  %v2727 = vxor.u32 %v2723, 2147483648
  %v2728 = vmul.f32 %v2727, 1.442695
  %v2729 = vpow.pop %v2728
  %v2730 = vadd.f32 %v2729, 1.0
  %v2731 = vrcp.pop %v2730
  %v2732 = vmul.f32 1.0, %v2731
  %v2733 = vxor.u32 %v2724, 2147483648
  %v2734 = vmul.f32 %v2733, 1.442695
  %v2735 = vpow.pop %v2734
  %v2736 = vadd.f32 %v2735, 1.0
  %v2737 = vrcp.pop %v2736
  %v2738 = vmul.f32 1.0, %v2737
  %v2739 = vtanh.pop %v2725
  %v2740 = vxor.u32 %v2726, 2147483648
  %v2741 = vmul.f32 %v2740, 1.442695
  %v2742 = vpow.pop %v2741
  %v2743 = vadd.f32 %v2742, 1.0
  %v2744 = vrcp.pop %v2743
  %v2745 = vmul.f32 1.0, %v2744
  %v2746 = vmul.f32 %v2738, %v2555
  %v2747 = vmul.f32 %v2732, %v2739
  %v2748 = vadd.f32 %v2746, %v2747
  %v2749 = vtanh.pop %v2748
  %v2750 = vmul.f32 %v2745, %v2749
  %2751 = vmatprep.subr.bf16.mxu0 %v1564
  %2752 = vmatpush1.bf16.msra.mxu0 %v1563
  %2753 = vmatprep.subr.bf16.mxu0 %v1568
  %2754 = vmatpush1.bf16.msra.mxu0 %v1567
  %2755 = vmatprep.subr.bf16.mxu0 %v1572
  %2756 = vmatpush1.bf16.msra.mxu0 %v1571
  %2757 = vmatprep.subr.bf16.mxu0 %v1576
  %2758 = vmatpush1.bf16.msra.mxu0 %v1575
  %2759 = vmatprep.subr.bf16.mxu0 %v1580
  %2760 = vmatpush1.bf16.msra.mxu0 %v1579
  %2761 = vmatprep.subr.bf16.mxu0 %v1584
  %2762 = vmatpush1.bf16.msra.mxu0 %v1583
  %2763 = vmatprep.subr.bf16.mxu0 %v1588
  %2764 = vmatpush1.bf16.msra.mxu0 %v1587
  %2765 = vmatprep.subr.bf16.mxu0 %v1592
  %2766 = vmatpush1.bf16.msra.mxu0 %v1591
  %2767 = vmatprep.subr.bf16.mxu0 0
  %2768 = vmatpush1.bf16.msra.mxu0 0
  %2769 = vmatprep.subr.bf16.mxu0 0
  %2770 = vmatpush1.bf16.msra.mxu0 0
  %2771 = vmatprep.subr.bf16.mxu0 0
  %2772 = vmatpush1.bf16.msra.mxu0 0
  %2773 = vmatprep.subr.bf16.mxu0 0
  %2774 = vmatpush1.bf16.msra.mxu0 0
  %2775 = vmatprep.subr.bf16.mxu0 0
  %2776 = vmatpush1.bf16.msra.mxu0 0
  %2777 = vmatprep.subr.bf16.mxu0 0
  %2778 = vmatpush1.bf16.msra.mxu0 0
  %2779 = vmatprep.subr.bf16.mxu0 0
  %2780 = vmatpush1.bf16.msra.mxu0 0
  %2781 = vmatprep.subr.bf16.mxu0 0
  %2782 = vmatpush1.bf16.msra.mxu0 0
  %2783 = vmatprep.mubr.bf16.mxu0 0
  %2784 = vmatmul.mubr.bf16.gmra.mrb[0].mxu0 %v1158
  %v2785 = vpop.f32.mrb[0].mxu0
  %v2786 = vadd.f32 %v1450, %v2785
  %v2787 = vpop.f32.mrb[0].mxu0
  %v2788 = vadd.f32 %v1454, %v2787
  %v2789 = vpop.f32.mrb[0].mxu0
  %v2790 = vpop.f32.mrb[0].mxu0
  %2791 = vdwg.mxu0
  %2792 = vmatprep.subr.bf16.mxu0 %v1566
  %2793 = vmatpush1.bf16.msra.mxu0 %v1565
  %2794 = vmatprep.subr.bf16.mxu0 %v1570
  %2795 = vmatpush1.bf16.msra.mxu0 %v1569
  %2796 = vmatprep.subr.bf16.mxu0 %v1574
  %2797 = vmatpush1.bf16.msra.mxu0 %v1573
  %2798 = vmatprep.subr.bf16.mxu0 %v1578
  %2799 = vmatpush1.bf16.msra.mxu0 %v1577
  %2800 = vmatprep.subr.bf16.mxu0 %v1582
  %2801 = vmatpush1.bf16.msra.mxu0 %v1581
  %2802 = vmatprep.subr.bf16.mxu0 %v1586
  %2803 = vmatpush1.bf16.msra.mxu0 %v1585
  %2804 = vmatprep.subr.bf16.mxu0 %v1590
  %2805 = vmatpush1.bf16.msra.mxu0 %v1589
  %2806 = vmatprep.subr.bf16.mxu0 %v1594
  %2807 = vmatpush1.bf16.msra.mxu0 %v1593
  %2808 = vmatprep.subr.bf16.mxu0 0
  %2809 = vmatpush1.bf16.msra.mxu0 0
  %2810 = vmatprep.subr.bf16.mxu0 0
  %2811 = vmatpush1.bf16.msra.mxu0 0
  %2812 = vmatprep.subr.bf16.mxu0 0
  %2813 = vmatpush1.bf16.msra.mxu0 0
  %2814 = vmatprep.subr.bf16.mxu0 0
  %2815 = vmatpush1.bf16.msra.mxu0 0
  %2816 = vmatprep.subr.bf16.mxu0 0
  %2817 = vmatpush1.bf16.msra.mxu0 0
  %2818 = vmatprep.subr.bf16.mxu0 0
  %2819 = vmatpush1.bf16.msra.mxu0 0
  %2820 = vmatprep.subr.bf16.mxu0 0
  %2821 = vmatpush1.bf16.msra.mxu0 0
  %2822 = vmatprep.subr.bf16.mxu0 0
  %2823 = vmatpush1.bf16.msra.mxu0 0
  %2824 = vmatprep.mubr.bf16.mxu0 0
  %2825 = vmatmul.mubr.bf16.gmra.mrb[0].mxu0 %v1158
  %v2826 = vpop.f32.mrb[0].mxu0
  %v2827 = vadd.f32 %v1458, %v2826
  %v2828 = vpop.f32.mrb[0].mxu0
  %v2829 = vadd.f32 %v1462, %v2828
  %v2830 = vpop.f32.mrb[0].mxu0
  %v2831 = vpop.f32.mrb[0].mxu0
  %2832 = vdwg.mxu0
  %v2833 = vpack.c.bf16 %v2750, %v2750
  %2834 = vmatprep.subr.bf16.mxu0 %v1806
  %2835 = vmatpush1.bf16.msra.mxu0 %v1805
  %2836 = vmatprep.subr.bf16.mxu0 %v1810
  %2837 = vmatpush1.bf16.msra.mxu0 %v1809
  %2838 = vmatprep.subr.bf16.mxu0 %v1814
  %2839 = vmatpush1.bf16.msra.mxu0 %v1813
  %2840 = vmatprep.subr.bf16.mxu0 %v1818
  %2841 = vmatpush1.bf16.msra.mxu0 %v1817
  %2842 = vmatprep.subr.bf16.mxu0 %v1822
  %2843 = vmatpush1.bf16.msra.mxu0 %v1821
  %2844 = vmatprep.subr.bf16.mxu0 %v1826
  %2845 = vmatpush1.bf16.msra.mxu0 %v1825
  %2846 = vmatprep.subr.bf16.mxu0 %v1830
  %2847 = vmatpush1.bf16.msra.mxu0 %v1829
  %2848 = vmatprep.subr.bf16.mxu0 %v1834
  %2849 = vmatpush1.bf16.msra.mxu0 %v1833
  %2850 = vmatprep.subr.bf16.mxu0 0
  %2851 = vmatpush1.bf16.msra.mxu0 0
  %2852 = vmatprep.subr.bf16.mxu0 0
  %2853 = vmatpush1.bf16.msra.mxu0 0
  %2854 = vmatprep.subr.bf16.mxu0 0
  %2855 = vmatpush1.bf16.msra.mxu0 0
  %2856 = vmatprep.subr.bf16.mxu0 0
  %2857 = vmatpush1.bf16.msra.mxu0 0
  %2858 = vmatprep.subr.bf16.mxu0 0
  %2859 = vmatpush1.bf16.msra.mxu0 0
  %2860 = vmatprep.subr.bf16.mxu0 0
  %2861 = vmatpush1.bf16.msra.mxu0 0
  %2862 = vmatprep.subr.bf16.mxu0 0
  %2863 = vmatpush1.bf16.msra.mxu0 0
  %2864 = vmatprep.subr.bf16.mxu0 0
  %2865 = vmatpush1.bf16.msra.mxu0 0
  %2866 = vmatprep.mubr.bf16.mxu0 0
  %2867 = vmatmul.mubr.bf16.gmra.mrb[0].mxu0 %v2833
  %v2868 = vpop.f32.mrb[0].mxu0
  %v2869 = vadd.f32 0.0, %v2868
  %v2870 = vpop.f32.mrb[0].mxu0
  %v2871 = vadd.f32 0.0, %v2870
  %v2872 = vpop.f32.mrb[0].mxu0
  %v2873 = vpop.f32.mrb[0].mxu0
  %2874 = vdwg.mxu0
  %2875 = vmatprep.subr.bf16.mxu0 %v1808
  %2876 = vmatpush1.bf16.msra.mxu0 %v1807
  %2877 = vmatprep.subr.bf16.mxu0 %v1812
  %2878 = vmatpush1.bf16.msra.mxu0 %v1811
  %2879 = vmatprep.subr.bf16.mxu0 %v1816
  %2880 = vmatpush1.bf16.msra.mxu0 %v1815
  %2881 = vmatprep.subr.bf16.mxu0 %v1820
  %2882 = vmatpush1.bf16.msra.mxu0 %v1819
  %2883 = vmatprep.subr.bf16.mxu0 %v1824
  %2884 = vmatpush1.bf16.msra.mxu0 %v1823
  %2885 = vmatprep.subr.bf16.mxu0 %v1828
  %2886 = vmatpush1.bf16.msra.mxu0 %v1827
  %2887 = vmatprep.subr.bf16.mxu0 %v1832
  %2888 = vmatpush1.bf16.msra.mxu0 %v1831
  %2889 = vmatprep.subr.bf16.mxu0 %v1836
  %2890 = vmatpush1.bf16.msra.mxu0 %v1835
  %2891 = vmatprep.subr.bf16.mxu0 0
  %2892 = vmatpush1.bf16.msra.mxu0 0
  %2893 = vmatprep.subr.bf16.mxu0 0
  %2894 = vmatpush1.bf16.msra.mxu0 0
  %2895 = vmatprep.subr.bf16.mxu0 0
  %2896 = vmatpush1.bf16.msra.mxu0 0
  %2897 = vmatprep.subr.bf16.mxu0 0
  %2898 = vmatpush1.bf16.msra.mxu0 0
  %2899 = vmatprep.subr.bf16.mxu0 0
  %2900 = vmatpush1.bf16.msra.mxu0 0
  %2901 = vmatprep.subr.bf16.mxu0 0
  %2902 = vmatpush1.bf16.msra.mxu0 0
  %2903 = vmatprep.subr.bf16.mxu0 0
  %2904 = vmatpush1.bf16.msra.mxu0 0
  %2905 = vmatprep.subr.bf16.mxu0 0
  %2906 = vmatpush1.bf16.msra.mxu0 0
  %2907 = vmatprep.mubr.bf16.mxu0 0
  %2908 = vmatmul.mubr.bf16.gmra.mrb[0].mxu0 %v2833
  %v2909 = vpop.f32.mrb[0].mxu0
  %v2910 = vadd.f32 0.0, %v2909
  %v2911 = vpop.f32.mrb[0].mxu0
  %v2912 = vadd.f32 0.0, %v2911
  %v2913 = vpop.f32.mrb[0].mxu0
  %v2914 = vpop.f32.mrb[0].mxu0
  %2915 = vdwg.mxu0
  %v2916 = vadd.f32 %v2786, %v2869
  %v2917 = vadd.f32 %v2788, %v2871
  %v2918 = vadd.f32 %v2827, %v2910
  %v2919 = vadd.f32 %v2829, %v2912
  %v2920 = vxor.u32 %v2916, 2147483648
  %v2921 = vmul.f32 %v2920, 1.442695
  %v2922 = vpow.pop %v2921
  %v2923 = vadd.f32 %v2922, 1.0
  %v2924 = vrcp.pop %v2923
  %v2925 = vmul.f32 1.0, %v2924
  %v2926 = vxor.u32 %v2917, 2147483648
  %v2927 = vmul.f32 %v2926, 1.442695
  %v2928 = vpow.pop %v2927
  %v2929 = vadd.f32 %v2928, 1.0
  %v2930 = vrcp.pop %v2929
  %v2931 = vmul.f32 1.0, %v2930
  %v2932 = vtanh.pop %v2918
  %v2933 = vxor.u32 %v2919, 2147483648
  %v2934 = vmul.f32 %v2933, 1.442695
  %v2935 = vpow.pop %v2934
  %v2936 = vadd.f32 %v2935, 1.0
  %v2937 = vrcp.pop %v2936
  %v2938 = vmul.f32 1.0, %v2937
  %v2939 = vmul.f32 %v2931, %v2748
  %v2940 = vmul.f32 %v2925, %v2932
  %v2941 = vadd.f32 %v2939, %v2940
  %v2942 = vtanh.pop %v2941
  %v2943 = vmul.f32 %v2938, %v2942
  %v2944 = vpack.c.bf16 %v2943, %v2943
  %2945 = vmatprep.subr.bf16.mxu0 %v1564
  %2946 = vmatpush1.bf16.msra.mxu0 %v1563
  %2947 = vmatprep.subr.bf16.mxu0 %v1568
  %2948 = vmatpush1.bf16.msra.mxu0 %v1567
  %2949 = vmatprep.subr.bf16.mxu0 %v1572
  %2950 = vmatpush1.bf16.msra.mxu0 %v1571
  %2951 = vmatprep.subr.bf16.mxu0 %v1576
  %2952 = vmatpush1.bf16.msra.mxu0 %v1575
  %2953 = vmatprep.subr.bf16.mxu0 %v1580
  %2954 = vmatpush1.bf16.msra.mxu0 %v1579
  %2955 = vmatprep.subr.bf16.mxu0 %v1584
  %2956 = vmatpush1.bf16.msra.mxu0 %v1583
  %2957 = vmatprep.subr.bf16.mxu0 %v1588
  %2958 = vmatpush1.bf16.msra.mxu0 %v1587
  %2959 = vmatprep.subr.bf16.mxu0 %v1592
  %2960 = vmatpush1.bf16.msra.mxu0 %v1591
  %2961 = vmatprep.subr.bf16.mxu0 0
  %2962 = vmatpush1.bf16.msra.mxu0 0
  %2963 = vmatprep.subr.bf16.mxu0 0
  %2964 = vmatpush1.bf16.msra.mxu0 0
  %2965 = vmatprep.subr.bf16.mxu0 0
  %2966 = vmatpush1.bf16.msra.mxu0 0
  %2967 = vmatprep.subr.bf16.mxu0 0
  %2968 = vmatpush1.bf16.msra.mxu0 0
  %2969 = vmatprep.subr.bf16.mxu0 0
  %2970 = vmatpush1.bf16.msra.mxu0 0
  %2971 = vmatprep.subr.bf16.mxu0 0
  %2972 = vmatpush1.bf16.msra.mxu0 0
  %2973 = vmatprep.subr.bf16.mxu0 0
  %2974 = vmatpush1.bf16.msra.mxu0 0
  %2975 = vmatprep.subr.bf16.mxu0 0
  %2976 = vmatpush1.bf16.msra.mxu0 0
  %2977 = vmatprep.mubr.bf16.mxu0 0
  %2978 = vmatmul.mubr.bf16.gmra.mrb[0].mxu0 %v1269
  %v2979 = vpop.f32.mrb[0].mxu0
  %v2980 = vadd.f32 %v1450, %v2979
  %v2981 = vpop.f32.mrb[0].mxu0
  %v2982 = vadd.f32 %v1454, %v2981
  %v2983 = vpop.f32.mrb[0].mxu0
  %v2984 = vpop.f32.mrb[0].mxu0
  %2985 = vdwg.mxu0
  %2986 = vmatprep.subr.bf16.mxu0 %v1566
  %2987 = vmatpush1.bf16.msra.mxu0 %v1565
  %2988 = vmatprep.subr.bf16.mxu0 %v1570
  %2989 = vmatpush1.bf16.msra.mxu0 %v1569
  %2990 = vmatprep.subr.bf16.mxu0 %v1574
  %2991 = vmatpush1.bf16.msra.mxu0 %v1573
  %2992 = vmatprep.subr.bf16.mxu0 %v1578
  %2993 = vmatpush1.bf16.msra.mxu0 %v1577
  %2994 = vmatprep.subr.bf16.mxu0 %v1582
  %2995 = vmatpush1.bf16.msra.mxu0 %v1581
  %2996 = vmatprep.subr.bf16.mxu0 %v1586
  %2997 = vmatpush1.bf16.msra.mxu0 %v1585
  %2998 = vmatprep.subr.bf16.mxu0 %v1590
  %2999 = vmatpush1.bf16.msra.mxu0 %v1589
  %3000 = vmatprep.subr.bf16.mxu0 %v1594
  %3001 = vmatpush1.bf16.msra.mxu0 %v1593
  %3002 = vmatprep.subr.bf16.mxu0 0
  %3003 = vmatpush1.bf16.msra.mxu0 0
  %3004 = vmatprep.subr.bf16.mxu0 0
  %3005 = vmatpush1.bf16.msra.mxu0 0
  %3006 = vmatprep.subr.bf16.mxu0 0
  %3007 = vmatpush1.bf16.msra.mxu0 0
  %3008 = vmatprep.subr.bf16.mxu0 0
  %3009 = vmatpush1.bf16.msra.mxu0 0
  %3010 = vmatprep.subr.bf16.mxu0 0
  %3011 = vmatpush1.bf16.msra.mxu0 0
  %3012 = vmatprep.subr.bf16.mxu0 0
  %3013 = vmatpush1.bf16.msra.mxu0 0
  %3014 = vmatprep.subr.bf16.mxu0 0
  %3015 = vmatpush1.bf16.msra.mxu0 0
  %3016 = vmatprep.subr.bf16.mxu0 0
  %3017 = vmatpush1.bf16.msra.mxu0 0
  %3018 = vmatprep.mubr.bf16.mxu0 0
  %3019 = vmatmul.mubr.bf16.gmra.mrb[0].mxu0 %v1269
  %v3020 = vpop.f32.mrb[0].mxu0
  %v3021 = vadd.f32 %v1458, %v3020
  %v3022 = vpop.f32.mrb[0].mxu0
  %v3023 = vadd.f32 %v1462, %v3022
  %v3024 = vpop.f32.mrb[0].mxu0
  %v3025 = vpop.f32.mrb[0].mxu0
  %3026 = vdwg.mxu0
  %3027 = vmatprep.subr.bf16.mxu0 %v1806
  %3028 = vmatpush1.bf16.msra.mxu0 %v1805
  %3029 = vmatprep.subr.bf16.mxu0 %v1810
  %3030 = vmatpush1.bf16.msra.mxu0 %v1809
  %3031 = vmatprep.subr.bf16.mxu0 %v1814
  %3032 = vmatpush1.bf16.msra.mxu0 %v1813
  %3033 = vmatprep.subr.bf16.mxu0 %v1818
  %3034 = vmatpush1.bf16.msra.mxu0 %v1817
  %3035 = vmatprep.subr.bf16.mxu0 %v1822
  %3036 = vmatpush1.bf16.msra.mxu0 %v1821
  %3037 = vmatprep.subr.bf16.mxu0 %v1826
  %3038 = vmatpush1.bf16.msra.mxu0 %v1825
  %3039 = vmatprep.subr.bf16.mxu0 %v1830
  %3040 = vmatpush1.bf16.msra.mxu0 %v1829
  %3041 = vmatprep.subr.bf16.mxu0 %v1834
  %3042 = vmatpush1.bf16.msra.mxu0 %v1833
  %3043 = vmatprep.subr.bf16.mxu0 0
  %3044 = vmatpush1.bf16.msra.mxu0 0
  %3045 = vmatprep.subr.bf16.mxu0 0
  %3046 = vmatpush1.bf16.msra.mxu0 0
  %3047 = vmatprep.subr.bf16.mxu0 0
  %3048 = vmatpush1.bf16.msra.mxu0 0
  %3049 = vmatprep.subr.bf16.mxu0 0
  %3050 = vmatpush1.bf16.msra.mxu0 0
  %3051 = vmatprep.subr.bf16.mxu0 0
  %3052 = vmatpush1.bf16.msra.mxu0 0
  %3053 = vmatprep.subr.bf16.mxu0 0
  %3054 = vmatpush1.bf16.msra.mxu0 0
  %3055 = vmatprep.subr.bf16.mxu0 0
  %3056 = vmatpush1.bf16.msra.mxu0 0
  %3057 = vmatprep.subr.bf16.mxu0 0
  %3058 = vmatpush1.bf16.msra.mxu0 0
  %3059 = vmatprep.mubr.bf16.mxu0 0
  %3060 = vmatmul.mubr.bf16.gmra.mrb[0].mxu0 %v2944
  %v3061 = vpop.f32.mrb[0].mxu0
  %v3062 = vadd.f32 0.0, %v3061
  %v3063 = vpop.f32.mrb[0].mxu0
  %v3064 = vadd.f32 0.0, %v3063
  %v3065 = vpop.f32.mrb[0].mxu0
  %v3066 = vpop.f32.mrb[0].mxu0
  %3067 = vdwg.mxu0
  %3068 = vmatprep.subr.bf16.mxu0 %v1808
  %3069 = vmatpush1.bf16.msra.mxu0 %v1807
  %3070 = vmatprep.subr.bf16.mxu0 %v1812
  %3071 = vmatpush1.bf16.msra.mxu0 %v1811
  %3072 = vmatprep.subr.bf16.mxu0 %v1816
  %3073 = vmatpush1.bf16.msra.mxu0 %v1815
  %3074 = vmatprep.subr.bf16.mxu0 %v1820
  %3075 = vmatpush1.bf16.msra.mxu0 %v1819
  %3076 = vmatprep.subr.bf16.mxu0 %v1824
  %3077 = vmatpush1.bf16.msra.mxu0 %v1823
  %3078 = vmatprep.subr.bf16.mxu0 %v1828
  %3079 = vmatpush1.bf16.msra.mxu0 %v1827
  %3080 = vmatprep.subr.bf16.mxu0 %v1832
  %3081 = vmatpush1.bf16.msra.mxu0 %v1831
  %3082 = vmatprep.subr.bf16.mxu0 %v1836
  %3083 = vmatpush1.bf16.msra.mxu0 %v1835
  %3084 = vmatprep.subr.bf16.mxu0 0
  %3085 = vmatpush1.bf16.msra.mxu0 0
  %3086 = vmatprep.subr.bf16.mxu0 0
  %3087 = vmatpush1.bf16.msra.mxu0 0
  %3088 = vmatprep.subr.bf16.mxu0 0
  %3089 = vmatpush1.bf16.msra.mxu0 0
  %3090 = vmatprep.subr.bf16.mxu0 0
  %3091 = vmatpush1.bf16.msra.mxu0 0
  %3092 = vmatprep.subr.bf16.mxu0 0
  %3093 = vmatpush1.bf16.msra.mxu0 0
  %3094 = vmatprep.subr.bf16.mxu0 0
  %3095 = vmatpush1.bf16.msra.mxu0 0
  %3096 = vmatprep.subr.bf16.mxu0 0
  %3097 = vmatpush1.bf16.msra.mxu0 0
  %3098 = vmatprep.subr.bf16.mxu0 0
  %3099 = vmatpush1.bf16.msra.mxu0 0
  %3100 = vmatprep.mubr.bf16.mxu0 0
  %3101 = vmatmul.mubr.bf16.gmra.mrb[0].mxu0 %v2944
  %v3102 = vpop.f32.mrb[0].mxu0
  %v3103 = vadd.f32 0.0, %v3102
  %v3104 = vpop.f32.mrb[0].mxu0
  %v3105 = vadd.f32 0.0, %v3104
  %v3106 = vpop.f32.mrb[0].mxu0
  %v3107 = vpop.f32.mrb[0].mxu0
  %3108 = vdwg.mxu0
  %v3109 = vadd.f32 %v2980, %v3062
  %v3110 = vadd.f32 %v2982, %v3064
  %v3111 = vadd.f32 %v3021, %v3103
  %v3112 = vadd.f32 %v3023, %v3105
  %v3113 = vxor.u32 %v3109, 2147483648
  %v3114 = vmul.f32 %v3113, 1.442695
  %v3115 = vpow.pop %v3114
  %v3116 = vadd.f32 %v3115, 1.0
  %v3117 = vrcp.pop %v3116
  %v3118 = vmul.f32 1.0, %v3117
  %v3119 = vxor.u32 %v3110, 2147483648
  %v3120 = vmul.f32 %v3119, 1.442695
  %v3121 = vpow.pop %v3120
  %v3122 = vadd.f32 %v3121, 1.0
  %v3123 = vrcp.pop %v3122
  %v3124 = vmul.f32 1.0, %v3123
  %v3125 = vtanh.pop %v3111
  %v3126 = vxor.u32 %v3112, 2147483648
  %v3127 = vmul.f32 %v3126, 1.442695
  %v3128 = vpow.pop %v3127
  %v3129 = vadd.f32 %v3128, 1.0
  %v3130 = vrcp.pop %v3129
  %v3131 = vmul.f32 1.0, %v3130
  %v3132 = vmul.f32 %v3124, %v2941
  %v3133 = vmul.f32 %v3118, %v3125
  %v3134 = vadd.f32 %v3132, %v3133
  %v3135 = vtanh.pop %v3134
  %v3136 = vmul.f32 %v3131, %v3135
  %3137 = vmatprep.subr.bf16.mxu0 %v1564
  %3138 = vmatpush1.bf16.msra.mxu0 %v1563
  %3139 = vmatprep.subr.bf16.mxu0 %v1568
  %3140 = vmatpush1.bf16.msra.mxu0 %v1567
  %3141 = vmatprep.subr.bf16.mxu0 %v1572
  %3142 = vmatpush1.bf16.msra.mxu0 %v1571
  %3143 = vmatprep.subr.bf16.mxu0 %v1576
  %3144 = vmatpush1.bf16.msra.mxu0 %v1575
  %3145 = vmatprep.subr.bf16.mxu0 %v1580
  %3146 = vmatpush1.bf16.msra.mxu0 %v1579
  %3147 = vmatprep.subr.bf16.mxu0 %v1584
  %3148 = vmatpush1.bf16.msra.mxu0 %v1583
  %3149 = vmatprep.subr.bf16.mxu0 %v1588
  %3150 = vmatpush1.bf16.msra.mxu0 %v1587
  %3151 = vmatprep.subr.bf16.mxu0 %v1592
  %3152 = vmatpush1.bf16.msra.mxu0 %v1591
  %3153 = vmatprep.subr.bf16.mxu0 0
  %3154 = vmatpush1.bf16.msra.mxu0 0
  %3155 = vmatprep.subr.bf16.mxu0 0
  %3156 = vmatpush1.bf16.msra.mxu0 0
  %3157 = vmatprep.subr.bf16.mxu0 0
  %3158 = vmatpush1.bf16.msra.mxu0 0
  %3159 = vmatprep.subr.bf16.mxu0 0
  %3160 = vmatpush1.bf16.msra.mxu0 0
  %3161 = vmatprep.subr.bf16.mxu0 0
  %3162 = vmatpush1.bf16.msra.mxu0 0
  %3163 = vmatprep.subr.bf16.mxu0 0
  %3164 = vmatpush1.bf16.msra.mxu0 0
  %3165 = vmatprep.subr.bf16.mxu0 0
  %3166 = vmatpush1.bf16.msra.mxu0 0
  %3167 = vmatprep.subr.bf16.mxu0 0
  %3168 = vmatpush1.bf16.msra.mxu0 0
  %3169 = vmatprep.mubr.bf16.mxu0 0
  %3170 = vmatmul.mubr.bf16.gmra.mrb[0].mxu0 %v1380
  %v3171 = vpop.f32.mrb[0].mxu0
  %v3172 = vadd.f32 %v1450, %v3171
  %v3173 = vpop.f32.mrb[0].mxu0
  %v3174 = vadd.f32 %v1454, %v3173
  %v3175 = vpop.f32.mrb[0].mxu0
  %v3176 = vpop.f32.mrb[0].mxu0
  %3177 = vdwg.mxu0
  %3178 = vmatprep.subr.bf16.mxu0 %v1566
  %3179 = vmatpush1.bf16.msra.mxu0 %v1565
  %3180 = vmatprep.subr.bf16.mxu0 %v1570
  %3181 = vmatpush1.bf16.msra.mxu0 %v1569
  %3182 = vmatprep.subr.bf16.mxu0 %v1574
  %3183 = vmatpush1.bf16.msra.mxu0 %v1573
  %3184 = vmatprep.subr.bf16.mxu0 %v1578
  %3185 = vmatpush1.bf16.msra.mxu0 %v1577
  %3186 = vmatprep.subr.bf16.mxu0 %v1582
  %3187 = vmatpush1.bf16.msra.mxu0 %v1581
  %3188 = vmatprep.subr.bf16.mxu0 %v1586
  %3189 = vmatpush1.bf16.msra.mxu0 %v1585
  %3190 = vmatprep.subr.bf16.mxu0 %v1590
  %3191 = vmatpush1.bf16.msra.mxu0 %v1589
  %3192 = vmatprep.subr.bf16.mxu0 %v1594
  %3193 = vmatpush1.bf16.msra.mxu0 %v1593
  %3194 = vmatprep.subr.bf16.mxu0 0
  %3195 = vmatpush1.bf16.msra.mxu0 0
  %3196 = vmatprep.subr.bf16.mxu0 0
  %3197 = vmatpush1.bf16.msra.mxu0 0
  %3198 = vmatprep.subr.bf16.mxu0 0
  %3199 = vmatpush1.bf16.msra.mxu0 0
  %3200 = vmatprep.subr.bf16.mxu0 0
  %3201 = vmatpush1.bf16.msra.mxu0 0
  %3202 = vmatprep.subr.bf16.mxu0 0
  %3203 = vmatpush1.bf16.msra.mxu0 0
  %3204 = vmatprep.subr.bf16.mxu0 0
  %3205 = vmatpush1.bf16.msra.mxu0 0
  %3206 = vmatprep.subr.bf16.mxu0 0
  %3207 = vmatpush1.bf16.msra.mxu0 0
  %3208 = vmatprep.subr.bf16.mxu0 0
  %3209 = vmatpush1.bf16.msra.mxu0 0
  %3210 = vmatprep.mubr.bf16.mxu0 0
  %3211 = vmatmul.mubr.bf16.gmra.mrb[0].mxu0 %v1380
  %v3212 = vpop.f32.mrb[0].mxu0
  %v3213 = vadd.f32 %v1458, %v3212
  %v3214 = vpop.f32.mrb[0].mxu0
  %v3215 = vadd.f32 %v1462, %v3214
  %v3216 = vpop.f32.mrb[0].mxu0
  %v3217 = vpop.f32.mrb[0].mxu0
  %3218 = vdwg.mxu0
  %v3219 = vpack.c.bf16 %v3136, %v3136
  %3220 = vmatprep.subr.bf16.mxu0 %v1806
  %3221 = vmatpush1.bf16.msra.mxu0 %v1805
  %3222 = vmatprep.subr.bf16.mxu0 %v1810
  %3223 = vmatpush1.bf16.msra.mxu0 %v1809
  %3224 = vmatprep.subr.bf16.mxu0 %v1814
  %3225 = vmatpush1.bf16.msra.mxu0 %v1813
  %3226 = vmatprep.subr.bf16.mxu0 %v1818
  %3227 = vmatpush1.bf16.msra.mxu0 %v1817
  %3228 = vmatprep.subr.bf16.mxu0 %v1822
  %3229 = vmatpush1.bf16.msra.mxu0 %v1821
  %3230 = vmatprep.subr.bf16.mxu0 %v1826
  %3231 = vmatpush1.bf16.msra.mxu0 %v1825
  %3232 = vmatprep.subr.bf16.mxu0 %v1830
  %3233 = vmatpush1.bf16.msra.mxu0 %v1829
  %3234 = vmatprep.subr.bf16.mxu0 %v1834
  %3235 = vmatpush1.bf16.msra.mxu0 %v1833
  %3236 = vmatprep.subr.bf16.mxu0 0
  %3237 = vmatpush1.bf16.msra.mxu0 0
  %3238 = vmatprep.subr.bf16.mxu0 0
  %3239 = vmatpush1.bf16.msra.mxu0 0
  %3240 = vmatprep.subr.bf16.mxu0 0
  %3241 = vmatpush1.bf16.msra.mxu0 0
  %3242 = vmatprep.subr.bf16.mxu0 0
  %3243 = vmatpush1.bf16.msra.mxu0 0
  %3244 = vmatprep.subr.bf16.mxu0 0
  %3245 = vmatpush1.bf16.msra.mxu0 0
  %3246 = vmatprep.subr.bf16.mxu0 0
  %3247 = vmatpush1.bf16.msra.mxu0 0
  %3248 = vmatprep.subr.bf16.mxu0 0
  %3249 = vmatpush1.bf16.msra.mxu0 0
  %3250 = vmatprep.subr.bf16.mxu0 0
  %3251 = vmatpush1.bf16.msra.mxu0 0
  %3252 = vmatprep.mubr.bf16.mxu0 0
  %3253 = vmatmul.mubr.bf16.gmra.mrb[0].mxu0 %v3219
  %v3254 = vpop.f32.mrb[0].mxu0
  %v3255 = vadd.f32 0.0, %v3254
  %v3256 = vpop.f32.mrb[0].mxu0
  %v3257 = vadd.f32 0.0, %v3256
  %v3258 = vpop.f32.mrb[0].mxu0
  %v3259 = vpop.f32.mrb[0].mxu0
  %3260 = vdwg.mxu0
  %3261 = vmatprep.subr.bf16.mxu0 %v1808
  %3262 = vmatpush1.bf16.msra.mxu0 %v1807
  %3263 = vmatprep.subr.bf16.mxu0 %v1812
  %3264 = vmatpush1.bf16.msra.mxu0 %v1811
  %3265 = vmatprep.subr.bf16.mxu0 %v1816
  %3266 = vmatpush1.bf16.msra.mxu0 %v1815
  %3267 = vmatprep.subr.bf16.mxu0 %v1820
  %3268 = vmatpush1.bf16.msra.mxu0 %v1819
  %3269 = vmatprep.subr.bf16.mxu0 %v1824
  %3270 = vmatpush1.bf16.msra.mxu0 %v1823
  %3271 = vmatprep.subr.bf16.mxu0 %v1828
  %3272 = vmatpush1.bf16.msra.mxu0 %v1827
  %3273 = vmatprep.subr.bf16.mxu0 %v1832
  %3274 = vmatpush1.bf16.msra.mxu0 %v1831
  %3275 = vmatprep.subr.bf16.mxu0 %v1836
  %3276 = vmatpush1.bf16.msra.mxu0 %v1835
  %3277 = vmatprep.subr.bf16.mxu0 0
  %3278 = vmatpush1.bf16.msra.mxu0 0
  %3279 = vmatprep.subr.bf16.mxu0 0
  %3280 = vmatpush1.bf16.msra.mxu0 0
  %3281 = vmatprep.subr.bf16.mxu0 0
  %3282 = vmatpush1.bf16.msra.mxu0 0
  %3283 = vmatprep.subr.bf16.mxu0 0
  %3284 = vmatpush1.bf16.msra.mxu0 0
  %3285 = vmatprep.subr.bf16.mxu0 0
  %3286 = vmatpush1.bf16.msra.mxu0 0
  %3287 = vmatprep.subr.bf16.mxu0 0
  %3288 = vmatpush1.bf16.msra.mxu0 0
  %3289 = vmatprep.subr.bf16.mxu0 0
  %3290 = vmatpush1.bf16.msra.mxu0 0
  %3291 = vmatprep.subr.bf16.mxu0 0
  %3292 = vmatpush1.bf16.msra.mxu0 0
  %3293 = vmatprep.mubr.bf16.mxu0 0
  %3294 = vmatmul.mubr.bf16.gmra.mrb[0].mxu0 %v3219
  %v3295 = vpop.f32.mrb[0].mxu0
  %v3296 = vadd.f32 0.0, %v3295
  %v3297 = vpop.f32.mrb[0].mxu0
  %v3298 = vadd.f32 0.0, %v3297
  %v3299 = vpop.f32.mrb[0].mxu0
  %v3300 = vpop.f32.mrb[0].mxu0
  %3301 = vdwg.mxu0
  %v3302 = vadd.f32 %v3172, %v3255
  %v3303 = vadd.f32 %v3174, %v3257
  %v3304 = vadd.f32 %v3213, %v3296
  %v3305 = vadd.f32 %v3215, %v3298
  %v3306 = vxor.u32 %v3302, 2147483648
  %v3307 = vmul.f32 %v3306, 1.442695
  %v3308 = vpow.pop %v3307
  %v3309 = vadd.f32 %v3308, 1.0
  %v3310 = vrcp.pop %v3309
  %v3311 = vmul.f32 1.0, %v3310
  %v3312 = vxor.u32 %v3303, 2147483648
  %v3313 = vmul.f32 %v3312, 1.442695
  %v3314 = vpow.pop %v3313
  %v3315 = vadd.f32 %v3314, 1.0
  %v3316 = vrcp.pop %v3315
  %v3317 = vmul.f32 1.0, %v3316
  %v3318 = vtanh.pop %v3304
  %v3319 = vxor.u32 %v3305, 2147483648
  %v3320 = vmul.f32 %v3319, 1.442695
  %v3321 = vpow.pop %v3320
  %v3322 = vadd.f32 %v3321, 1.0
  %v3323 = vrcp.pop %v3322
  %v3324 = vmul.f32 1.0, %v3323
  %v3325 = vmul.f32 %v3317, %v3134
  %v3326 = vmul.f32 %v3311, %v3318
  %v3327 = vadd.f32 %v3325, %v3326
  %v3328 = vtanh.pop %v3327
  %v3329 = vmul.f32 %v3324, %v3328
  %v3330 = vpack.c.bf16 %v3329, %v3329
  %v3331 = vld [vmem:[%s7] sm:$0xf]
  %v3332 = vld [vmem:[%s7 + $0x4] sm:$0xf]
  %v3333 = vld [vmem:[%s7 + $0x8] sm:$0xf]
  %v3334 = vld [vmem:[%s7 + $0xc] sm:$0xf]
  %v3335 = vld [vmem:[%s7 + $0x10] sm:$0xf]
  %v3336 = vld [vmem:[%s7 + $0x14] sm:$0xf]
  %v3337 = vld [vmem:[%s7 + $0x18] sm:$0xf]
  %v3338 = vld [vmem:[%s7 + $0x1c] sm:$0xf]
  %v3339 = vld [vmem:[%s7 + $0x20] sm:$0xf]
  %v3340 = vld [vmem:[%s7 + $0x24] sm:$0xf]
  %v3341 = vld [vmem:[%s7 + $0x28] sm:$0xf]
  %v3342 = vld [vmem:[%s7 + $0x2c] sm:$0xf]
  %v3343 = vld [vmem:[%s7 + $0x30] sm:$0xf]
  %v3344 = vld [vmem:[%s7 + $0x34] sm:$0xf]
  %v3345 = vld [vmem:[%s7 + $0x38] sm:$0xf]
  %v3346 = vld [vmem:[%s7 + $0x3c] sm:$0xf]
  %v3347 = vld [vmem:[%s8] sm:$0xf]
  %v3348 = vld [vmem:[%s8 + $0x4] sm:$0xf]
  %v3349 = vld [vmem:[%s8 + $0x8] sm:$0xf]
  %v3350 = vld [vmem:[%s8 + $0xc] sm:$0xf]
  %v3351 = vld [vmem:[%s8 + $0x10] sm:$0xf]
  %v3352 = vld [vmem:[%s8 + $0x14] sm:$0xf]
  %v3353 = vld [vmem:[%s8 + $0x18] sm:$0xf]
  %v3354 = vld [vmem:[%s8 + $0x1c] sm:$0xf]
  %v3355 = vld [vmem:[%s8 + $0x20] sm:$0xf]
  %v3356 = vld [vmem:[%s8 + $0x24] sm:$0xf]
  %v3357 = vld [vmem:[%s8 + $0x28] sm:$0xf]
  %v3358 = vld [vmem:[%s8 + $0x2c] sm:$0xf]
  %v3359 = vld [vmem:[%s8 + $0x30] sm:$0xf]
  %v3360 = vld [vmem:[%s8 + $0x34] sm:$0xf]
  %v3361 = vld [vmem:[%s8 + $0x38] sm:$0xf]
  %v3362 = vld [vmem:[%s8 + $0x3c] sm:$0xf]
  %v3379 = vunpack.c.l.b16 %v3347
  %v3380 = vunpack.c.l.b16 %v3348
  %v3381 = vunpack.c.l.b16 %v3349
  %v3382 = vunpack.c.l.b16 %v3350
  %v3383 = vunpack.c.l.b16 %v3351
  %v3384 = vunpack.c.l.b16 %v3352
  %v3385 = vunpack.c.l.b16 %v3353
  %v3386 = vunpack.c.l.b16 %v3354
  %v3387 = vunpack.c.l.b16 %v3355
  %v3388 = vunpack.c.l.b16 %v3356
  %v3389 = vunpack.c.l.b16 %v3357
  %v3390 = vunpack.c.l.b16 %v3358
  %v3391 = vunpack.c.l.b16 %v3359
  %v3392 = vunpack.c.l.b16 %v3360
  %v3393 = vunpack.c.l.b16 %v3361
  %v3394 = vunpack.c.l.b16 %v3362
  %v3395 = vpack.c.b16 %v3380, %v3379
  %v3396 = vpack.c.b16 %v3382, %v3381
  %v3397 = vpack.c.b16 %v3384, %v3383
  %v3398 = vpack.c.b16 %v3386, %v3385
  %v3399 = vpack.c.b16 %v3388, %v3387
  %v3400 = vpack.c.b16 %v3390, %v3389
  %v3401 = vpack.c.b16 %v3392, %v3391
  %v3402 = vpack.c.b16 %v3394, %v3393
  %3411 = vmatprep.subr.bf16.mxu0 0
  %3412 = vmatpush1.bf16.msra.mxu0 %v3395
  %3413 = vmatprep.subr.bf16.mxu0 0
  %3414 = vmatpush1.bf16.msra.mxu0 %v3396
  %3415 = vmatprep.subr.bf16.mxu0 0
  %3416 = vmatpush1.bf16.msra.mxu0 %v3397
  %3417 = vmatprep.subr.bf16.mxu0 0
  %3418 = vmatpush1.bf16.msra.mxu0 %v3398
  %3419 = vmatprep.subr.bf16.mxu0 0
  %3420 = vmatpush1.bf16.msra.mxu0 %v3399
  %3421 = vmatprep.subr.bf16.mxu0 0
  %3422 = vmatpush1.bf16.msra.mxu0 %v3400
  %3423 = vmatprep.subr.bf16.mxu0 0
  %3424 = vmatpush1.bf16.msra.mxu0 %v3401
  %3425 = vmatprep.subr.bf16.mxu0 0
  %3426 = vmatpush1.bf16.msra.mxu0 %v3402
  %3427 = vmatprep.subr.bf16.mxu0 0
  %3428 = vmatpush1.bf16.msra.mxu0 0
  %3429 = vmatprep.subr.bf16.mxu0 0
  %3430 = vmatpush1.bf16.msra.mxu0 0
  %3431 = vmatprep.subr.bf16.mxu0 0
  %3432 = vmatpush1.bf16.msra.mxu0 0
  %3433 = vmatprep.subr.bf16.mxu0 0
  %3434 = vmatpush1.bf16.msra.mxu0 0
  %3435 = vmatprep.subr.bf16.mxu0 0
  %3436 = vmatpush1.bf16.msra.mxu0 0
  %3437 = vmatprep.subr.bf16.mxu0 0
  %3438 = vmatpush1.bf16.msra.mxu0 0
  %3439 = vmatprep.subr.bf16.mxu0 0
  %3440 = vmatpush1.bf16.msra.mxu0 0
  %3441 = vmatprep.subr.bf16.mxu0 0
  %3442 = vmatpush1.bf16.msra.mxu0 0
  %3443 = vmatprep.mubr.bf16.mxu0 0
  %3444 = vmatmul.mubr.bf16.gmra.mrb[0].mxu0 %v2944
  %v3445 = vpop.f32.mrb[0].mxu0
  %v3446 = vadd.f32 0.0, %v3445
  %v3447 = vpop.f32.mrb[0].mxu0
  %v3448 = vpop.f32.mrb[0].mxu0
  %v3449 = vpop.f32.mrb[0].mxu0
  %3450 = vdwg.mxu0
  %v3467 = vunpack.c.l.b16 %v3331
  %v3468 = vunpack.c.l.b16 %v3332
  %v3469 = vunpack.c.l.b16 %v3333
  %v3470 = vunpack.c.l.b16 %v3334
  %v3471 = vunpack.c.l.b16 %v3335
  %v3472 = vunpack.c.l.b16 %v3336
  %v3473 = vunpack.c.l.b16 %v3337
  %v3474 = vunpack.c.l.b16 %v3338
  %v3475 = vunpack.c.l.b16 %v3339
  %v3476 = vunpack.c.l.b16 %v3340
  %v3477 = vunpack.c.l.b16 %v3341
  %v3478 = vunpack.c.l.b16 %v3342
  %v3479 = vunpack.c.l.b16 %v3343
  %v3480 = vunpack.c.l.b16 %v3344
  %v3481 = vunpack.c.l.b16 %v3345
  %v3482 = vunpack.c.l.b16 %v3346
  %v3483 = vpack.c.b16 %v3468, %v3467
  %v3484 = vpack.c.b16 %v3470, %v3469
  %v3485 = vpack.c.b16 %v3472, %v3471
  %v3486 = vpack.c.b16 %v3474, %v3473
  %v3487 = vpack.c.b16 %v3476, %v3475
  %v3488 = vpack.c.b16 %v3478, %v3477
  %v3489 = vpack.c.b16 %v3480, %v3479
  %v3490 = vpack.c.b16 %v3482, %v3481
  %3499 = vmatprep.subr.bf16.mxu0 0
  %3500 = vmatpush1.bf16.msra.mxu0 %v3483
  %3501 = vmatprep.subr.bf16.mxu0 0
  %3502 = vmatpush1.bf16.msra.mxu0 %v3484
  %3503 = vmatprep.subr.bf16.mxu0 0
  %3504 = vmatpush1.bf16.msra.mxu0 %v3485
  %3505 = vmatprep.subr.bf16.mxu0 0
  %3506 = vmatpush1.bf16.msra.mxu0 %v3486
  %3507 = vmatprep.subr.bf16.mxu0 0
  %3508 = vmatpush1.bf16.msra.mxu0 %v3487
  %3509 = vmatprep.subr.bf16.mxu0 0
  %3510 = vmatpush1.bf16.msra.mxu0 %v3488
  %3511 = vmatprep.subr.bf16.mxu0 0
  %3512 = vmatpush1.bf16.msra.mxu0 %v3489
  %3513 = vmatprep.subr.bf16.mxu0 0
  %3514 = vmatpush1.bf16.msra.mxu0 %v3490
  %3515 = vmatprep.subr.bf16.mxu0 0
  %3516 = vmatpush1.bf16.msra.mxu0 0
  %3517 = vmatprep.subr.bf16.mxu0 0
  %3518 = vmatpush1.bf16.msra.mxu0 0
  %3519 = vmatprep.subr.bf16.mxu0 0
  %3520 = vmatpush1.bf16.msra.mxu0 0
  %3521 = vmatprep.subr.bf16.mxu0 0
  %3522 = vmatpush1.bf16.msra.mxu0 0
  %3523 = vmatprep.subr.bf16.mxu0 0
  %3524 = vmatpush1.bf16.msra.mxu0 0
  %3525 = vmatprep.subr.bf16.mxu0 0
  %3526 = vmatpush1.bf16.msra.mxu0 0
  %3527 = vmatprep.subr.bf16.mxu0 0
  %3528 = vmatpush1.bf16.msra.mxu0 0
  %3529 = vmatprep.subr.bf16.mxu0 0
  %3530 = vmatpush1.bf16.msra.mxu0 0
  %3531 = vmatprep.mubr.bf16.mxu0 0
  %3532 = vmatmul.mubr.bf16.gmra.mrb[0].mxu0 %v3330
  %v3533 = vpop.f32.mrb[0].mxu0
  %v3534 = vadd.f32 %v3446, %v3533
  %v3535 = vpop.f32.mrb[0].mxu0
  %v3536 = vpop.f32.mrb[0].mxu0
  %v3537 = vpop.f32.mrb[0].mxu0
  %3538 = vdwg.mxu0
  %v3539 = vld [vmem:[%s9] sm:$0x1]
  %v3541 = vlaneseq
  %v3542 = vshrl.u32 %v3541, 7
  %v3543 = vsub.s32 0, %v3542
  %v3544 = vrot.slane %v3539, %v3543
  %v3546 = vadd.f32 %v3534, %v3544
  %vm3547 = vcmp.gt.f32.partialorder %v3546, 0.0
  %v3548 = vmul.f32 %v3546, 0.01
  %v3549 = vsel %vm3547, %v3546, %v3548
  %v3550 = vld [vmem:[%s10] sm:$0x1]
  %v3552 = vlaneseq
  %v3553 = vshrl.u32 %v3552, 7
  %v3554 = vsub.s32 0, %v3553
  %v3555 = vrot.slane %v3550, %v3554
  %v3557 = vmul.f32 %v3549, %v3555
  %3558 = vadd.xlane.f32.xlu0 %v3557
  %v3559 = vpop.xlane.xlu0 %3558
  %v3560 = vld [vmem:[#allocation2] sm:$0x1]
  %v3562 = vlaneseq
  %v3563 = vshrl.u32 %v3562, 7
  %v3564 = vsub.s32 0, %v3563
  %v3565 = vrot.slane %v3560, %v3564
  %v3567 = vadd.f32 %v3559, %v3565
  %v3568 = vxor.u32 %v3567, 2147483648
  %v3569 = vmul.f32 %v3568, 1.442695
  %v3570 = vpow.pop %v3569
  %v3571 = vadd.f32 %v3570, 1.0
  %v3572 = vrcp.pop %v3571
  %v3573 = vmul.f32 1.0, %v3572
  %vm3574 = vcmask 7168
  %3575 = vst.msk [vmem:[%s12] sm:$0xff] %vm3574, %v3573
  // Predicated region
  $region50: #{lstm_double_aa_forward.1} parent=0 // pred_check
    _
  $region51: #{lstm_double_aa_forward.1} parent=0 // pred_check_branch
    %3577 = sbr.rel (0) target = $region53
  $region52: #{lstm_double_aa_forward.1} parent=0 // pred_region
    _
  $region53: #{lstm_double_aa_forward.1} parent=0 // pred_fallthru
    _
  // Predicated region
  $region54: #{lstm_double_aa_forward.1} parent=0 // pred_check
    _
  $region55: #{lstm_double_aa_forward.1} parent=0 // pred_check_branch
    %3579 = sbr.rel (0) target = $region57
  $region56: #{lstm_double_aa_forward.1} parent=0 // pred_region
    _
  $region57: #{lstm_double_aa_forward.1} parent=0 // pred_fallthru
    _

</llo_original>
